<compile_context>
chip_gen: v5e
topology: v5e:2x2
jax: 0.10.0
libtpu: 0.0.40
codegen_flags: <defaults>
</compile_context>

<pallas_src>
import functools

import jax
import jax.numpy as jnp
from jax import lax
from jax.experimental import pallas as pl
from jax.experimental.pallas import tpu as pltpu


_PARAM_ORDER = ("wqkv", "bqkv", "wo", "bo", "ln1w", "ln1b",
                "w1", "b1", "w2", "b2", "ln2w", "ln2b")


# ------------------------------ helpers ---------------------------------------

def _layernorm(x, w, b, eps=1e-5):
    mean = jnp.mean(x, axis=-1, keepdims=True)
    var = jnp.mean((x - mean) ** 2, axis=-1, keepdims=True)
    return (x - mean) * lax.rsqrt(var + eps) * w + b


def _fast_recip(x):
    # EUP approximate reciprocal + one Newton-Raphson step: keeps the softmax
    # divide off the VALU while staying ~f32-accurate.
    r = pl.reciprocal(x, approx=True)
    return r * (2.0 - x * r)


# ----------------------------- Pallas kernel ----------------------------------

def encoder_stack_kernel(x_ref,
                         wqkv_ref, bqkv_ref, wo_ref, bo_ref,
                         ln1w_ref, ln1b_ref,
                         w1_ref, b1_ref, w2_ref, b2_ref,
                         ln2w_ref, ln2b_ref,
                         o_ref, *, nhead, num_layers):
    S, B, D = x_ref.shape
    H = nhead
    Dh = D // H
    M = B * S
    scale = 1.0 / (Dh ** 0.5)

    # (S, B, D) -> (B*S, D): rows of one sequence contiguous.  One VMEM-resident
    # shuffle for the whole stack (replaces two wrapper-side HBM transposes).
    x = x_ref[...].astype(jnp.float32)
    x = jnp.transpose(x, (1, 0, 2)).reshape(M, D)

    for l in range(num_layers):                  # static, fully fused layer loop
        # hoisted single reads of this layer's parameters
        wqkv = wqkv_ref[l]
        bqkv = bqkv_ref[l]
        wo = wo_ref[l]
        bo = bo_ref[l]
        ln1w = ln1w_ref[l]
        ln1b = ln1b_ref[l]
        w1 = w1_ref[l]
        b1 = b1_ref[l]
        w2 = w2_ref[l]
        b2 = b2_ref[l]
        ln2w = ln2w_ref[l]
        ln2b = ln2b_ref[l]

        # ---- fused QKV projection over the whole (B*S, D) slab ---------------
        qkv = jnp.dot(x, wqkv, preferred_element_type=jnp.float32) + bqkv

        # ---- multi-head self attention ---------------------------------------
        attn_rows = []
        for b in range(B):                        # static unrolled batch loop
            r0, r1 = b * S, (b + 1) * S
            q_b = qkv[r0:r1, 0:D]
            k_b = qkv[r0:r1, D:2 * D]
            v_b = qkv[r0:r1, 2 * D:3 * D]
            acc = jnp.zeros((S, D), jnp.float32)
            for h in range(H):                    # static unrolled head loop
                c0, c1 = h * Dh, (h + 1) * Dh
                qh = q_b[:, c0:c1] * scale
                kh = k_b[:, c0:c1]
                vh = v_b[:, c0:c1]
                # Q @ K^T without materializing a transpose.
                s = lax.dot_general(qh, kh,
                                    dimension_numbers=(((1,), (1,)), ((), ())),
                                    preferred_element_type=jnp.float32)
                s = s - jnp.max(s, axis=-1, keepdims=True)
                p = jnp.exp(s)
                p = p * _fast_recip(jnp.sum(p, axis=-1, keepdims=True))
                head = jnp.dot(p, vh, preferred_element_type=jnp.float32)
                # fold the head merge straight into the output projection (MXU
                # accumulation instead of a lane-axis concatenate).
                acc = acc + jnp.dot(head, wo[c0:c1, :],
                                    preferred_element_type=jnp.float32)
            attn_rows.append(acc)
        attn = jnp.concatenate(attn_rows, axis=0) + bo       # (B*S, D)

        # ---- residual + layernorm 1 ------------------------------------------
        x1 = _layernorm(x + attn, ln1w, ln1b)

        # ---- feed forward (relu) ----------------------------------------------
        h1 = jnp.maximum(
            jnp.dot(x1, w1, preferred_element_type=jnp.float32) + b1, 0.0)
        h2 = jnp.dot(h1, w2, preferred_element_type=jnp.float32) + b2

        # ---- residual + layernorm 2 -------------------------------------------
        x = _layernorm(x1 + h2, ln2w, ln2b)

    # (B*S, D) -> (S, B, D); single full-block store of the whole result.
    out = jnp.transpose(x.reshape(B, S, D), (1, 0, 2))
    o_ref[...] = out.astype(o_ref.dtype)


# ------------------------------ wrapper ----------------------------------------

def encoder_stack(src, params, nhead):
    """src: (seq, batch, d_model) — PyTorch batch_first=False.  One fused call."""
    S, B, D = src.shape
    L, _, F = params["w1"].shape
    weights = [params[k] for k in _PARAM_ORDER]

    in_specs = [pl.BlockSpec((S, B, D), lambda i: (0, 0, 0))]
    in_specs += [pl.BlockSpec(tuple(w.shape), lambda i: (0, 0, 0)) for w in weights]
    out_spec = pl.BlockSpec((S, B, D), lambda i: (0, 0, 0))

    # advisory cost hint for the XLA scheduler
    M = B * S
    flops_layer = (2 * M * D * 3 * D        # qkv projection
                   + 2 * B * S * S * D      # Q @ K^T (all heads)
                   + 2 * B * S * S * D      # P @ V   (all heads)
                   + 2 * M * D * D          # output projection
                   + 2 * M * D * F          # ffn up
                   + 2 * M * F * D)         # ffn down
    transc_layer = B * nhead * S * S + B * nhead * S + 2 * M
    wbytes = sum(int(w.size) * w.dtype.itemsize for w in weights)
    cost = pl.CostEstimate(
        flops=L * flops_layer,
        transcendentals=L * transc_layer,
        bytes_accessed=2 * int(src.size) * src.dtype.itemsize + wbytes)

    kern = functools.partial(encoder_stack_kernel, nhead=nhead, num_layers=L)
    return pl.pallas_call(
        kern,
        out_shape=jax.ShapeDtypeStruct((S, B, D), src.dtype),
        grid=(1,),
        in_specs=in_specs,
        out_specs=out_spec,
        compiler_params=pltpu.CompilerParams(
            dimension_semantics=("arbitrary",),
            vmem_limit_bytes=32 * 1024 * 1024),
        cost_estimate=cost,
    )(src, *weights)


# --------------------------- parameter init -------------------------------------

def init_params(key, d_model, d_ffn, num_layers):
    """Deterministic synthetic weights, stacked along a leading layer axis.
    Linear weights are stored pre-transposed (in, out) so the kernel computes
    x @ W; biases / LN params are stored as (1, N)."""
    per_layer = []
    for _ in range(num_layers):
        key, k1, k2, k3, k4 = jax.random.split(key, 5)
        scale = 0.05
        per_layer.append(dict(
            wqkv=jax.random.normal(k1, (d_model, 3 * d_model), jnp.float32) * scale,
            bqkv=jnp.zeros((1, 3 * d_model), jnp.float32),
            wo=jax.random.normal(k2, (d_model, d_model), jnp.float32) * scale,
            bo=jnp.zeros((1, d_model), jnp.float32),
            ln1w=jnp.ones((1, d_model), jnp.float32),
            ln1b=jnp.zeros((1, d_model), jnp.float32),
            w1=jax.random.normal(k3, (d_model, d_ffn), jnp.float32) * scale,
            b1=jnp.zeros((1, d_ffn), jnp.float32),
            w2=jax.random.normal(k4, (d_ffn, d_model), jnp.float32) * scale,
            b2=jnp.zeros((1, d_model), jnp.float32),
            ln2w=jnp.ones((1, d_model), jnp.float32),
            ln2b=jnp.zeros((1, d_model), jnp.float32),
        ))
    return {k: jnp.stack([p[k] for p in per_layer], axis=0) for k in _PARAM_ORDER}


# --------------------------- pure-JAX reference ----------------------------------

def encoder_stack_ref(src, params, nhead):
    x = jnp.transpose(src, (1, 0, 2))                       # (B, S, D)
    B, S, D = x.shape
    Dh = D // nhead
    scale = 1.0 / (Dh ** 0.5)
    L = params["wqkv"].shape[0]
    for l in range(L):
        p = {k: params[k][l] for k in _PARAM_ORDER}
        qkv = x @ p["wqkv"] + p["bqkv"]
        q, k, v = qkv[..., :D], qkv[..., D:2 * D], qkv[..., 2 * D:]
        qh = q.reshape(B, S, nhead, Dh).transpose(0, 2, 1, 3) * scale
        kh = k.reshape(B, S, nhead, Dh).transpose(0, 2, 1, 3)
        vh = v.reshape(B, S, nhead, Dh).transpose(0, 2, 1, 3)
        s = jnp.einsum("bhqd,bhkd->bhqk", qh, kh)
        a = jax.nn.softmax(s, axis=-1)
        a = jnp.einsum("bhqk,bhkd->bhqd", a, vh)
        a = a.transpose(0, 2, 1, 3).reshape(B, S, D)
        a = a @ p["wo"] + p["bo"]
        x1 = _layernorm(x + a, p["ln1w"], p["ln1b"])
        h = jnp.maximum(x1 @ p["w1"] + p["b1"], 0.0) @ p["w2"] + p["b2"]
        x = _layernorm(x1 + h, p["ln2w"], p["ln2b"])
    return jnp.transpose(x, (1, 0, 2))


# ---------------------------------- main -----------------------------------------

if __name__ == "__main__":
    # module hyper-params
    d_model, d_ffn, nhead, num_layers, dropout = 32, 64, 4, 2, 0.0
    seq, batch = 8, 2

    key = jax.random.PRNGKey(0)
    key, ksrc = jax.random.split(key)
    src = jax.random.normal(ksrc, (seq, batch, d_model), jnp.float32)

    params = init_params(key, d_model, d_ffn, num_layers)

    out = jax.block_until_ready(encoder_stack(src, params, nhead))
    ref = jax.block_until_ready(encoder_stack_ref(src, params, nhead))

    assert out.shape == (seq, batch, d_model)
    assert jnp.allclose(out, ref, rtol=2e-4, atol=2e-4), "mismatch vs JAX reference"

    print("KERNEL_OK")
</pallas_src>

<mosaic_0001>
module attributes {stable_mosaic.version = 11 : i64} {
  func.func @encoder_stack_kernel(%arg0: i32, %arg1: memref<8x2x32xf32, #tpu.memory_space<vmem>>, %arg2: memref<2x32x96xf32, #tpu.memory_space<vmem>>, %arg3: memref<2x1x96xf32, #tpu.memory_space<vmem>>, %arg4: memref<2x32x32xf32, #tpu.memory_space<vmem>>, %arg5: memref<2x1x32xf32, #tpu.memory_space<vmem>>, %arg6: memref<2x1x32xf32, #tpu.memory_space<vmem>>, %arg7: memref<2x1x32xf32, #tpu.memory_space<vmem>>, %arg8: memref<2x32x64xf32, #tpu.memory_space<vmem>>, %arg9: memref<2x1x64xf32, #tpu.memory_space<vmem>>, %arg10: memref<2x64x32xf32, #tpu.memory_space<vmem>>, %arg11: memref<2x1x32xf32, #tpu.memory_space<vmem>>, %arg12: memref<2x1x32xf32, #tpu.memory_space<vmem>>, %arg13: memref<2x1x32xf32, #tpu.memory_space<vmem>>, %arg14: memref<8x2x32xf32, #tpu.memory_space<vmem>>) attributes {dimension_semantics = [#tpu.dimension_semantics<arbitrary>], iteration_bounds = array<i64: 1>, scalar_prefetch = 0 : i64, scratch_operands = 0 : i64, tpu.core_type = #tpu.core_type<tc>, window_params = [{pipeline_mode = #tpu.pipeline_mode<synchronous>, transform_indices = @transform_0, window_bounds = array<i64: 8, 2, 32>}, {pipeline_mode = #tpu.pipeline_mode<synchronous>, transform_indices = @transform_1, window_bounds = array<i64: 2, 32, 96>}, {pipeline_mode = #tpu.pipeline_mode<synchronous>, transform_indices = @transform_2, window_bounds = array<i64: 2, 1, 96>}, {pipeline_mode = #tpu.pipeline_mode<synchronous>, transform_indices = @transform_3, window_bounds = array<i64: 2, 32, 32>}, {pipeline_mode = #tpu.pipeline_mode<synchronous>, transform_indices = @transform_4, window_bounds = array<i64: 2, 1, 32>}, {pipeline_mode = #tpu.pipeline_mode<synchronous>, transform_indices = @transform_5, window_bounds = array<i64: 2, 1, 32>}, {pipeline_mode = #tpu.pipeline_mode<synchronous>, transform_indices = @transform_6, window_bounds = array<i64: 2, 1, 32>}, {pipeline_mode = #tpu.pipeline_mode<synchronous>, transform_indices = @transform_7, window_bounds = array<i64: 2, 32, 64>}, {pipeline_mode = #tpu.pipeline_mode<synchronous>, transform_indices = @transform_8, window_bounds = array<i64: 2, 1, 64>}, {pipeline_mode = #tpu.pipeline_mode<synchronous>, transform_indices = @transform_9, window_bounds = array<i64: 2, 64, 32>}, {pipeline_mode = #tpu.pipeline_mode<synchronous>, transform_indices = @transform_10, window_bounds = array<i64: 2, 1, 32>}, {pipeline_mode = #tpu.pipeline_mode<synchronous>, transform_indices = @transform_11, window_bounds = array<i64: 2, 1, 32>}, {pipeline_mode = #tpu.pipeline_mode<synchronous>, transform_indices = @transform_12, window_bounds = array<i64: 2, 1, 32>}, {pipeline_mode = #tpu.pipeline_mode<synchronous>, transform_indices = @transform_13, window_bounds = array<i64: 8, 2, 32>}]} {
    %c0 = arith.constant 0 : index
    %c0_0 = arith.constant 0 : index
    %c0_1 = arith.constant 0 : index
    %0 = vector.load %arg1[%c0, %c0_0, %c0_1] : memref<8x2x32xf32, #tpu.memory_space<vmem>>, vector<8x2x32xf32>
    %1 = tpu.transpose %0, [1, 0, 2] : vector<8x2x32xf32> -> vector<2x8x32xf32>
    %2 = vector.shape_cast %1 : vector<2x8x32xf32> to vector<16x32xf32>
    %c0_2 = arith.constant 0 : index
    %c0_3 = arith.constant 0 : index
    %c0_4 = arith.constant 0 : index
    %3 = vector.load %arg2[%c0_2, %c0_3, %c0_4] : memref<2x32x96xf32, #tpu.memory_space<vmem>>, vector<1x32x96xf32>
    %4 = vector.shape_cast %3 : vector<1x32x96xf32> to vector<32x96xf32>
    %c0_5 = arith.constant 0 : index
    %c0_6 = arith.constant 0 : index
    %c0_7 = arith.constant 0 : index
    %5 = vector.load %arg3[%c0_5, %c0_6, %c0_7] : memref<2x1x96xf32, #tpu.memory_space<vmem>>, vector<1x1x96xf32>
    %6 = vector.shape_cast %5 : vector<1x1x96xf32> to vector<1x96xf32>
    %c0_8 = arith.constant 0 : index
    %c0_9 = arith.constant 0 : index
    %c0_10 = arith.constant 0 : index
    %7 = vector.load %arg4[%c0_8, %c0_9, %c0_10] : memref<2x32x32xf32, #tpu.memory_space<vmem>>, vector<1x32x32xf32>
    %8 = vector.shape_cast %7 : vector<1x32x32xf32> to vector<32x32xf32>
    %c0_11 = arith.constant 0 : index
    %c0_12 = arith.constant 0 : index
    %c0_13 = arith.constant 0 : index
    %9 = vector.load %arg5[%c0_11, %c0_12, %c0_13] : memref<2x1x32xf32, #tpu.memory_space<vmem>>, vector<1x1x32xf32>
    %10 = vector.shape_cast %9 : vector<1x1x32xf32> to vector<1x32xf32>
    %c0_14 = arith.constant 0 : index
    %c0_15 = arith.constant 0 : index
    %c0_16 = arith.constant 0 : index
    %11 = vector.load %arg6[%c0_14, %c0_15, %c0_16] : memref<2x1x32xf32, #tpu.memory_space<vmem>>, vector<1x1x32xf32>
    %12 = vector.shape_cast %11 : vector<1x1x32xf32> to vector<1x32xf32>
    %c0_17 = arith.constant 0 : index
    %c0_18 = arith.constant 0 : index
    %c0_19 = arith.constant 0 : index
    %13 = vector.load %arg7[%c0_17, %c0_18, %c0_19] : memref<2x1x32xf32, #tpu.memory_space<vmem>>, vector<1x1x32xf32>
    %14 = vector.shape_cast %13 : vector<1x1x32xf32> to vector<1x32xf32>
    %c0_20 = arith.constant 0 : index
    %c0_21 = arith.constant 0 : index
    %c0_22 = arith.constant 0 : index
    %15 = vector.load %arg8[%c0_20, %c0_21, %c0_22] : memref<2x32x64xf32, #tpu.memory_space<vmem>>, vector<1x32x64xf32>
    %16 = vector.shape_cast %15 : vector<1x32x64xf32> to vector<32x64xf32>
    %c0_23 = arith.constant 0 : index
    %c0_24 = arith.constant 0 : index
    %c0_25 = arith.constant 0 : index
    %17 = vector.load %arg9[%c0_23, %c0_24, %c0_25] : memref<2x1x64xf32, #tpu.memory_space<vmem>>, vector<1x1x64xf32>
    %18 = vector.shape_cast %17 : vector<1x1x64xf32> to vector<1x64xf32>
    %c0_26 = arith.constant 0 : index
    %c0_27 = arith.constant 0 : index
    %c0_28 = arith.constant 0 : index
    %19 = vector.load %arg10[%c0_26, %c0_27, %c0_28] : memref<2x64x32xf32, #tpu.memory_space<vmem>>, vector<1x64x32xf32>
    %20 = vector.shape_cast %19 : vector<1x64x32xf32> to vector<64x32xf32>
    %c0_29 = arith.constant 0 : index
    %c0_30 = arith.constant 0 : index
    %c0_31 = arith.constant 0 : index
    %21 = vector.load %arg11[%c0_29, %c0_30, %c0_31] : memref<2x1x32xf32, #tpu.memory_space<vmem>>, vector<1x1x32xf32>
    %22 = vector.shape_cast %21 : vector<1x1x32xf32> to vector<1x32xf32>
    %c0_32 = arith.constant 0 : index
    %c0_33 = arith.constant 0 : index
    %c0_34 = arith.constant 0 : index
    %23 = vector.load %arg12[%c0_32, %c0_33, %c0_34] : memref<2x1x32xf32, #tpu.memory_space<vmem>>, vector<1x1x32xf32>
    %24 = vector.shape_cast %23 : vector<1x1x32xf32> to vector<1x32xf32>
    %c0_35 = arith.constant 0 : index
    %c0_36 = arith.constant 0 : index
    %c0_37 = arith.constant 0 : index
    %25 = vector.load %arg13[%c0_35, %c0_36, %c0_37] : memref<2x1x32xf32, #tpu.memory_space<vmem>>, vector<1x1x32xf32>
    %26 = vector.shape_cast %25 : vector<1x1x32xf32> to vector<1x32xf32>
    %cst = arith.constant dense<0.000000e+00> : vector<16x96xf32>
    %27 = tpu.matmul %2, %4, %cst {dimension_numbers = #tpu.dot_dimension_numbers<[1], [0], [0], [1], [0, 0, 1, 1], [], []>} : vector<16x32xf32>, vector<32x96xf32>, vector<16x96xf32> -> vector<16x96xf32>
    %28 = vector.broadcast %6 : vector<1x96xf32> to vector<16x96xf32>
    %29 = arith.addf %27, %28 : vector<16x96xf32>
    %30 = vector.extract_strided_slice %29 {offsets = [0, 0], sizes = [8, 32], strides = [1, 1]} : vector<16x96xf32> to vector<8x32xf32>
    %31 = vector.extract_strided_slice %29 {offsets = [0, 32], sizes = [8, 32], strides = [1, 1]} : vector<16x96xf32> to vector<8x32xf32>
    %32 = vector.extract_strided_slice %29 {offsets = [0, 64], sizes = [8, 32], strides = [1, 1]} : vector<16x96xf32> to vector<8x32xf32>
    %cst_38 = arith.constant 0.000000e+00 : f32
    %33 = vector.broadcast %cst_38 : f32 to vector<8x32xf32>
    %34 = vector.extract_strided_slice %30 {offsets = [0, 0], sizes = [8, 8], strides = [1, 1]} : vector<8x32xf32> to vector<8x8xf32>
    %cst_39 = arith.constant 0.353553385 : f32
    %35 = vector.broadcast %cst_39 : f32 to vector<8x8xf32>
    %36 = arith.mulf %34, %35 : vector<8x8xf32>
    %37 = vector.extract_strided_slice %31 {offsets = [0, 0], sizes = [8, 8], strides = [1, 1]} : vector<8x32xf32> to vector<8x8xf32>
    %38 = vector.extract_strided_slice %32 {offsets = [0, 0], sizes = [8, 8], strides = [1, 1]} : vector<8x32xf32> to vector<8x8xf32>
    %cst_40 = arith.constant dense<0.000000e+00> : vector<8x8xf32>
    %39 = tpu.matmul %36, %37, %cst_40 {dimension_numbers = #tpu.dot_dimension_numbers<[1], [1], [0], [0], [0, 0, 1, 0], [], []>} : vector<8x8xf32>, vector<8x8xf32>, vector<8x8xf32> -> vector<8x8xf32>
    %cst_41 = arith.constant dense<0xFF800000> : vector<8xf32>
    %40 = vector.multi_reduction <maximumf>, %39, %cst_41 [1] : vector<8x8xf32> to vector<8xf32>
    %41 = vector.shape_cast %40 : vector<8xf32> to vector<8x1xf32>
    %42 = vector.broadcast %41 : vector<8x1xf32> to vector<8x8xf32>
    %43 = arith.subf %39, %42 : vector<8x8xf32>
    %44 = math.exp %43 : vector<8x8xf32>
    %cst_42 = arith.constant dense<0.000000e+00> : vector<8xf32>
    %45 = vector.multi_reduction <add>, %44, %cst_42 [1] : vector<8x8xf32> to vector<8xf32>
    %46 = vector.shape_cast %45 : vector<8xf32> to vector<8x1xf32>
    %47 = tpu.reciprocal %46 {approx = true} : vector<8x1xf32> -> vector<8x1xf32>
    %48 = arith.mulf %46, %47 : vector<8x1xf32>
    %cst_43 = arith.constant 2.000000e+00 : f32
    %49 = vector.broadcast %cst_43 : f32 to vector<8x1xf32>
    %50 = arith.subf %49, %48 : vector<8x1xf32>
    %51 = arith.mulf %47, %50 : vector<8x1xf32>
    %52 = vector.broadcast %51 : vector<8x1xf32> to vector<8x8xf32>
    %53 = arith.mulf %44, %52 : vector<8x8xf32>
    %cst_44 = arith.constant dense<0.000000e+00> : vector<8x8xf32>
    %54 = tpu.matmul %53, %38, %cst_44 {dimension_numbers = #tpu.dot_dimension_numbers<[1], [0], [0], [1], [0, 0, 1, 1], [], []>} : vector<8x8xf32>, vector<8x8xf32>, vector<8x8xf32> -> vector<8x8xf32>
    %55 = vector.extract_strided_slice %8 {offsets = [0, 0], sizes = [8, 32], strides = [1, 1]} : vector<32x32xf32> to vector<8x32xf32>
    %cst_45 = arith.constant dense<0.000000e+00> : vector<8x32xf32>
    %56 = tpu.matmul %54, %55, %cst_45 {dimension_numbers = #tpu.dot_dimension_numbers<[1], [0], [0], [1], [0, 0, 1, 1], [], []>} : vector<8x8xf32>, vector<8x32xf32>, vector<8x32xf32> -> vector<8x32xf32>
    %57 = arith.addf %33, %56 : vector<8x32xf32>
    %58 = vector.extract_strided_slice %30 {offsets = [0, 8], sizes = [8, 8], strides = [1, 1]} : vector<8x32xf32> to vector<8x8xf32>
    %cst_46 = arith.constant 0.353553385 : f32
    %59 = vector.broadcast %cst_46 : f32 to vector<8x8xf32>
    %60 = arith.mulf %58, %59 : vector<8x8xf32>
    %61 = vector.extract_strided_slice %31 {offsets = [0, 8], sizes = [8, 8], strides = [1, 1]} : vector<8x32xf32> to vector<8x8xf32>
    %62 = vector.extract_strided_slice %32 {offsets = [0, 8], sizes = [8, 8], strides = [1, 1]} : vector<8x32xf32> to vector<8x8xf32>
    %cst_47 = arith.constant dense<0.000000e+00> : vector<8x8xf32>
    %63 = tpu.matmul %60, %61, %cst_47 {dimension_numbers = #tpu.dot_dimension_numbers<[1], [1], [0], [0], [0, 0, 1, 0], [], []>} : vector<8x8xf32>, vector<8x8xf32>, vector<8x8xf32> -> vector<8x8xf32>
    %cst_48 = arith.constant dense<0xFF800000> : vector<8xf32>
    %64 = vector.multi_reduction <maximumf>, %63, %cst_48 [1] : vector<8x8xf32> to vector<8xf32>
    %65 = vector.shape_cast %64 : vector<8xf32> to vector<8x1xf32>
    %66 = vector.broadcast %65 : vector<8x1xf32> to vector<8x8xf32>
    %67 = arith.subf %63, %66 : vector<8x8xf32>
    %68 = math.exp %67 : vector<8x8xf32>
    %cst_49 = arith.constant dense<0.000000e+00> : vector<8xf32>
    %69 = vector.multi_reduction <add>, %68, %cst_49 [1] : vector<8x8xf32> to vector<8xf32>
    %70 = vector.shape_cast %69 : vector<8xf32> to vector<8x1xf32>
    %71 = tpu.reciprocal %70 {approx = true} : vector<8x1xf32> -> vector<8x1xf32>
    %72 = arith.mulf %70, %71 : vector<8x1xf32>
    %cst_50 = arith.constant 2.000000e+00 : f32
    %73 = vector.broadcast %cst_50 : f32 to vector<8x1xf32>
    %74 = arith.subf %73, %72 : vector<8x1xf32>
    %75 = arith.mulf %71, %74 : vector<8x1xf32>
    %76 = vector.broadcast %75 : vector<8x1xf32> to vector<8x8xf32>
    %77 = arith.mulf %68, %76 : vector<8x8xf32>
    %cst_51 = arith.constant dense<0.000000e+00> : vector<8x8xf32>
    %78 = tpu.matmul %77, %62, %cst_51 {dimension_numbers = #tpu.dot_dimension_numbers<[1], [0], [0], [1], [0, 0, 1, 1], [], []>} : vector<8x8xf32>, vector<8x8xf32>, vector<8x8xf32> -> vector<8x8xf32>
    %79 = vector.extract_strided_slice %8 {offsets = [8, 0], sizes = [8, 32], strides = [1, 1]} : vector<32x32xf32> to vector<8x32xf32>
    %cst_52 = arith.constant dense<0.000000e+00> : vector<8x32xf32>
    %80 = tpu.matmul %78, %79, %cst_52 {dimension_numbers = #tpu.dot_dimension_numbers<[1], [0], [0], [1], [0, 0, 1, 1], [], []>} : vector<8x8xf32>, vector<8x32xf32>, vector<8x32xf32> -> vector<8x32xf32>
    %81 = arith.addf %57, %80 : vector<8x32xf32>
    %82 = vector.extract_strided_slice %30 {offsets = [0, 16], sizes = [8, 8], strides = [1, 1]} : vector<8x32xf32> to vector<8x8xf32>
    %cst_53 = arith.constant 0.353553385 : f32
    %83 = vector.broadcast %cst_53 : f32 to vector<8x8xf32>
    %84 = arith.mulf %82, %83 : vector<8x8xf32>
    %85 = vector.extract_strided_slice %31 {offsets = [0, 16], sizes = [8, 8], strides = [1, 1]} : vector<8x32xf32> to vector<8x8xf32>
    %86 = vector.extract_strided_slice %32 {offsets = [0, 16], sizes = [8, 8], strides = [1, 1]} : vector<8x32xf32> to vector<8x8xf32>
    %cst_54 = arith.constant dense<0.000000e+00> : vector<8x8xf32>
    %87 = tpu.matmul %84, %85, %cst_54 {dimension_numbers = #tpu.dot_dimension_numbers<[1], [1], [0], [0], [0, 0, 1, 0], [], []>} : vector<8x8xf32>, vector<8x8xf32>, vector<8x8xf32> -> vector<8x8xf32>
    %cst_55 = arith.constant dense<0xFF800000> : vector<8xf32>
    %88 = vector.multi_reduction <maximumf>, %87, %cst_55 [1] : vector<8x8xf32> to vector<8xf32>
    %89 = vector.shape_cast %88 : vector<8xf32> to vector<8x1xf32>
    %90 = vector.broadcast %89 : vector<8x1xf32> to vector<8x8xf32>
    %91 = arith.subf %87, %90 : vector<8x8xf32>
    %92 = math.exp %91 : vector<8x8xf32>
    %cst_56 = arith.constant dense<0.000000e+00> : vector<8xf32>
    %93 = vector.multi_reduction <add>, %92, %cst_56 [1] : vector<8x8xf32> to vector<8xf32>
    %94 = vector.shape_cast %93 : vector<8xf32> to vector<8x1xf32>
    %95 = tpu.reciprocal %94 {approx = true} : vector<8x1xf32> -> vector<8x1xf32>
    %96 = arith.mulf %94, %95 : vector<8x1xf32>
    %cst_57 = arith.constant 2.000000e+00 : f32
    %97 = vector.broadcast %cst_57 : f32 to vector<8x1xf32>
    %98 = arith.subf %97, %96 : vector<8x1xf32>
    %99 = arith.mulf %95, %98 : vector<8x1xf32>
    %100 = vector.broadcast %99 : vector<8x1xf32> to vector<8x8xf32>
    %101 = arith.mulf %92, %100 : vector<8x8xf32>
    %cst_58 = arith.constant dense<0.000000e+00> : vector<8x8xf32>
    %102 = tpu.matmul %101, %86, %cst_58 {dimension_numbers = #tpu.dot_dimension_numbers<[1], [0], [0], [1], [0, 0, 1, 1], [], []>} : vector<8x8xf32>, vector<8x8xf32>, vector<8x8xf32> -> vector<8x8xf32>
    %103 = vector.extract_strided_slice %8 {offsets = [16, 0], sizes = [8, 32], strides = [1, 1]} : vector<32x32xf32> to vector<8x32xf32>
    %cst_59 = arith.constant dense<0.000000e+00> : vector<8x32xf32>
    %104 = tpu.matmul %102, %103, %cst_59 {dimension_numbers = #tpu.dot_dimension_numbers<[1], [0], [0], [1], [0, 0, 1, 1], [], []>} : vector<8x8xf32>, vector<8x32xf32>, vector<8x32xf32> -> vector<8x32xf32>
    %105 = arith.addf %81, %104 : vector<8x32xf32>
    %106 = vector.extract_strided_slice %30 {offsets = [0, 24], sizes = [8, 8], strides = [1, 1]} : vector<8x32xf32> to vector<8x8xf32>
    %cst_60 = arith.constant 0.353553385 : f32
    %107 = vector.broadcast %cst_60 : f32 to vector<8x8xf32>
    %108 = arith.mulf %106, %107 : vector<8x8xf32>
    %109 = vector.extract_strided_slice %31 {offsets = [0, 24], sizes = [8, 8], strides = [1, 1]} : vector<8x32xf32> to vector<8x8xf32>
    %110 = vector.extract_strided_slice %32 {offsets = [0, 24], sizes = [8, 8], strides = [1, 1]} : vector<8x32xf32> to vector<8x8xf32>
    %cst_61 = arith.constant dense<0.000000e+00> : vector<8x8xf32>
    %111 = tpu.matmul %108, %109, %cst_61 {dimension_numbers = #tpu.dot_dimension_numbers<[1], [1], [0], [0], [0, 0, 1, 0], [], []>} : vector<8x8xf32>, vector<8x8xf32>, vector<8x8xf32> -> vector<8x8xf32>
    %cst_62 = arith.constant dense<0xFF800000> : vector<8xf32>
    %112 = vector.multi_reduction <maximumf>, %111, %cst_62 [1] : vector<8x8xf32> to vector<8xf32>
    %113 = vector.shape_cast %112 : vector<8xf32> to vector<8x1xf32>
    %114 = vector.broadcast %113 : vector<8x1xf32> to vector<8x8xf32>
    %115 = arith.subf %111, %114 : vector<8x8xf32>
    %116 = math.exp %115 : vector<8x8xf32>
    %cst_63 = arith.constant dense<0.000000e+00> : vector<8xf32>
    %117 = vector.multi_reduction <add>, %116, %cst_63 [1] : vector<8x8xf32> to vector<8xf32>
    %118 = vector.shape_cast %117 : vector<8xf32> to vector<8x1xf32>
    %119 = tpu.reciprocal %118 {approx = true} : vector<8x1xf32> -> vector<8x1xf32>
    %120 = arith.mulf %118, %119 : vector<8x1xf32>
    %cst_64 = arith.constant 2.000000e+00 : f32
    %121 = vector.broadcast %cst_64 : f32 to vector<8x1xf32>
    %122 = arith.subf %121, %120 : vector<8x1xf32>
    %123 = arith.mulf %119, %122 : vector<8x1xf32>
    %124 = vector.broadcast %123 : vector<8x1xf32> to vector<8x8xf32>
    %125 = arith.mulf %116, %124 : vector<8x8xf32>
    %cst_65 = arith.constant dense<0.000000e+00> : vector<8x8xf32>
    %126 = tpu.matmul %125, %110, %cst_65 {dimension_numbers = #tpu.dot_dimension_numbers<[1], [0], [0], [1], [0, 0, 1, 1], [], []>} : vector<8x8xf32>, vector<8x8xf32>, vector<8x8xf32> -> vector<8x8xf32>
    %127 = vector.extract_strided_slice %8 {offsets = [24, 0], sizes = [8, 32], strides = [1, 1]} : vector<32x32xf32> to vector<8x32xf32>
    %cst_66 = arith.constant dense<0.000000e+00> : vector<8x32xf32>
    %128 = tpu.matmul %126, %127, %cst_66 {dimension_numbers = #tpu.dot_dimension_numbers<[1], [0], [0], [1], [0, 0, 1, 1], [], []>} : vector<8x8xf32>, vector<8x32xf32>, vector<8x32xf32> -> vector<8x32xf32>
    %129 = arith.addf %105, %128 : vector<8x32xf32>
    %130 = vector.extract_strided_slice %29 {offsets = [8, 0], sizes = [8, 32], strides = [1, 1]} : vector<16x96xf32> to vector<8x32xf32>
    %131 = vector.extract_strided_slice %29 {offsets = [8, 32], sizes = [8, 32], strides = [1, 1]} : vector<16x96xf32> to vector<8x32xf32>
    %132 = vector.extract_strided_slice %29 {offsets = [8, 64], sizes = [8, 32], strides = [1, 1]} : vector<16x96xf32> to vector<8x32xf32>
    %cst_67 = arith.constant 0.000000e+00 : f32
    %133 = vector.broadcast %cst_67 : f32 to vector<8x32xf32>
    %134 = vector.extract_strided_slice %130 {offsets = [0, 0], sizes = [8, 8], strides = [1, 1]} : vector<8x32xf32> to vector<8x8xf32>
    %cst_68 = arith.constant 0.353553385 : f32
    %135 = vector.broadcast %cst_68 : f32 to vector<8x8xf32>
    %136 = arith.mulf %134, %135 : vector<8x8xf32>
    %137 = vector.extract_strided_slice %131 {offsets = [0, 0], sizes = [8, 8], strides = [1, 1]} : vector<8x32xf32> to vector<8x8xf32>
    %138 = vector.extract_strided_slice %132 {offsets = [0, 0], sizes = [8, 8], strides = [1, 1]} : vector<8x32xf32> to vector<8x8xf32>
    %cst_69 = arith.constant dense<0.000000e+00> : vector<8x8xf32>
    %139 = tpu.matmul %136, %137, %cst_69 {dimension_numbers = #tpu.dot_dimension_numbers<[1], [1], [0], [0], [0, 0, 1, 0], [], []>} : vector<8x8xf32>, vector<8x8xf32>, vector<8x8xf32> -> vector<8x8xf32>
    %cst_70 = arith.constant dense<0xFF800000> : vector<8xf32>
    %140 = vector.multi_reduction <maximumf>, %139, %cst_70 [1] : vector<8x8xf32> to vector<8xf32>
    %141 = vector.shape_cast %140 : vector<8xf32> to vector<8x1xf32>
    %142 = vector.broadcast %141 : vector<8x1xf32> to vector<8x8xf32>
    %143 = arith.subf %139, %142 : vector<8x8xf32>
    %144 = math.exp %143 : vector<8x8xf32>
    %cst_71 = arith.constant dense<0.000000e+00> : vector<8xf32>
    %145 = vector.multi_reduction <add>, %144, %cst_71 [1] : vector<8x8xf32> to vector<8xf32>
    %146 = vector.shape_cast %145 : vector<8xf32> to vector<8x1xf32>
    %147 = tpu.reciprocal %146 {approx = true} : vector<8x1xf32> -> vector<8x1xf32>
    %148 = arith.mulf %146, %147 : vector<8x1xf32>
    %cst_72 = arith.constant 2.000000e+00 : f32
    %149 = vector.broadcast %cst_72 : f32 to vector<8x1xf32>
    %150 = arith.subf %149, %148 : vector<8x1xf32>
    %151 = arith.mulf %147, %150 : vector<8x1xf32>
    %152 = vector.broadcast %151 : vector<8x1xf32> to vector<8x8xf32>
    %153 = arith.mulf %144, %152 : vector<8x8xf32>
    %cst_73 = arith.constant dense<0.000000e+00> : vector<8x8xf32>
    %154 = tpu.matmul %153, %138, %cst_73 {dimension_numbers = #tpu.dot_dimension_numbers<[1], [0], [0], [1], [0, 0, 1, 1], [], []>} : vector<8x8xf32>, vector<8x8xf32>, vector<8x8xf32> -> vector<8x8xf32>
    %155 = vector.extract_strided_slice %8 {offsets = [0, 0], sizes = [8, 32], strides = [1, 1]} : vector<32x32xf32> to vector<8x32xf32>
    %cst_74 = arith.constant dense<0.000000e+00> : vector<8x32xf32>
    %156 = tpu.matmul %154, %155, %cst_74 {dimension_numbers = #tpu.dot_dimension_numbers<[1], [0], [0], [1], [0, 0, 1, 1], [], []>} : vector<8x8xf32>, vector<8x32xf32>, vector<8x32xf32> -> vector<8x32xf32>
    %157 = arith.addf %133, %156 : vector<8x32xf32>
    %158 = vector.extract_strided_slice %130 {offsets = [0, 8], sizes = [8, 8], strides = [1, 1]} : vector<8x32xf32> to vector<8x8xf32>
    %cst_75 = arith.constant 0.353553385 : f32
    %159 = vector.broadcast %cst_75 : f32 to vector<8x8xf32>
    %160 = arith.mulf %158, %159 : vector<8x8xf32>
    %161 = vector.extract_strided_slice %131 {offsets = [0, 8], sizes = [8, 8], strides = [1, 1]} : vector<8x32xf32> to vector<8x8xf32>
    %162 = vector.extract_strided_slice %132 {offsets = [0, 8], sizes = [8, 8], strides = [1, 1]} : vector<8x32xf32> to vector<8x8xf32>
    %cst_76 = arith.constant dense<0.000000e+00> : vector<8x8xf32>
    %163 = tpu.matmul %160, %161, %cst_76 {dimension_numbers = #tpu.dot_dimension_numbers<[1], [1], [0], [0], [0, 0, 1, 0], [], []>} : vector<8x8xf32>, vector<8x8xf32>, vector<8x8xf32> -> vector<8x8xf32>
    %cst_77 = arith.constant dense<0xFF800000> : vector<8xf32>
    %164 = vector.multi_reduction <maximumf>, %163, %cst_77 [1] : vector<8x8xf32> to vector<8xf32>
    %165 = vector.shape_cast %164 : vector<8xf32> to vector<8x1xf32>
    %166 = vector.broadcast %165 : vector<8x1xf32> to vector<8x8xf32>
    %167 = arith.subf %163, %166 : vector<8x8xf32>
    %168 = math.exp %167 : vector<8x8xf32>
    %cst_78 = arith.constant dense<0.000000e+00> : vector<8xf32>
    %169 = vector.multi_reduction <add>, %168, %cst_78 [1] : vector<8x8xf32> to vector<8xf32>
    %170 = vector.shape_cast %169 : vector<8xf32> to vector<8x1xf32>
    %171 = tpu.reciprocal %170 {approx = true} : vector<8x1xf32> -> vector<8x1xf32>
    %172 = arith.mulf %170, %171 : vector<8x1xf32>
    %cst_79 = arith.constant 2.000000e+00 : f32
    %173 = vector.broadcast %cst_79 : f32 to vector<8x1xf32>
    %174 = arith.subf %173, %172 : vector<8x1xf32>
    %175 = arith.mulf %171, %174 : vector<8x1xf32>
    %176 = vector.broadcast %175 : vector<8x1xf32> to vector<8x8xf32>
    %177 = arith.mulf %168, %176 : vector<8x8xf32>
    %cst_80 = arith.constant dense<0.000000e+00> : vector<8x8xf32>
    %178 = tpu.matmul %177, %162, %cst_80 {dimension_numbers = #tpu.dot_dimension_numbers<[1], [0], [0], [1], [0, 0, 1, 1], [], []>} : vector<8x8xf32>, vector<8x8xf32>, vector<8x8xf32> -> vector<8x8xf32>
    %179 = vector.extract_strided_slice %8 {offsets = [8, 0], sizes = [8, 32], strides = [1, 1]} : vector<32x32xf32> to vector<8x32xf32>
    %cst_81 = arith.constant dense<0.000000e+00> : vector<8x32xf32>
    %180 = tpu.matmul %178, %179, %cst_81 {dimension_numbers = #tpu.dot_dimension_numbers<[1], [0], [0], [1], [0, 0, 1, 1], [], []>} : vector<8x8xf32>, vector<8x32xf32>, vector<8x32xf32> -> vector<8x32xf32>
    %181 = arith.addf %157, %180 : vector<8x32xf32>
    %182 = vector.extract_strided_slice %130 {offsets = [0, 16], sizes = [8, 8], strides = [1, 1]} : vector<8x32xf32> to vector<8x8xf32>
    %cst_82 = arith.constant 0.353553385 : f32
    %183 = vector.broadcast %cst_82 : f32 to vector<8x8xf32>
    %184 = arith.mulf %182, %183 : vector<8x8xf32>
    %185 = vector.extract_strided_slice %131 {offsets = [0, 16], sizes = [8, 8], strides = [1, 1]} : vector<8x32xf32> to vector<8x8xf32>
    %186 = vector.extract_strided_slice %132 {offsets = [0, 16], sizes = [8, 8], strides = [1, 1]} : vector<8x32xf32> to vector<8x8xf32>
    %cst_83 = arith.constant dense<0.000000e+00> : vector<8x8xf32>
    %187 = tpu.matmul %184, %185, %cst_83 {dimension_numbers = #tpu.dot_dimension_numbers<[1], [1], [0], [0], [0, 0, 1, 0], [], []>} : vector<8x8xf32>, vector<8x8xf32>, vector<8x8xf32> -> vector<8x8xf32>
    %cst_84 = arith.constant dense<0xFF800000> : vector<8xf32>
    %188 = vector.multi_reduction <maximumf>, %187, %cst_84 [1] : vector<8x8xf32> to vector<8xf32>
    %189 = vector.shape_cast %188 : vector<8xf32> to vector<8x1xf32>
    %190 = vector.broadcast %189 : vector<8x1xf32> to vector<8x8xf32>
    %191 = arith.subf %187, %190 : vector<8x8xf32>
    %192 = math.exp %191 : vector<8x8xf32>
    %cst_85 = arith.constant dense<0.000000e+00> : vector<8xf32>
    %193 = vector.multi_reduction <add>, %192, %cst_85 [1] : vector<8x8xf32> to vector<8xf32>
    %194 = vector.shape_cast %193 : vector<8xf32> to vector<8x1xf32>
    %195 = tpu.reciprocal %194 {approx = true} : vector<8x1xf32> -> vector<8x1xf32>
    %196 = arith.mulf %194, %195 : vector<8x1xf32>
    %cst_86 = arith.constant 2.000000e+00 : f32
    %197 = vector.broadcast %cst_86 : f32 to vector<8x1xf32>
    %198 = arith.subf %197, %196 : vector<8x1xf32>
    %199 = arith.mulf %195, %198 : vector<8x1xf32>
    %200 = vector.broadcast %199 : vector<8x1xf32> to vector<8x8xf32>
    %201 = arith.mulf %192, %200 : vector<8x8xf32>
    %cst_87 = arith.constant dense<0.000000e+00> : vector<8x8xf32>
    %202 = tpu.matmul %201, %186, %cst_87 {dimension_numbers = #tpu.dot_dimension_numbers<[1], [0], [0], [1], [0, 0, 1, 1], [], []>} : vector<8x8xf32>, vector<8x8xf32>, vector<8x8xf32> -> vector<8x8xf32>
    %203 = vector.extract_strided_slice %8 {offsets = [16, 0], sizes = [8, 32], strides = [1, 1]} : vector<32x32xf32> to vector<8x32xf32>
    %cst_88 = arith.constant dense<0.000000e+00> : vector<8x32xf32>
    %204 = tpu.matmul %202, %203, %cst_88 {dimension_numbers = #tpu.dot_dimension_numbers<[1], [0], [0], [1], [0, 0, 1, 1], [], []>} : vector<8x8xf32>, vector<8x32xf32>, vector<8x32xf32> -> vector<8x32xf32>
    %205 = arith.addf %181, %204 : vector<8x32xf32>
    %206 = vector.extract_strided_slice %130 {offsets = [0, 24], sizes = [8, 8], strides = [1, 1]} : vector<8x32xf32> to vector<8x8xf32>
    %cst_89 = arith.constant 0.353553385 : f32
    %207 = vector.broadcast %cst_89 : f32 to vector<8x8xf32>
    %208 = arith.mulf %206, %207 : vector<8x8xf32>
    %209 = vector.extract_strided_slice %131 {offsets = [0, 24], sizes = [8, 8], strides = [1, 1]} : vector<8x32xf32> to vector<8x8xf32>
    %210 = vector.extract_strided_slice %132 {offsets = [0, 24], sizes = [8, 8], strides = [1, 1]} : vector<8x32xf32> to vector<8x8xf32>
    %cst_90 = arith.constant dense<0.000000e+00> : vector<8x8xf32>
    %211 = tpu.matmul %208, %209, %cst_90 {dimension_numbers = #tpu.dot_dimension_numbers<[1], [1], [0], [0], [0, 0, 1, 0], [], []>} : vector<8x8xf32>, vector<8x8xf32>, vector<8x8xf32> -> vector<8x8xf32>
    %cst_91 = arith.constant dense<0xFF800000> : vector<8xf32>
    %212 = vector.multi_reduction <maximumf>, %211, %cst_91 [1] : vector<8x8xf32> to vector<8xf32>
    %213 = vector.shape_cast %212 : vector<8xf32> to vector<8x1xf32>
    %214 = vector.broadcast %213 : vector<8x1xf32> to vector<8x8xf32>
    %215 = arith.subf %211, %214 : vector<8x8xf32>
    %216 = math.exp %215 : vector<8x8xf32>
    %cst_92 = arith.constant dense<0.000000e+00> : vector<8xf32>
    %217 = vector.multi_reduction <add>, %216, %cst_92 [1] : vector<8x8xf32> to vector<8xf32>
    %218 = vector.shape_cast %217 : vector<8xf32> to vector<8x1xf32>
    %219 = tpu.reciprocal %218 {approx = true} : vector<8x1xf32> -> vector<8x1xf32>
    %220 = arith.mulf %218, %219 : vector<8x1xf32>
    %cst_93 = arith.constant 2.000000e+00 : f32
    %221 = vector.broadcast %cst_93 : f32 to vector<8x1xf32>
    %222 = arith.subf %221, %220 : vector<8x1xf32>
    %223 = arith.mulf %219, %222 : vector<8x1xf32>
    %224 = vector.broadcast %223 : vector<8x1xf32> to vector<8x8xf32>
    %225 = arith.mulf %216, %224 : vector<8x8xf32>
    %cst_94 = arith.constant dense<0.000000e+00> : vector<8x8xf32>
    %226 = tpu.matmul %225, %210, %cst_94 {dimension_numbers = #tpu.dot_dimension_numbers<[1], [0], [0], [1], [0, 0, 1, 1], [], []>} : vector<8x8xf32>, vector<8x8xf32>, vector<8x8xf32> -> vector<8x8xf32>
    %227 = vector.extract_strided_slice %8 {offsets = [24, 0], sizes = [8, 32], strides = [1, 1]} : vector<32x32xf32> to vector<8x32xf32>
    %cst_95 = arith.constant dense<0.000000e+00> : vector<8x32xf32>
    %228 = tpu.matmul %226, %227, %cst_95 {dimension_numbers = #tpu.dot_dimension_numbers<[1], [0], [0], [1], [0, 0, 1, 1], [], []>} : vector<8x8xf32>, vector<8x32xf32>, vector<8x32xf32> -> vector<8x32xf32>
    %229 = arith.addf %205, %228 : vector<8x32xf32>
    %230 = tpu.concatenate %129, %229 in 0 : vector<8x32xf32>, vector<8x32xf32> -> vector<16x32xf32>
    %231 = vector.broadcast %10 : vector<1x32xf32> to vector<16x32xf32>
    %232 = arith.addf %230, %231 : vector<16x32xf32>
    %233 = arith.addf %2, %232 : vector<16x32xf32>
    %cst_96 = arith.constant dense<0.000000e+00> : vector<16xf32>
    %234 = vector.multi_reduction <add>, %233, %cst_96 [1] : vector<16x32xf32> to vector<16xf32>
    %235 = vector.shape_cast %234 : vector<16xf32> to vector<16x1xf32>
    %cst_97 = arith.constant 3.200000e+01 : f32
    %236 = vector.broadcast %cst_97 : f32 to vector<16x1xf32>
    %237 = arith.divf %235, %236 : vector<16x1xf32>
    %238 = vector.broadcast %237 : vector<16x1xf32> to vector<16x32xf32>
    %239 = arith.subf %233, %238 : vector<16x32xf32>
    %240 = arith.mulf %239, %239 : vector<16x32xf32>
    %cst_98 = arith.constant dense<0.000000e+00> : vector<16xf32>
    %241 = vector.multi_reduction <add>, %240, %cst_98 [1] : vector<16x32xf32> to vector<16xf32>
    %242 = vector.shape_cast %241 : vector<16xf32> to vector<16x1xf32>
    %cst_99 = arith.constant 3.200000e+01 : f32
    %243 = vector.broadcast %cst_99 : f32 to vector<16x1xf32>
    %244 = arith.divf %242, %243 : vector<16x1xf32>
    %245 = vector.broadcast %237 : vector<16x1xf32> to vector<16x32xf32>
    %246 = arith.subf %233, %245 : vector<16x32xf32>
    %cst_100 = arith.constant 9.99999974E-6 : f32
    %247 = vector.broadcast %cst_100 : f32 to vector<16x1xf32>
    %248 = arith.addf %244, %247 : vector<16x1xf32>
    %249 = math.rsqrt %248 : vector<16x1xf32>
    %250 = vector.broadcast %249 : vector<16x1xf32> to vector<16x32xf32>
    %251 = arith.mulf %246, %250 : vector<16x32xf32>
    %252 = vector.broadcast %12 : vector<1x32xf32> to vector<16x32xf32>
    %253 = arith.mulf %251, %252 : vector<16x32xf32>
    %254 = vector.broadcast %14 : vector<1x32xf32> to vector<16x32xf32>
    %255 = arith.addf %253, %254 : vector<16x32xf32>
    %cst_101 = arith.constant dense<0.000000e+00> : vector<16x64xf32>
    %256 = tpu.matmul %255, %16, %cst_101 {dimension_numbers = #tpu.dot_dimension_numbers<[1], [0], [0], [1], [0, 0, 1, 1], [], []>} : vector<16x32xf32>, vector<32x64xf32>, vector<16x64xf32> -> vector<16x64xf32>
    %257 = vector.broadcast %18 : vector<1x64xf32> to vector<16x64xf32>
    %258 = arith.addf %256, %257 : vector<16x64xf32>
    %cst_102 = arith.constant 0.000000e+00 : f32
    %259 = vector.broadcast %cst_102 : f32 to vector<16x64xf32>
    %260 = arith.maximumf %258, %259 : vector<16x64xf32>
    %cst_103 = arith.constant dense<0.000000e+00> : vector<16x32xf32>
    %261 = tpu.matmul %260, %20, %cst_103 {dimension_numbers = #tpu.dot_dimension_numbers<[1], [0], [0], [1], [0, 0, 1, 1], [], []>} : vector<16x64xf32>, vector<64x32xf32>, vector<16x32xf32> -> vector<16x32xf32>
    %262 = vector.broadcast %22 : vector<1x32xf32> to vector<16x32xf32>
    %263 = arith.addf %261, %262 : vector<16x32xf32>
    %264 = arith.addf %255, %263 : vector<16x32xf32>
    %cst_104 = arith.constant dense<0.000000e+00> : vector<16xf32>
    %265 = vector.multi_reduction <add>, %264, %cst_104 [1] : vector<16x32xf32> to vector<16xf32>
    %266 = vector.shape_cast %265 : vector<16xf32> to vector<16x1xf32>
    %cst_105 = arith.constant 3.200000e+01 : f32
    %267 = vector.broadcast %cst_105 : f32 to vector<16x1xf32>
    %268 = arith.divf %266, %267 : vector<16x1xf32>
    %269 = vector.broadcast %268 : vector<16x1xf32> to vector<16x32xf32>
    %270 = arith.subf %264, %269 : vector<16x32xf32>
    %271 = arith.mulf %270, %270 : vector<16x32xf32>
    %cst_106 = arith.constant dense<0.000000e+00> : vector<16xf32>
    %272 = vector.multi_reduction <add>, %271, %cst_106 [1] : vector<16x32xf32> to vector<16xf32>
    %273 = vector.shape_cast %272 : vector<16xf32> to vector<16x1xf32>
    %cst_107 = arith.constant 3.200000e+01 : f32
    %274 = vector.broadcast %cst_107 : f32 to vector<16x1xf32>
    %275 = arith.divf %273, %274 : vector<16x1xf32>
    %276 = vector.broadcast %268 : vector<16x1xf32> to vector<16x32xf32>
    %277 = arith.subf %264, %276 : vector<16x32xf32>
    %cst_108 = arith.constant 9.99999974E-6 : f32
    %278 = vector.broadcast %cst_108 : f32 to vector<16x1xf32>
    %279 = arith.addf %275, %278 : vector<16x1xf32>
    %280 = math.rsqrt %279 : vector<16x1xf32>
    %281 = vector.broadcast %280 : vector<16x1xf32> to vector<16x32xf32>
    %282 = arith.mulf %277, %281 : vector<16x32xf32>
    %283 = vector.broadcast %24 : vector<1x32xf32> to vector<16x32xf32>
    %284 = arith.mulf %282, %283 : vector<16x32xf32>
    %285 = vector.broadcast %26 : vector<1x32xf32> to vector<16x32xf32>
    %286 = arith.addf %284, %285 : vector<16x32xf32>
    %c1 = arith.constant 1 : index
    %c0_109 = arith.constant 0 : index
    %c0_110 = arith.constant 0 : index
    %287 = vector.load %arg2[%c1, %c0_109, %c0_110] : memref<2x32x96xf32, #tpu.memory_space<vmem>>, vector<1x32x96xf32>
    %288 = vector.shape_cast %287 : vector<1x32x96xf32> to vector<32x96xf32>
    %c1_111 = arith.constant 1 : index
    %c0_112 = arith.constant 0 : index
    %c0_113 = arith.constant 0 : index
    %289 = vector.load %arg3[%c1_111, %c0_112, %c0_113] : memref<2x1x96xf32, #tpu.memory_space<vmem>>, vector<1x1x96xf32>
    %290 = vector.shape_cast %289 : vector<1x1x96xf32> to vector<1x96xf32>
    %c1_114 = arith.constant 1 : index
    %c0_115 = arith.constant 0 : index
    %c0_116 = arith.constant 0 : index
    %291 = vector.load %arg4[%c1_114, %c0_115, %c0_116] : memref<2x32x32xf32, #tpu.memory_space<vmem>>, vector<1x32x32xf32>
    %292 = vector.shape_cast %291 : vector<1x32x32xf32> to vector<32x32xf32>
    %c1_117 = arith.constant 1 : index
    %c0_118 = arith.constant 0 : index
    %c0_119 = arith.constant 0 : index
    %293 = vector.load %arg5[%c1_117, %c0_118, %c0_119] : memref<2x1x32xf32, #tpu.memory_space<vmem>>, vector<1x1x32xf32>
    %294 = vector.shape_cast %293 : vector<1x1x32xf32> to vector<1x32xf32>
    %c1_120 = arith.constant 1 : index
    %c0_121 = arith.constant 0 : index
    %c0_122 = arith.constant 0 : index
    %295 = vector.load %arg6[%c1_120, %c0_121, %c0_122] : memref<2x1x32xf32, #tpu.memory_space<vmem>>, vector<1x1x32xf32>
    %296 = vector.shape_cast %295 : vector<1x1x32xf32> to vector<1x32xf32>
    %c1_123 = arith.constant 1 : index
    %c0_124 = arith.constant 0 : index
    %c0_125 = arith.constant 0 : index
    %297 = vector.load %arg7[%c1_123, %c0_124, %c0_125] : memref<2x1x32xf32, #tpu.memory_space<vmem>>, vector<1x1x32xf32>
    %298 = vector.shape_cast %297 : vector<1x1x32xf32> to vector<1x32xf32>
    %c1_126 = arith.constant 1 : index
    %c0_127 = arith.constant 0 : index
    %c0_128 = arith.constant 0 : index
    %299 = vector.load %arg8[%c1_126, %c0_127, %c0_128] : memref<2x32x64xf32, #tpu.memory_space<vmem>>, vector<1x32x64xf32>
    %300 = vector.shape_cast %299 : vector<1x32x64xf32> to vector<32x64xf32>
    %c1_129 = arith.constant 1 : index
    %c0_130 = arith.constant 0 : index
    %c0_131 = arith.constant 0 : index
    %301 = vector.load %arg9[%c1_129, %c0_130, %c0_131] : memref<2x1x64xf32, #tpu.memory_space<vmem>>, vector<1x1x64xf32>
    %302 = vector.shape_cast %301 : vector<1x1x64xf32> to vector<1x64xf32>
    %c1_132 = arith.constant 1 : index
    %c0_133 = arith.constant 0 : index
    %c0_134 = arith.constant 0 : index
    %303 = vector.load %arg10[%c1_132, %c0_133, %c0_134] : memref<2x64x32xf32, #tpu.memory_space<vmem>>, vector<1x64x32xf32>
    %304 = vector.shape_cast %303 : vector<1x64x32xf32> to vector<64x32xf32>
    %c1_135 = arith.constant 1 : index
    %c0_136 = arith.constant 0 : index
    %c0_137 = arith.constant 0 : index
    %305 = vector.load %arg11[%c1_135, %c0_136, %c0_137] : memref<2x1x32xf32, #tpu.memory_space<vmem>>, vector<1x1x32xf32>
    %306 = vector.shape_cast %305 : vector<1x1x32xf32> to vector<1x32xf32>
    %c1_138 = arith.constant 1 : index
    %c0_139 = arith.constant 0 : index
    %c0_140 = arith.constant 0 : index
    %307 = vector.load %arg12[%c1_138, %c0_139, %c0_140] : memref<2x1x32xf32, #tpu.memory_space<vmem>>, vector<1x1x32xf32>
    %308 = vector.shape_cast %307 : vector<1x1x32xf32> to vector<1x32xf32>
    %c1_141 = arith.constant 1 : index
    %c0_142 = arith.constant 0 : index
    %c0_143 = arith.constant 0 : index
    %309 = vector.load %arg13[%c1_141, %c0_142, %c0_143] : memref<2x1x32xf32, #tpu.memory_space<vmem>>, vector<1x1x32xf32>
    %310 = vector.shape_cast %309 : vector<1x1x32xf32> to vector<1x32xf32>
    %cst_144 = arith.constant dense<0.000000e+00> : vector<16x96xf32>
    %311 = tpu.matmul %286, %288, %cst_144 {dimension_numbers = #tpu.dot_dimension_numbers<[1], [0], [0], [1], [0, 0, 1, 1], [], []>} : vector<16x32xf32>, vector<32x96xf32>, vector<16x96xf32> -> vector<16x96xf32>
    %312 = vector.broadcast %290 : vector<1x96xf32> to vector<16x96xf32>
    %313 = arith.addf %311, %312 : vector<16x96xf32>
    %314 = vector.extract_strided_slice %313 {offsets = [0, 0], sizes = [8, 32], strides = [1, 1]} : vector<16x96xf32> to vector<8x32xf32>
    %315 = vector.extract_strided_slice %313 {offsets = [0, 32], sizes = [8, 32], strides = [1, 1]} : vector<16x96xf32> to vector<8x32xf32>
    %316 = vector.extract_strided_slice %313 {offsets = [0, 64], sizes = [8, 32], strides = [1, 1]} : vector<16x96xf32> to vector<8x32xf32>
    %cst_145 = arith.constant 0.000000e+00 : f32
    %317 = vector.broadcast %cst_145 : f32 to vector<8x32xf32>
    %318 = vector.extract_strided_slice %314 {offsets = [0, 0], sizes = [8, 8], strides = [1, 1]} : vector<8x32xf32> to vector<8x8xf32>
    %cst_146 = arith.constant 0.353553385 : f32
    %319 = vector.broadcast %cst_146 : f32 to vector<8x8xf32>
    %320 = arith.mulf %318, %319 : vector<8x8xf32>
    %321 = vector.extract_strided_slice %315 {offsets = [0, 0], sizes = [8, 8], strides = [1, 1]} : vector<8x32xf32> to vector<8x8xf32>
    %322 = vector.extract_strided_slice %316 {offsets = [0, 0], sizes = [8, 8], strides = [1, 1]} : vector<8x32xf32> to vector<8x8xf32>
    %cst_147 = arith.constant dense<0.000000e+00> : vector<8x8xf32>
    %323 = tpu.matmul %320, %321, %cst_147 {dimension_numbers = #tpu.dot_dimension_numbers<[1], [1], [0], [0], [0, 0, 1, 0], [], []>} : vector<8x8xf32>, vector<8x8xf32>, vector<8x8xf32> -> vector<8x8xf32>
    %cst_148 = arith.constant dense<0xFF800000> : vector<8xf32>
    %324 = vector.multi_reduction <maximumf>, %323, %cst_148 [1] : vector<8x8xf32> to vector<8xf32>
    %325 = vector.shape_cast %324 : vector<8xf32> to vector<8x1xf32>
    %326 = vector.broadcast %325 : vector<8x1xf32> to vector<8x8xf32>
    %327 = arith.subf %323, %326 : vector<8x8xf32>
    %328 = math.exp %327 : vector<8x8xf32>
    %cst_149 = arith.constant dense<0.000000e+00> : vector<8xf32>
    %329 = vector.multi_reduction <add>, %328, %cst_149 [1] : vector<8x8xf32> to vector<8xf32>
    %330 = vector.shape_cast %329 : vector<8xf32> to vector<8x1xf32>
    %331 = tpu.reciprocal %330 {approx = true} : vector<8x1xf32> -> vector<8x1xf32>
    %332 = arith.mulf %330, %331 : vector<8x1xf32>
    %cst_150 = arith.constant 2.000000e+00 : f32
    %333 = vector.broadcast %cst_150 : f32 to vector<8x1xf32>
    %334 = arith.subf %333, %332 : vector<8x1xf32>
    %335 = arith.mulf %331, %334 : vector<8x1xf32>
    %336 = vector.broadcast %335 : vector<8x1xf32> to vector<8x8xf32>
    %337 = arith.mulf %328, %336 : vector<8x8xf32>
    %cst_151 = arith.constant dense<0.000000e+00> : vector<8x8xf32>
    %338 = tpu.matmul %337, %322, %cst_151 {dimension_numbers = #tpu.dot_dimension_numbers<[1], [0], [0], [1], [0, 0, 1, 1], [], []>} : vector<8x8xf32>, vector<8x8xf32>, vector<8x8xf32> -> vector<8x8xf32>
    %339 = vector.extract_strided_slice %292 {offsets = [0, 0], sizes = [8, 32], strides = [1, 1]} : vector<32x32xf32> to vector<8x32xf32>
    %cst_152 = arith.constant dense<0.000000e+00> : vector<8x32xf32>
    %340 = tpu.matmul %338, %339, %cst_152 {dimension_numbers = #tpu.dot_dimension_numbers<[1], [0], [0], [1], [0, 0, 1, 1], [], []>} : vector<8x8xf32>, vector<8x32xf32>, vector<8x32xf32> -> vector<8x32xf32>
    %341 = arith.addf %317, %340 : vector<8x32xf32>
    %342 = vector.extract_strided_slice %314 {offsets = [0, 8], sizes = [8, 8], strides = [1, 1]} : vector<8x32xf32> to vector<8x8xf32>
    %cst_153 = arith.constant 0.353553385 : f32
    %343 = vector.broadcast %cst_153 : f32 to vector<8x8xf32>
    %344 = arith.mulf %342, %343 : vector<8x8xf32>
    %345 = vector.extract_strided_slice %315 {offsets = [0, 8], sizes = [8, 8], strides = [1, 1]} : vector<8x32xf32> to vector<8x8xf32>
    %346 = vector.extract_strided_slice %316 {offsets = [0, 8], sizes = [8, 8], strides = [1, 1]} : vector<8x32xf32> to vector<8x8xf32>
    %cst_154 = arith.constant dense<0.000000e+00> : vector<8x8xf32>
    %347 = tpu.matmul %344, %345, %cst_154 {dimension_numbers = #tpu.dot_dimension_numbers<[1], [1], [0], [0], [0, 0, 1, 0], [], []>} : vector<8x8xf32>, vector<8x8xf32>, vector<8x8xf32> -> vector<8x8xf32>
    %cst_155 = arith.constant dense<0xFF800000> : vector<8xf32>
    %348 = vector.multi_reduction <maximumf>, %347, %cst_155 [1] : vector<8x8xf32> to vector<8xf32>
    %349 = vector.shape_cast %348 : vector<8xf32> to vector<8x1xf32>
    %350 = vector.broadcast %349 : vector<8x1xf32> to vector<8x8xf32>
    %351 = arith.subf %347, %350 : vector<8x8xf32>
    %352 = math.exp %351 : vector<8x8xf32>
    %cst_156 = arith.constant dense<0.000000e+00> : vector<8xf32>
    %353 = vector.multi_reduction <add>, %352, %cst_156 [1] : vector<8x8xf32> to vector<8xf32>
    %354 = vector.shape_cast %353 : vector<8xf32> to vector<8x1xf32>
    %355 = tpu.reciprocal %354 {approx = true} : vector<8x1xf32> -> vector<8x1xf32>
    %356 = arith.mulf %354, %355 : vector<8x1xf32>
    %cst_157 = arith.constant 2.000000e+00 : f32
    %357 = vector.broadcast %cst_157 : f32 to vector<8x1xf32>
    %358 = arith.subf %357, %356 : vector<8x1xf32>
    %359 = arith.mulf %355, %358 : vector<8x1xf32>
    %360 = vector.broadcast %359 : vector<8x1xf32> to vector<8x8xf32>
    %361 = arith.mulf %352, %360 : vector<8x8xf32>
    %cst_158 = arith.constant dense<0.000000e+00> : vector<8x8xf32>
    %362 = tpu.matmul %361, %346, %cst_158 {dimension_numbers = #tpu.dot_dimension_numbers<[1], [0], [0], [1], [0, 0, 1, 1], [], []>} : vector<8x8xf32>, vector<8x8xf32>, vector<8x8xf32> -> vector<8x8xf32>
    %363 = vector.extract_strided_slice %292 {offsets = [8, 0], sizes = [8, 32], strides = [1, 1]} : vector<32x32xf32> to vector<8x32xf32>
    %cst_159 = arith.constant dense<0.000000e+00> : vector<8x32xf32>
    %364 = tpu.matmul %362, %363, %cst_159 {dimension_numbers = #tpu.dot_dimension_numbers<[1], [0], [0], [1], [0, 0, 1, 1], [], []>} : vector<8x8xf32>, vector<8x32xf32>, vector<8x32xf32> -> vector<8x32xf32>
    %365 = arith.addf %341, %364 : vector<8x32xf32>
    %366 = vector.extract_strided_slice %314 {offsets = [0, 16], sizes = [8, 8], strides = [1, 1]} : vector<8x32xf32> to vector<8x8xf32>
    %cst_160 = arith.constant 0.353553385 : f32
    %367 = vector.broadcast %cst_160 : f32 to vector<8x8xf32>
    %368 = arith.mulf %366, %367 : vector<8x8xf32>
    %369 = vector.extract_strided_slice %315 {offsets = [0, 16], sizes = [8, 8], strides = [1, 1]} : vector<8x32xf32> to vector<8x8xf32>
    %370 = vector.extract_strided_slice %316 {offsets = [0, 16], sizes = [8, 8], strides = [1, 1]} : vector<8x32xf32> to vector<8x8xf32>
    %cst_161 = arith.constant dense<0.000000e+00> : vector<8x8xf32>
    %371 = tpu.matmul %368, %369, %cst_161 {dimension_numbers = #tpu.dot_dimension_numbers<[1], [1], [0], [0], [0, 0, 1, 0], [], []>} : vector<8x8xf32>, vector<8x8xf32>, vector<8x8xf32> -> vector<8x8xf32>
    %cst_162 = arith.constant dense<0xFF800000> : vector<8xf32>
    %372 = vector.multi_reduction <maximumf>, %371, %cst_162 [1] : vector<8x8xf32> to vector<8xf32>
    %373 = vector.shape_cast %372 : vector<8xf32> to vector<8x1xf32>
    %374 = vector.broadcast %373 : vector<8x1xf32> to vector<8x8xf32>
    %375 = arith.subf %371, %374 : vector<8x8xf32>
    %376 = math.exp %375 : vector<8x8xf32>
    %cst_163 = arith.constant dense<0.000000e+00> : vector<8xf32>
    %377 = vector.multi_reduction <add>, %376, %cst_163 [1] : vector<8x8xf32> to vector<8xf32>
    %378 = vector.shape_cast %377 : vector<8xf32> to vector<8x1xf32>
    %379 = tpu.reciprocal %378 {approx = true} : vector<8x1xf32> -> vector<8x1xf32>
    %380 = arith.mulf %378, %379 : vector<8x1xf32>
    %cst_164 = arith.constant 2.000000e+00 : f32
    %381 = vector.broadcast %cst_164 : f32 to vector<8x1xf32>
    %382 = arith.subf %381, %380 : vector<8x1xf32>
    %383 = arith.mulf %379, %382 : vector<8x1xf32>
    %384 = vector.broadcast %383 : vector<8x1xf32> to vector<8x8xf32>
    %385 = arith.mulf %376, %384 : vector<8x8xf32>
    %cst_165 = arith.constant dense<0.000000e+00> : vector<8x8xf32>
    %386 = tpu.matmul %385, %370, %cst_165 {dimension_numbers = #tpu.dot_dimension_numbers<[1], [0], [0], [1], [0, 0, 1, 1], [], []>} : vector<8x8xf32>, vector<8x8xf32>, vector<8x8xf32> -> vector<8x8xf32>
    %387 = vector.extract_strided_slice %292 {offsets = [16, 0], sizes = [8, 32], strides = [1, 1]} : vector<32x32xf32> to vector<8x32xf32>
    %cst_166 = arith.constant dense<0.000000e+00> : vector<8x32xf32>
    %388 = tpu.matmul %386, %387, %cst_166 {dimension_numbers = #tpu.dot_dimension_numbers<[1], [0], [0], [1], [0, 0, 1, 1], [], []>} : vector<8x8xf32>, vector<8x32xf32>, vector<8x32xf32> -> vector<8x32xf32>
    %389 = arith.addf %365, %388 : vector<8x32xf32>
    %390 = vector.extract_strided_slice %314 {offsets = [0, 24], sizes = [8, 8], strides = [1, 1]} : vector<8x32xf32> to vector<8x8xf32>
    %cst_167 = arith.constant 0.353553385 : f32
    %391 = vector.broadcast %cst_167 : f32 to vector<8x8xf32>
    %392 = arith.mulf %390, %391 : vector<8x8xf32>
    %393 = vector.extract_strided_slice %315 {offsets = [0, 24], sizes = [8, 8], strides = [1, 1]} : vector<8x32xf32> to vector<8x8xf32>
    %394 = vector.extract_strided_slice %316 {offsets = [0, 24], sizes = [8, 8], strides = [1, 1]} : vector<8x32xf32> to vector<8x8xf32>
    %cst_168 = arith.constant dense<0.000000e+00> : vector<8x8xf32>
    %395 = tpu.matmul %392, %393, %cst_168 {dimension_numbers = #tpu.dot_dimension_numbers<[1], [1], [0], [0], [0, 0, 1, 0], [], []>} : vector<8x8xf32>, vector<8x8xf32>, vector<8x8xf32> -> vector<8x8xf32>
    %cst_169 = arith.constant dense<0xFF800000> : vector<8xf32>
    %396 = vector.multi_reduction <maximumf>, %395, %cst_169 [1] : vector<8x8xf32> to vector<8xf32>
    %397 = vector.shape_cast %396 : vector<8xf32> to vector<8x1xf32>
    %398 = vector.broadcast %397 : vector<8x1xf32> to vector<8x8xf32>
    %399 = arith.subf %395, %398 : vector<8x8xf32>
    %400 = math.exp %399 : vector<8x8xf32>
    %cst_170 = arith.constant dense<0.000000e+00> : vector<8xf32>
    %401 = vector.multi_reduction <add>, %400, %cst_170 [1] : vector<8x8xf32> to vector<8xf32>
    %402 = vector.shape_cast %401 : vector<8xf32> to vector<8x1xf32>
    %403 = tpu.reciprocal %402 {approx = true} : vector<8x1xf32> -> vector<8x1xf32>
    %404 = arith.mulf %402, %403 : vector<8x1xf32>
    %cst_171 = arith.constant 2.000000e+00 : f32
    %405 = vector.broadcast %cst_171 : f32 to vector<8x1xf32>
    %406 = arith.subf %405, %404 : vector<8x1xf32>
    %407 = arith.mulf %403, %406 : vector<8x1xf32>
    %408 = vector.broadcast %407 : vector<8x1xf32> to vector<8x8xf32>
    %409 = arith.mulf %400, %408 : vector<8x8xf32>
    %cst_172 = arith.constant dense<0.000000e+00> : vector<8x8xf32>
    %410 = tpu.matmul %409, %394, %cst_172 {dimension_numbers = #tpu.dot_dimension_numbers<[1], [0], [0], [1], [0, 0, 1, 1], [], []>} : vector<8x8xf32>, vector<8x8xf32>, vector<8x8xf32> -> vector<8x8xf32>
    %411 = vector.extract_strided_slice %292 {offsets = [24, 0], sizes = [8, 32], strides = [1, 1]} : vector<32x32xf32> to vector<8x32xf32>
    %cst_173 = arith.constant dense<0.000000e+00> : vector<8x32xf32>
    %412 = tpu.matmul %410, %411, %cst_173 {dimension_numbers = #tpu.dot_dimension_numbers<[1], [0], [0], [1], [0, 0, 1, 1], [], []>} : vector<8x8xf32>, vector<8x32xf32>, vector<8x32xf32> -> vector<8x32xf32>
    %413 = arith.addf %389, %412 : vector<8x32xf32>
    %414 = vector.extract_strided_slice %313 {offsets = [8, 0], sizes = [8, 32], strides = [1, 1]} : vector<16x96xf32> to vector<8x32xf32>
    %415 = vector.extract_strided_slice %313 {offsets = [8, 32], sizes = [8, 32], strides = [1, 1]} : vector<16x96xf32> to vector<8x32xf32>
    %416 = vector.extract_strided_slice %313 {offsets = [8, 64], sizes = [8, 32], strides = [1, 1]} : vector<16x96xf32> to vector<8x32xf32>
    %cst_174 = arith.constant 0.000000e+00 : f32
    %417 = vector.broadcast %cst_174 : f32 to vector<8x32xf32>
    %418 = vector.extract_strided_slice %414 {offsets = [0, 0], sizes = [8, 8], strides = [1, 1]} : vector<8x32xf32> to vector<8x8xf32>
    %cst_175 = arith.constant 0.353553385 : f32
    %419 = vector.broadcast %cst_175 : f32 to vector<8x8xf32>
    %420 = arith.mulf %418, %419 : vector<8x8xf32>
    %421 = vector.extract_strided_slice %415 {offsets = [0, 0], sizes = [8, 8], strides = [1, 1]} : vector<8x32xf32> to vector<8x8xf32>
    %422 = vector.extract_strided_slice %416 {offsets = [0, 0], sizes = [8, 8], strides = [1, 1]} : vector<8x32xf32> to vector<8x8xf32>
    %cst_176 = arith.constant dense<0.000000e+00> : vector<8x8xf32>
    %423 = tpu.matmul %420, %421, %cst_176 {dimension_numbers = #tpu.dot_dimension_numbers<[1], [1], [0], [0], [0, 0, 1, 0], [], []>} : vector<8x8xf32>, vector<8x8xf32>, vector<8x8xf32> -> vector<8x8xf32>
    %cst_177 = arith.constant dense<0xFF800000> : vector<8xf32>
    %424 = vector.multi_reduction <maximumf>, %423, %cst_177 [1] : vector<8x8xf32> to vector<8xf32>
    %425 = vector.shape_cast %424 : vector<8xf32> to vector<8x1xf32>
    %426 = vector.broadcast %425 : vector<8x1xf32> to vector<8x8xf32>
    %427 = arith.subf %423, %426 : vector<8x8xf32>
    %428 = math.exp %427 : vector<8x8xf32>
    %cst_178 = arith.constant dense<0.000000e+00> : vector<8xf32>
    %429 = vector.multi_reduction <add>, %428, %cst_178 [1] : vector<8x8xf32> to vector<8xf32>
    %430 = vector.shape_cast %429 : vector<8xf32> to vector<8x1xf32>
    %431 = tpu.reciprocal %430 {approx = true} : vector<8x1xf32> -> vector<8x1xf32>
    %432 = arith.mulf %430, %431 : vector<8x1xf32>
    %cst_179 = arith.constant 2.000000e+00 : f32
    %433 = vector.broadcast %cst_179 : f32 to vector<8x1xf32>
    %434 = arith.subf %433, %432 : vector<8x1xf32>
    %435 = arith.mulf %431, %434 : vector<8x1xf32>
    %436 = vector.broadcast %435 : vector<8x1xf32> to vector<8x8xf32>
    %437 = arith.mulf %428, %436 : vector<8x8xf32>
    %cst_180 = arith.constant dense<0.000000e+00> : vector<8x8xf32>
    %438 = tpu.matmul %437, %422, %cst_180 {dimension_numbers = #tpu.dot_dimension_numbers<[1], [0], [0], [1], [0, 0, 1, 1], [], []>} : vector<8x8xf32>, vector<8x8xf32>, vector<8x8xf32> -> vector<8x8xf32>
    %439 = vector.extract_strided_slice %292 {offsets = [0, 0], sizes = [8, 32], strides = [1, 1]} : vector<32x32xf32> to vector<8x32xf32>
    %cst_181 = arith.constant dense<0.000000e+00> : vector<8x32xf32>
    %440 = tpu.matmul %438, %439, %cst_181 {dimension_numbers = #tpu.dot_dimension_numbers<[1], [0], [0], [1], [0, 0, 1, 1], [], []>} : vector<8x8xf32>, vector<8x32xf32>, vector<8x32xf32> -> vector<8x32xf32>
    %441 = arith.addf %417, %440 : vector<8x32xf32>
    %442 = vector.extract_strided_slice %414 {offsets = [0, 8], sizes = [8, 8], strides = [1, 1]} : vector<8x32xf32> to vector<8x8xf32>
    %cst_182 = arith.constant 0.353553385 : f32
    %443 = vector.broadcast %cst_182 : f32 to vector<8x8xf32>
    %444 = arith.mulf %442, %443 : vector<8x8xf32>
    %445 = vector.extract_strided_slice %415 {offsets = [0, 8], sizes = [8, 8], strides = [1, 1]} : vector<8x32xf32> to vector<8x8xf32>
    %446 = vector.extract_strided_slice %416 {offsets = [0, 8], sizes = [8, 8], strides = [1, 1]} : vector<8x32xf32> to vector<8x8xf32>
    %cst_183 = arith.constant dense<0.000000e+00> : vector<8x8xf32>
    %447 = tpu.matmul %444, %445, %cst_183 {dimension_numbers = #tpu.dot_dimension_numbers<[1], [1], [0], [0], [0, 0, 1, 0], [], []>} : vector<8x8xf32>, vector<8x8xf32>, vector<8x8xf32> -> vector<8x8xf32>
    %cst_184 = arith.constant dense<0xFF800000> : vector<8xf32>
    %448 = vector.multi_reduction <maximumf>, %447, %cst_184 [1] : vector<8x8xf32> to vector<8xf32>
    %449 = vector.shape_cast %448 : vector<8xf32> to vector<8x1xf32>
    %450 = vector.broadcast %449 : vector<8x1xf32> to vector<8x8xf32>
    %451 = arith.subf %447, %450 : vector<8x8xf32>
    %452 = math.exp %451 : vector<8x8xf32>
    %cst_185 = arith.constant dense<0.000000e+00> : vector<8xf32>
    %453 = vector.multi_reduction <add>, %452, %cst_185 [1] : vector<8x8xf32> to vector<8xf32>
    %454 = vector.shape_cast %453 : vector<8xf32> to vector<8x1xf32>
    %455 = tpu.reciprocal %454 {approx = true} : vector<8x1xf32> -> vector<8x1xf32>
    %456 = arith.mulf %454, %455 : vector<8x1xf32>
    %cst_186 = arith.constant 2.000000e+00 : f32
    %457 = vector.broadcast %cst_186 : f32 to vector<8x1xf32>
    %458 = arith.subf %457, %456 : vector<8x1xf32>
    %459 = arith.mulf %455, %458 : vector<8x1xf32>
    %460 = vector.broadcast %459 : vector<8x1xf32> to vector<8x8xf32>
    %461 = arith.mulf %452, %460 : vector<8x8xf32>
    %cst_187 = arith.constant dense<0.000000e+00> : vector<8x8xf32>
    %462 = tpu.matmul %461, %446, %cst_187 {dimension_numbers = #tpu.dot_dimension_numbers<[1], [0], [0], [1], [0, 0, 1, 1], [], []>} : vector<8x8xf32>, vector<8x8xf32>, vector<8x8xf32> -> vector<8x8xf32>
    %463 = vector.extract_strided_slice %292 {offsets = [8, 0], sizes = [8, 32], strides = [1, 1]} : vector<32x32xf32> to vector<8x32xf32>
    %cst_188 = arith.constant dense<0.000000e+00> : vector<8x32xf32>
    %464 = tpu.matmul %462, %463, %cst_188 {dimension_numbers = #tpu.dot_dimension_numbers<[1], [0], [0], [1], [0, 0, 1, 1], [], []>} : vector<8x8xf32>, vector<8x32xf32>, vector<8x32xf32> -> vector<8x32xf32>
    %465 = arith.addf %441, %464 : vector<8x32xf32>
    %466 = vector.extract_strided_slice %414 {offsets = [0, 16], sizes = [8, 8], strides = [1, 1]} : vector<8x32xf32> to vector<8x8xf32>
    %cst_189 = arith.constant 0.353553385 : f32
    %467 = vector.broadcast %cst_189 : f32 to vector<8x8xf32>
    %468 = arith.mulf %466, %467 : vector<8x8xf32>
    %469 = vector.extract_strided_slice %415 {offsets = [0, 16], sizes = [8, 8], strides = [1, 1]} : vector<8x32xf32> to vector<8x8xf32>
    %470 = vector.extract_strided_slice %416 {offsets = [0, 16], sizes = [8, 8], strides = [1, 1]} : vector<8x32xf32> to vector<8x8xf32>
    %cst_190 = arith.constant dense<0.000000e+00> : vector<8x8xf32>
    %471 = tpu.matmul %468, %469, %cst_190 {dimension_numbers = #tpu.dot_dimension_numbers<[1], [1], [0], [0], [0, 0, 1, 0], [], []>} : vector<8x8xf32>, vector<8x8xf32>, vector<8x8xf32> -> vector<8x8xf32>
    %cst_191 = arith.constant dense<0xFF800000> : vector<8xf32>
    %472 = vector.multi_reduction <maximumf>, %471, %cst_191 [1] : vector<8x8xf32> to vector<8xf32>
    %473 = vector.shape_cast %472 : vector<8xf32> to vector<8x1xf32>
    %474 = vector.broadcast %473 : vector<8x1xf32> to vector<8x8xf32>
    %475 = arith.subf %471, %474 : vector<8x8xf32>
    %476 = math.exp %475 : vector<8x8xf32>
    %cst_192 = arith.constant dense<0.000000e+00> : vector<8xf32>
    %477 = vector.multi_reduction <add>, %476, %cst_192 [1] : vector<8x8xf32> to vector<8xf32>
    %478 = vector.shape_cast %477 : vector<8xf32> to vector<8x1xf32>
    %479 = tpu.reciprocal %478 {approx = true} : vector<8x1xf32> -> vector<8x1xf32>
    %480 = arith.mulf %478, %479 : vector<8x1xf32>
    %cst_193 = arith.constant 2.000000e+00 : f32
    %481 = vector.broadcast %cst_193 : f32 to vector<8x1xf32>
    %482 = arith.subf %481, %480 : vector<8x1xf32>
    %483 = arith.mulf %479, %482 : vector<8x1xf32>
    %484 = vector.broadcast %483 : vector<8x1xf32> to vector<8x8xf32>
    %485 = arith.mulf %476, %484 : vector<8x8xf32>
    %cst_194 = arith.constant dense<0.000000e+00> : vector<8x8xf32>
    %486 = tpu.matmul %485, %470, %cst_194 {dimension_numbers = #tpu.dot_dimension_numbers<[1], [0], [0], [1], [0, 0, 1, 1], [], []>} : vector<8x8xf32>, vector<8x8xf32>, vector<8x8xf32> -> vector<8x8xf32>
    %487 = vector.extract_strided_slice %292 {offsets = [16, 0], sizes = [8, 32], strides = [1, 1]} : vector<32x32xf32> to vector<8x32xf32>
    %cst_195 = arith.constant dense<0.000000e+00> : vector<8x32xf32>
    %488 = tpu.matmul %486, %487, %cst_195 {dimension_numbers = #tpu.dot_dimension_numbers<[1], [0], [0], [1], [0, 0, 1, 1], [], []>} : vector<8x8xf32>, vector<8x32xf32>, vector<8x32xf32> -> vector<8x32xf32>
    %489 = arith.addf %465, %488 : vector<8x32xf32>
    %490 = vector.extract_strided_slice %414 {offsets = [0, 24], sizes = [8, 8], strides = [1, 1]} : vector<8x32xf32> to vector<8x8xf32>
    %cst_196 = arith.constant 0.353553385 : f32
    %491 = vector.broadcast %cst_196 : f32 to vector<8x8xf32>
    %492 = arith.mulf %490, %491 : vector<8x8xf32>
    %493 = vector.extract_strided_slice %415 {offsets = [0, 24], sizes = [8, 8], strides = [1, 1]} : vector<8x32xf32> to vector<8x8xf32>
    %494 = vector.extract_strided_slice %416 {offsets = [0, 24], sizes = [8, 8], strides = [1, 1]} : vector<8x32xf32> to vector<8x8xf32>
    %cst_197 = arith.constant dense<0.000000e+00> : vector<8x8xf32>
    %495 = tpu.matmul %492, %493, %cst_197 {dimension_numbers = #tpu.dot_dimension_numbers<[1], [1], [0], [0], [0, 0, 1, 0], [], []>} : vector<8x8xf32>, vector<8x8xf32>, vector<8x8xf32> -> vector<8x8xf32>
    %cst_198 = arith.constant dense<0xFF800000> : vector<8xf32>
    %496 = vector.multi_reduction <maximumf>, %495, %cst_198 [1] : vector<8x8xf32> to vector<8xf32>
    %497 = vector.shape_cast %496 : vector<8xf32> to vector<8x1xf32>
    %498 = vector.broadcast %497 : vector<8x1xf32> to vector<8x8xf32>
    %499 = arith.subf %495, %498 : vector<8x8xf32>
    %500 = math.exp %499 : vector<8x8xf32>
    %cst_199 = arith.constant dense<0.000000e+00> : vector<8xf32>
    %501 = vector.multi_reduction <add>, %500, %cst_199 [1] : vector<8x8xf32> to vector<8xf32>
    %502 = vector.shape_cast %501 : vector<8xf32> to vector<8x1xf32>
    %503 = tpu.reciprocal %502 {approx = true} : vector<8x1xf32> -> vector<8x1xf32>
    %504 = arith.mulf %502, %503 : vector<8x1xf32>
    %cst_200 = arith.constant 2.000000e+00 : f32
    %505 = vector.broadcast %cst_200 : f32 to vector<8x1xf32>
    %506 = arith.subf %505, %504 : vector<8x1xf32>
    %507 = arith.mulf %503, %506 : vector<8x1xf32>
    %508 = vector.broadcast %507 : vector<8x1xf32> to vector<8x8xf32>
    %509 = arith.mulf %500, %508 : vector<8x8xf32>
    %cst_201 = arith.constant dense<0.000000e+00> : vector<8x8xf32>
    %510 = tpu.matmul %509, %494, %cst_201 {dimension_numbers = #tpu.dot_dimension_numbers<[1], [0], [0], [1], [0, 0, 1, 1], [], []>} : vector<8x8xf32>, vector<8x8xf32>, vector<8x8xf32> -> vector<8x8xf32>
    %511 = vector.extract_strided_slice %292 {offsets = [24, 0], sizes = [8, 32], strides = [1, 1]} : vector<32x32xf32> to vector<8x32xf32>
    %cst_202 = arith.constant dense<0.000000e+00> : vector<8x32xf32>
    %512 = tpu.matmul %510, %511, %cst_202 {dimension_numbers = #tpu.dot_dimension_numbers<[1], [0], [0], [1], [0, 0, 1, 1], [], []>} : vector<8x8xf32>, vector<8x32xf32>, vector<8x32xf32> -> vector<8x32xf32>
    %513 = arith.addf %489, %512 : vector<8x32xf32>
    %514 = tpu.concatenate %413, %513 in 0 : vector<8x32xf32>, vector<8x32xf32> -> vector<16x32xf32>
    %515 = vector.broadcast %294 : vector<1x32xf32> to vector<16x32xf32>
    %516 = arith.addf %514, %515 : vector<16x32xf32>
    %517 = arith.addf %286, %516 : vector<16x32xf32>
    %cst_203 = arith.constant dense<0.000000e+00> : vector<16xf32>
    %518 = vector.multi_reduction <add>, %517, %cst_203 [1] : vector<16x32xf32> to vector<16xf32>
    %519 = vector.shape_cast %518 : vector<16xf32> to vector<16x1xf32>
    %cst_204 = arith.constant 3.200000e+01 : f32
    %520 = vector.broadcast %cst_204 : f32 to vector<16x1xf32>
    %521 = arith.divf %519, %520 : vector<16x1xf32>
    %522 = vector.broadcast %521 : vector<16x1xf32> to vector<16x32xf32>
    %523 = arith.subf %517, %522 : vector<16x32xf32>
    %524 = arith.mulf %523, %523 : vector<16x32xf32>
    %cst_205 = arith.constant dense<0.000000e+00> : vector<16xf32>
    %525 = vector.multi_reduction <add>, %524, %cst_205 [1] : vector<16x32xf32> to vector<16xf32>
    %526 = vector.shape_cast %525 : vector<16xf32> to vector<16x1xf32>
    %cst_206 = arith.constant 3.200000e+01 : f32
    %527 = vector.broadcast %cst_206 : f32 to vector<16x1xf32>
    %528 = arith.divf %526, %527 : vector<16x1xf32>
    %529 = vector.broadcast %521 : vector<16x1xf32> to vector<16x32xf32>
    %530 = arith.subf %517, %529 : vector<16x32xf32>
    %cst_207 = arith.constant 9.99999974E-6 : f32
    %531 = vector.broadcast %cst_207 : f32 to vector<16x1xf32>
    %532 = arith.addf %528, %531 : vector<16x1xf32>
    %533 = math.rsqrt %532 : vector<16x1xf32>
    %534 = vector.broadcast %533 : vector<16x1xf32> to vector<16x32xf32>
    %535 = arith.mulf %530, %534 : vector<16x32xf32>
    %536 = vector.broadcast %296 : vector<1x32xf32> to vector<16x32xf32>
    %537 = arith.mulf %535, %536 : vector<16x32xf32>
    %538 = vector.broadcast %298 : vector<1x32xf32> to vector<16x32xf32>
    %539 = arith.addf %537, %538 : vector<16x32xf32>
    %cst_208 = arith.constant dense<0.000000e+00> : vector<16x64xf32>
    %540 = tpu.matmul %539, %300, %cst_208 {dimension_numbers = #tpu.dot_dimension_numbers<[1], [0], [0], [1], [0, 0, 1, 1], [], []>} : vector<16x32xf32>, vector<32x64xf32>, vector<16x64xf32> -> vector<16x64xf32>
    %541 = vector.broadcast %302 : vector<1x64xf32> to vector<16x64xf32>
    %542 = arith.addf %540, %541 : vector<16x64xf32>
    %cst_209 = arith.constant 0.000000e+00 : f32
    %543 = vector.broadcast %cst_209 : f32 to vector<16x64xf32>
    %544 = arith.maximumf %542, %543 : vector<16x64xf32>
    %cst_210 = arith.constant dense<0.000000e+00> : vector<16x32xf32>
    %545 = tpu.matmul %544, %304, %cst_210 {dimension_numbers = #tpu.dot_dimension_numbers<[1], [0], [0], [1], [0, 0, 1, 1], [], []>} : vector<16x64xf32>, vector<64x32xf32>, vector<16x32xf32> -> vector<16x32xf32>
    %546 = vector.broadcast %306 : vector<1x32xf32> to vector<16x32xf32>
    %547 = arith.addf %545, %546 : vector<16x32xf32>
    %548 = arith.addf %539, %547 : vector<16x32xf32>
    %cst_211 = arith.constant dense<0.000000e+00> : vector<16xf32>
    %549 = vector.multi_reduction <add>, %548, %cst_211 [1] : vector<16x32xf32> to vector<16xf32>
    %550 = vector.shape_cast %549 : vector<16xf32> to vector<16x1xf32>
    %cst_212 = arith.constant 3.200000e+01 : f32
    %551 = vector.broadcast %cst_212 : f32 to vector<16x1xf32>
    %552 = arith.divf %550, %551 : vector<16x1xf32>
    %553 = vector.broadcast %552 : vector<16x1xf32> to vector<16x32xf32>
    %554 = arith.subf %548, %553 : vector<16x32xf32>
    %555 = arith.mulf %554, %554 : vector<16x32xf32>
    %cst_213 = arith.constant dense<0.000000e+00> : vector<16xf32>
    %556 = vector.multi_reduction <add>, %555, %cst_213 [1] : vector<16x32xf32> to vector<16xf32>
    %557 = vector.shape_cast %556 : vector<16xf32> to vector<16x1xf32>
    %cst_214 = arith.constant 3.200000e+01 : f32
    %558 = vector.broadcast %cst_214 : f32 to vector<16x1xf32>
    %559 = arith.divf %557, %558 : vector<16x1xf32>
    %560 = vector.broadcast %552 : vector<16x1xf32> to vector<16x32xf32>
    %561 = arith.subf %548, %560 : vector<16x32xf32>
    %cst_215 = arith.constant 9.99999974E-6 : f32
    %562 = vector.broadcast %cst_215 : f32 to vector<16x1xf32>
    %563 = arith.addf %559, %562 : vector<16x1xf32>
    %564 = math.rsqrt %563 : vector<16x1xf32>
    %565 = vector.broadcast %564 : vector<16x1xf32> to vector<16x32xf32>
    %566 = arith.mulf %561, %565 : vector<16x32xf32>
    %567 = vector.broadcast %308 : vector<1x32xf32> to vector<16x32xf32>
    %568 = arith.mulf %566, %567 : vector<16x32xf32>
    %569 = vector.broadcast %310 : vector<1x32xf32> to vector<16x32xf32>
    %570 = arith.addf %568, %569 : vector<16x32xf32>
    %571 = vector.shape_cast %570 : vector<16x32xf32> to vector<2x8x32xf32>
    %572 = tpu.transpose %571, [1, 0, 2] : vector<2x8x32xf32> -> vector<8x2x32xf32>
    %c0_216 = arith.constant 0 : index
    %c0_217 = arith.constant 0 : index
    %c0_218 = arith.constant 0 : index
    %573 = vector.load %arg14[%c0_216, %c0_217, %c0_218] : memref<8x2x32xf32, #tpu.memory_space<vmem>>, vector<8x2x32xf32>
    tpu.vector_store %arg14[%c0_216, %c0_217, %c0_218], %572 {strides = array<i32>} : memref<8x2x32xf32, #tpu.memory_space<vmem>>, vector<8x2x32xf32>,
    return
  }
  func.func @transform_0(%arg0: i32) -> (i32, i32, i32) {
    %c0_i32 = arith.constant 0 : i32
    %c0_i32_0 = arith.constant 0 : i32
    %c0_i32_1 = arith.constant 0 : i32
    %c0_i32_2 = arith.constant 0 : i32
    return %c0_i32, %c0_i32_0, %c0_i32_1 : i32, i32, i32
  }
  func.func @transform_1(%arg0: i32) -> (i32, i32, i32) {
    %c0_i32 = arith.constant 0 : i32
    %c0_i32_0 = arith.constant 0 : i32
    %c0_i32_1 = arith.constant 0 : i32
    %c0_i32_2 = arith.constant 0 : i32
    return %c0_i32, %c0_i32_0, %c0_i32_1 : i32, i32, i32
  }
  func.func @transform_2(%arg0: i32) -> (i32, i32, i32) {
    %c0_i32 = arith.constant 0 : i32
    %c0_i32_0 = arith.constant 0 : i32
    %c0_i32_1 = arith.constant 0 : i32
    %c0_i32_2 = arith.constant 0 : i32
    return %c0_i32, %c0_i32_0, %c0_i32_1 : i32, i32, i32
  }
  func.func @transform_3(%arg0: i32) -> (i32, i32, i32) {
    %c0_i32 = arith.constant 0 : i32
    %c0_i32_0 = arith.constant 0 : i32
    %c0_i32_1 = arith.constant 0 : i32
    %c0_i32_2 = arith.constant 0 : i32
    return %c0_i32, %c0_i32_0, %c0_i32_1 : i32, i32, i32
  }
  func.func @transform_4(%arg0: i32) -> (i32, i32, i32) {
    %c0_i32 = arith.constant 0 : i32
    %c0_i32_0 = arith.constant 0 : i32
    %c0_i32_1 = arith.constant 0 : i32
    %c0_i32_2 = arith.constant 0 : i32
    return %c0_i32, %c0_i32_0, %c0_i32_1 : i32, i32, i32
  }
  func.func @transform_5(%arg0: i32) -> (i32, i32, i32) {
    %c0_i32 = arith.constant 0 : i32
    %c0_i32_0 = arith.constant 0 : i32
    %c0_i32_1 = arith.constant 0 : i32
    %c0_i32_2 = arith.constant 0 : i32
    return %c0_i32, %c0_i32_0, %c0_i32_1 : i32, i32, i32
  }
  func.func @transform_6(%arg0: i32) -> (i32, i32, i32) {
    %c0_i32 = arith.constant 0 : i32
    %c0_i32_0 = arith.constant 0 : i32
    %c0_i32_1 = arith.constant 0 : i32
    %c0_i32_2 = arith.constant 0 : i32
    return %c0_i32, %c0_i32_0, %c0_i32_1 : i32, i32, i32
  }
  func.func @transform_7(%arg0: i32) -> (i32, i32, i32) {
    %c0_i32 = arith.constant 0 : i32
    %c0_i32_0 = arith.constant 0 : i32
    %c0_i32_1 = arith.constant 0 : i32
    %c0_i32_2 = arith.constant 0 : i32
    return %c0_i32, %c0_i32_0, %c0_i32_1 : i32, i32, i32
  }
  func.func @transform_8(%arg0: i32) -> (i32, i32, i32) {
    %c0_i32 = arith.constant 0 : i32
    %c0_i32_0 = arith.constant 0 : i32
    %c0_i32_1 = arith.constant 0 : i32
    %c0_i32_2 = arith.constant 0 : i32
    return %c0_i32, %c0_i32_0, %c0_i32_1 : i32, i32, i32
  }
  func.func @transform_9(%arg0: i32) -> (i32, i32, i32) {
    %c0_i32 = arith.constant 0 : i32
    %c0_i32_0 = arith.constant 0 : i32
    %c0_i32_1 = arith.constant 0 : i32
    %c0_i32_2 = arith.constant 0 : i32
    return %c0_i32, %c0_i32_0, %c0_i32_1 : i32, i32, i32
  }
  func.func @transform_10(%arg0: i32) -> (i32, i32, i32) {
    %c0_i32 = arith.constant 0 : i32
    %c0_i32_0 = arith.constant 0 : i32
    %c0_i32_1 = arith.constant 0 : i32
    %c0_i32_2 = arith.constant 0 : i32
    return %c0_i32, %c0_i32_0, %c0_i32_1 : i32, i32, i32
  }
  func.func @transform_11(%arg0: i32) -> (i32, i32, i32) {
    %c0_i32 = arith.constant 0 : i32
    %c0_i32_0 = arith.constant 0 : i32
    %c0_i32_1 = arith.constant 0 : i32
    %c0_i32_2 = arith.constant 0 : i32
    return %c0_i32, %c0_i32_0, %c0_i32_1 : i32, i32, i32
  }
  func.func @transform_12(%arg0: i32) -> (i32, i32, i32) {
    %c0_i32 = arith.constant 0 : i32
    %c0_i32_0 = arith.constant 0 : i32
    %c0_i32_1 = arith.constant 0 : i32
    %c0_i32_2 = arith.constant 0 : i32
    return %c0_i32, %c0_i32_0, %c0_i32_1 : i32, i32, i32
  }
  func.func @transform_13(%arg0: i32) -> (i32, i32, i32) {
    %c0_i32 = arith.constant 0 : i32
    %c0_i32_0 = arith.constant 0 : i32
    %c0_i32_1 = arith.constant 0 : i32
    %c0_i32_2 = arith.constant 0 : i32
    return %c0_i32, %c0_i32_0, %c0_i32_1 : i32, i32, i32
  }
}

</mosaic_0001>

<llo_original>
// kernel: tpu_custom_call.1
$region0: #{tpu_custom_call.1}
  #allocation0 [shape = 'u32[]', space=smem, size = 0x4, offset = 0x4, fixed_abs, tag = 'smem constant byte address 0x4 - core index']
  #allocation1 [shape = 'u32[72,128]{1,0:T(1,128)}', space=vmem, size = 0x9000, scoped, tag = 'internal scratch']
  %s0 = inlined_call_operand.hbm [shape: f32[8,2,32], index: 0, kind: input, shape index: {}]
  %s1 = inlined_call_operand.vmem [shape: f32[2,32,96], index: 1, kind: input, shape index: {}]
  %s2 = inlined_call_operand.hbm [shape: f32[2,1,96], index: 2, kind: input, shape index: {}]
  %s3 = inlined_call_operand.vmem [shape: f32[2,32,32], index: 3, kind: input, shape index: {}]
  %s4 = inlined_call_operand.vmem [shape: f32[2,1,32], index: 4, kind: input, shape index: {}]
  %s5 = inlined_call_operand.hbm [shape: f32[2,1,32], index: 5, kind: input, shape index: {}]
  %s6 = inlined_call_operand.vmem [shape: f32[2,1,32], index: 6, kind: input, shape index: {}]
  %s7 = inlined_call_operand.vmem [shape: f32[2,32,64], index: 7, kind: input, shape index: {}]
  %s8 = inlined_call_operand.hbm [shape: f32[2,1,64], index: 8, kind: input, shape index: {}]
  %s9 = inlined_call_operand.vmem [shape: f32[2,64,32], index: 9, kind: input, shape index: {}]
  %s10 = inlined_call_operand.vmem [shape: f32[2,1,32], index: 10, kind: input, shape index: {}]
  %s11 = inlined_call_operand.vmem [shape: f32[2,1,32], index: 11, kind: input, shape index: {}]
  %s12 = inlined_call_operand.vmem [shape: f32[2,1,32], index: 12, kind: input, shape index: {}]
  %s13 = inlined_call_operand.hbm [shape: f32[8,2,32], index: 13, kind: output, shape index: {}]
  %s14 = sld [smem:[#allocation0]]
  $region78: #{tpu_custom_call.1} parent=0
    _
  %s16 = ssub.s32 1, %s14
  %s17 = scalar_select 0, %s16, %s14
  $region1: #{tpu_custom_call.1} parent=0
    #allocation2 [shape = 'u8[8192]{0}', space=vmem, size = 0x2000, scoped, tag = 'input window, operand 0, single buffered']
    #allocation3 [shape = 's32[1]{0}', space=sflag, size = 0x4, scoped, tag = 'scoped memory for tpu_custom_call.1']
    #allocation4 [shape = 's32[1]{0}', space=sflag, size = 0x4, scoped, tag = 'scoped memory for tpu_custom_call.1']
    #allocation5 [shape = 'u8[1024]{0}', space=vmem, size = 0x400, scoped, tag = 'input window, operand 2, single buffered']
    #allocation6 [shape = 's32[1]{0}', space=sflag, size = 0x4, scoped, tag = 'scoped memory for tpu_custom_call.1']
    #allocation7 [shape = 'u8[1024]{0}', space=vmem, size = 0x400, scoped, tag = 'input window, operand 5, single buffered']
    #allocation8 [shape = 'u8[1024]{0}', space=vmem, size = 0x400, scoped, tag = 'input window, operand 8, single buffered']
    #allocation9 [shape = 's32[1]{0}', space=sflag, size = 0x4, scoped, tag = 'scoped memory for tpu_custom_call.1']
    #allocation10 [shape = 'u8[8192]{0}', space=vmem, size = 0x2000, scoped, tag = 'output window, operand 0, single buffered']
    %18 = vsyncpa [#allocation3], 0
    %19 = vsyncpa [#allocation6], 0
    %20 = vsyncpa [#allocation9], 0
    %21 = vsyncpa [#allocation4], 0
    // Predicated region
    $region2: #{tpu_custom_call.1} parent=1 // pred_check
      _
    $region3: #{tpu_custom_call.1} parent=1 // pred_check_branch
      %23 = sbr.rel (0) target = $region5
    $region4: #{tpu_custom_call.1} parent=1 // pred_region
      %25 = vsyncadd [#allocation3], 0
      %s26 = sshll.u32 %s0, 4
      %s27 = int_to_ptr.hbm [resolvable:$true] %s26
      %s28 = sshll.u32 [#allocation2], 4
      %s29 = int_to_ptr.vmem [resolvable:$true] %s28
      %34 = dma.hbm_to_vmem [thread:$0]  %s27, 256, %s29, [#allocation3], 32, 32, 2
    $region5: #{tpu_custom_call.1} parent=1 // pred_fallthru
      _
    // Predicated region
    $region6: #{tpu_custom_call.1} parent=1 // pred_check
      _
    $region7: #{tpu_custom_call.1} parent=1 // pred_check_branch
      %36 = sbr.rel (0) target = $region9
    $region8: #{tpu_custom_call.1} parent=1 // pred_region
      _
    $region9: #{tpu_custom_call.1} parent=1 // pred_fallthru
      _
    // Predicated region
    $region10: #{tpu_custom_call.1} parent=1 // pred_check
      _
    $region11: #{tpu_custom_call.1} parent=1 // pred_check_branch
      %38 = sbr.rel (0) target = $region13
    $region12: #{tpu_custom_call.1} parent=1 // pred_region
      %40 = vsyncadd [#allocation6], 0
      %s41 = sshll.u32 %s2, 4
      %s42 = int_to_ptr.hbm [resolvable:$true] %s41
      %s43 = sshll.u32 [#allocation5], 4
      %s44 = int_to_ptr.vmem [resolvable:$true] %s43
      %49 = dma.hbm_to_vmem [thread:$0]  %s42, 32, %s44, [#allocation6], 16, 16, 1
    $region13: #{tpu_custom_call.1} parent=1 // pred_fallthru
      _
    // Predicated region
    $region14: #{tpu_custom_call.1} parent=1 // pred_check
      _
    $region15: #{tpu_custom_call.1} parent=1 // pred_check_branch
      %51 = sbr.rel (0) target = $region17
    $region16: #{tpu_custom_call.1} parent=1 // pred_region
      _
    $region17: #{tpu_custom_call.1} parent=1 // pred_fallthru
      _
    // Predicated region
    $region18: #{tpu_custom_call.1} parent=1 // pred_check
      _
    $region19: #{tpu_custom_call.1} parent=1 // pred_check_branch
      %53 = sbr.rel (0) target = $region21
    $region20: #{tpu_custom_call.1} parent=1 // pred_region
      _
    $region21: #{tpu_custom_call.1} parent=1 // pred_fallthru
      _
    // Predicated region
    $region22: #{tpu_custom_call.1} parent=1 // pred_check
      _
    $region23: #{tpu_custom_call.1} parent=1 // pred_check_branch
      %55 = sbr.rel (0) target = $region25
    $region24: #{tpu_custom_call.1} parent=1 // pred_region
      %57 = vsyncadd [#allocation6], 0
      %s58 = sshll.u32 %s5, 4
      %s59 = int_to_ptr.hbm [resolvable:$true] %s58
      %s60 = sshll.u32 [#allocation7], 4
      %s61 = int_to_ptr.vmem [resolvable:$true] %s60
      %66 = dma.hbm_to_vmem [thread:$0]  %s59, 32, %s61, [#allocation6], 16, 16, 1
    $region25: #{tpu_custom_call.1} parent=1 // pred_fallthru
      _
    // Predicated region
    $region26: #{tpu_custom_call.1} parent=1 // pred_check
      _
    $region27: #{tpu_custom_call.1} parent=1 // pred_check_branch
      %68 = sbr.rel (0) target = $region29
    $region28: #{tpu_custom_call.1} parent=1 // pred_region
      _
    $region29: #{tpu_custom_call.1} parent=1 // pred_fallthru
      _
    // Predicated region
    $region30: #{tpu_custom_call.1} parent=1 // pred_check
      _
    $region31: #{tpu_custom_call.1} parent=1 // pred_check_branch
      %70 = sbr.rel (0) target = $region33
    $region32: #{tpu_custom_call.1} parent=1 // pred_region
      _
    $region33: #{tpu_custom_call.1} parent=1 // pred_fallthru
      _
    // Predicated region
    $region34: #{tpu_custom_call.1} parent=1 // pred_check
      _
    $region35: #{tpu_custom_call.1} parent=1 // pred_check_branch
      %72 = sbr.rel (0) target = $region37
    $region36: #{tpu_custom_call.1} parent=1 // pred_region
      %74 = vsyncadd [#allocation9], 0
      %s75 = sshll.u32 %s8, 4
      %s76 = int_to_ptr.hbm [resolvable:$true] %s75
      %s77 = sshll.u32 [#allocation8], 4
      %s78 = int_to_ptr.vmem [resolvable:$true] %s77
      %83 = dma.hbm_to_vmem [thread:$0]  %s76, 32, %s78, [#allocation9], 16, 16, 1
    $region37: #{tpu_custom_call.1} parent=1 // pred_fallthru
      _
    // Predicated region
    $region38: #{tpu_custom_call.1} parent=1 // pred_check
      _
    $region39: #{tpu_custom_call.1} parent=1 // pred_check_branch
      %85 = sbr.rel (0) target = $region41
    $region40: #{tpu_custom_call.1} parent=1 // pred_region
      _
    $region41: #{tpu_custom_call.1} parent=1 // pred_fallthru
      _
    // Predicated region
    $region42: #{tpu_custom_call.1} parent=1 // pred_check
      _
    $region43: #{tpu_custom_call.1} parent=1 // pred_check_branch
      %87 = sbr.rel (0) target = $region45
    $region44: #{tpu_custom_call.1} parent=1 // pred_region
      _
    $region45: #{tpu_custom_call.1} parent=1 // pred_fallthru
      _
    // Predicated region
    $region46: #{tpu_custom_call.1} parent=1 // pred_check
      _
    $region47: #{tpu_custom_call.1} parent=1 // pred_check_branch
      %89 = sbr.rel (0) target = $region49
    $region48: #{tpu_custom_call.1} parent=1 // pred_region
      _
    $region49: #{tpu_custom_call.1} parent=1 // pred_fallthru
      _
    // Predicated region
    $region50: #{tpu_custom_call.1} parent=1 // pred_check
      _
    $region51: #{tpu_custom_call.1} parent=1 // pred_check_branch
      %91 = sbr.rel (0) target = $region53
    $region52: #{tpu_custom_call.1} parent=1 // pred_region
      _
    $region53: #{tpu_custom_call.1} parent=1 // pred_fallthru
      _
    // Predicated region
    $region54: #{tpu_custom_call.1} parent=1 // pred_check
      _
    $region55: #{tpu_custom_call.1} parent=1 // pred_check_branch
      %93 = sbr.rel (0) target = $region57
    $region56: #{tpu_custom_call.1} parent=1 // pred_region
      %95 = dma.done [#allocation3], 256
    $region57: #{tpu_custom_call.1} parent=1 // pred_fallthru
      _
    // Predicated region
    $region58: #{tpu_custom_call.1} parent=1 // pred_check
      _
    $region59: #{tpu_custom_call.1} parent=1 // pred_check_branch
      %97 = sbr.rel (0) target = $region61
    $region60: #{tpu_custom_call.1} parent=1 // pred_region
      %99 = dma.done [#allocation6], 32
    $region61: #{tpu_custom_call.1} parent=1 // pred_fallthru
      _
    // Predicated region
    $region62: #{tpu_custom_call.1} parent=1 // pred_check
      _
    $region63: #{tpu_custom_call.1} parent=1 // pred_check_branch
      %101 = sbr.rel (0) target = $region65
    $region64: #{tpu_custom_call.1} parent=1 // pred_region
      %103 = dma.done [#allocation6], 32
    $region65: #{tpu_custom_call.1} parent=1 // pred_fallthru
      _
    // Predicated region
    $region66: #{tpu_custom_call.1} parent=1 // pred_check
      _
    $region67: #{tpu_custom_call.1} parent=1 // pred_check_branch
      %105 = sbr.rel (0) target = $region69
    $region68: #{tpu_custom_call.1} parent=1 // pred_region
      %107 = dma.done [#allocation9], 32
    $region69: #{tpu_custom_call.1} parent=1 // pred_fallthru
      _
    %v108 = vld [vmem:[#allocation2] sm:$0x3]
    %v109 = vld [vmem:[#allocation2 + $0x2] sm:$0x3]
    %v110 = vld [vmem:[#allocation2 + $0x4] sm:$0x3]
    %v111 = vld [vmem:[#allocation2 + $0x6] sm:$0x3]
    %v112 = vld [vmem:[#allocation2 + $0x8] sm:$0x3]
    %v113 = vld [vmem:[#allocation2 + $0xa] sm:$0x3]
    %v114 = vld [vmem:[#allocation2 + $0xc] sm:$0x3]
    %v115 = vld [vmem:[#allocation2 + $0xe] sm:$0x3]
    %v116 = vrot.slane %v110, 4
    %vm117 = vcmask 1047556
    %v118 = vsel %vm117, %v116, %v108
    %v120 = vunpack.c.l.s4 1983009808
    %v121 = vunpack.c.0.s8 %v120
    %v122 = vperm.slane %v118, %v121
    %v123 = vrot.slane %v111, 4
    %v124 = vsel %vm117, %v123, %v109
    %v126 = vunpack.c.l.s4 1983009808
    %v127 = vunpack.c.0.s8 %v126
    %v128 = vperm.slane %v124, %v127
    %v129 = vrot.slane %v114, 4
    %v130 = vsel %vm117, %v129, %v112
    %v132 = vunpack.c.l.s4 1983009808
    %v133 = vunpack.c.0.s8 %v132
    %v134 = vperm.slane %v130, %v133
    %v135 = vrot.slane %v115, 4
    %v136 = vsel %vm117, %v135, %v113
    %v138 = vunpack.c.l.s4 1983009808
    %v139 = vunpack.c.0.s8 %v138
    %v140 = vperm.slane %v136, %v139
    %v141 = vrot.slane %v128, 4
    %v142 = vsel %vm117, %v141, %v122
    %v144 = vunpack.c.l.s4 1934713408
    %v145 = vunpack.c.0.s8 %v144
    %v146 = vperm.slane %v142, %v145
    %v147 = vrot.slane %v140, 4
    %v148 = vsel %vm117, %v147, %v134
    %v150 = vunpack.c.l.s4 1934713408
    %v151 = vunpack.c.0.s8 %v150
    %v152 = vperm.slane %v148, %v151
    %v153 = vrot.slane %v152, 4
    %v154 = vsel %vm117, %v153, %v146
    %v155 = vrot.slane %v146, 4
    %v156 = vsel %vm117, %v152, %v155
    %v157 = vld [vmem:[%s1] sm:$0xff]
    %v158 = vld [vmem:[%s1 + $0x8] sm:$0xff]
    %v159 = vld [vmem:[%s1 + $0x10] sm:$0xff]
    %v160 = vld [vmem:[%s1 + $0x18] sm:$0xff]
    %v161 = vld [vmem:[#allocation5] sm:$0x1]
    %v162 = vld [vmem:[%s3] sm:$0xff]
    %v163 = vld [vmem:[%s3 + $0x8] sm:$0xff]
    %v164 = vld [vmem:[%s3 + $0x10] sm:$0xff]
    %v165 = vld [vmem:[%s3 + $0x18] sm:$0xff]
    %v166 = vld [vmem:[%s4] sm:$0x1]
    %v167 = vld [vmem:[#allocation7] sm:$0x1]
    %v168 = vld [vmem:[%s6] sm:$0x1]
    %v169 = vld [vmem:[%s7] sm:$0xff]
    %v170 = vld [vmem:[%s7 + $0x8] sm:$0xff]
    %v171 = vld [vmem:[%s7 + $0x10] sm:$0xff]
    %v172 = vld [vmem:[%s7 + $0x18] sm:$0xff]
    %v173 = vld [vmem:[#allocation8] sm:$0x1]
    %v174 = vld [vmem:[%s9] sm:$0xff]
    %v175 = vld [vmem:[%s9 + $0x8] sm:$0xff]
    %v176 = vld [vmem:[%s9 + $0x10] sm:$0xff]
    %v177 = vld [vmem:[%s9 + $0x18] sm:$0xff]
    %v178 = vld [vmem:[%s9 + $0x20] sm:$0xff]
    %v179 = vld [vmem:[%s9 + $0x28] sm:$0xff]
    %v180 = vld [vmem:[%s9 + $0x30] sm:$0xff]
    %v181 = vld [vmem:[%s9 + $0x38] sm:$0xff]
    %v182 = vld [vmem:[%s10] sm:$0x1]
    %v183 = vld [vmem:[%s11] sm:$0x1]
    %v184 = vld [vmem:[%s12] sm:$0x1]
    %v186 = vperm.slane %v161, 0
    %vm188 = vcmask 261120
    %v190 = vsel %vm188, %v154, 0
    %v193 = vsel %vm188, %v156, 0
    %195 = vmatpush.msra.mxu0 0.0
    %196 = vmatpush.msra.mxu0 0.0
    %197 = vmatpush.msra.mxu0 0.0
    %198 = vmatpush.msra.mxu0 0.0
    %199 = vmatpush.msra.mxu0 0.0
    %200 = vmatpush.msra.mxu0 0.0
    %201 = vmatpush.msra.mxu0 0.0
    %202 = vmatpush.msra.mxu0 0.0
    %203 = vmatpush.msra.mxu0 0.0
    %204 = vmatpush.msra.mxu0 0.0
    %205 = vmatpush.msra.mxu0 0.0
    %206 = vmatpush.msra.mxu0 0.0
    %207 = vmatpush.msra.mxu0 %v160
    %208 = vmatpush.msra.mxu0 %v159
    %209 = vmatpush.msra.mxu0 %v158
    %210 = vmatpush.msra.mxu0 %v157
    %211 = vmatmul.f32.gmra.mxu0 %v190
    %v212 = vpop.f32.mrf.mxu0
    %v213 = vadd.f32 %v186, %v212
    %214 = vmatmul.f32.gmra.mxu0 %v193
    %v215 = vpop.f32.mrf.mxu0
    %v216 = vadd.f32 %v186, %v215
    %217 = vdwg.mxu0
    %v218 = vmul.f32 %v213, 0.35355338
    %220 = vrot.lane.b32.xlu0 %v213, 96
    %v221 = vpop.permute.xlu0 %220
    %vm222 = vcmask 64512
    %v224 = vsel %vm222, %v218, 0
    %v226 = vsel %vm222, %v221, 0
    %228 = vmatpush.xpose.msra.mxu0 0.0
    %229 = vmatpush.xpose.msra.mxu0 0.0
    %230 = vmatpush.xpose.msra.mxu0 0.0
    %231 = vmatpush.xpose.msra.mxu0 0.0
    %232 = vmatpush.xpose.msra.mxu0 0.0
    %233 = vmatpush.xpose.msra.mxu0 0.0
    %234 = vmatpush.xpose.msra.mxu0 0.0
    %235 = vmatpush.xpose.msra.mxu0 0.0
    %236 = vmatpush.xpose.msra.mxu0 0.0
    %237 = vmatpush.xpose.msra.mxu0 0.0
    %238 = vmatpush.xpose.msra.mxu0 0.0
    %239 = vmatpush.xpose.msra.mxu0 0.0
    %240 = vmatpush.xpose.msra.mxu0 0.0
    %241 = vmatpush.xpose.msra.mxu0 0.0
    %242 = vmatpush.xpose.msra.mxu0 0.0
    %243 = vmatpush.xpose.msra.mxu0 %v226
    %244 = vmatmul.f32.gmra.mxu0 %v224
    %v245 = vpop.f32.mrf.mxu0
    %v246 = vadd.f32 0.0, %v245
    %247 = vdwg.mxu0
    %v248 = vsel %vm222, %v246, -inf
    %249 = vmax.xlane.f32.xlu0 %v248
    %v250 = vpop.xlane.xlu0 %249
    %v251 = vsub.f32 %v246, %v250
    %v252 = vmul.f32 %v251, 1.442695
    %v253 = vpow.pop %v252
    %v254 = vsel %vm222, %v253, 0.0
    %255 = vadd.xlane.f32.xlu0 %v254
    %v256 = vpop.xlane.xlu0 %255
    %v257 = vrcp.pop %v256
    %v258 = vmul.f32 %v256, %v257
    %v259 = vsub.f32 2.0, %v258
    %v260 = vmul.f32 %v257, %v259
    %v261 = vmul.f32 %v253, %v260
    %262 = vrot.lane.b32.xlu0 %v213, 64
    %v263 = vpop.permute.xlu0 %262
    %v266 = vsel %vm222, %v261, 0
    %268 = vmatpush.msra.mxu0 0.0
    %269 = vmatpush.msra.mxu0 0.0
    %270 = vmatpush.msra.mxu0 0.0
    %271 = vmatpush.msra.mxu0 0.0
    %272 = vmatpush.msra.mxu0 0.0
    %273 = vmatpush.msra.mxu0 0.0
    %274 = vmatpush.msra.mxu0 0.0
    %275 = vmatpush.msra.mxu0 0.0
    %276 = vmatpush.msra.mxu0 0.0
    %277 = vmatpush.msra.mxu0 0.0
    %278 = vmatpush.msra.mxu0 0.0
    %279 = vmatpush.msra.mxu0 0.0
    %280 = vmatpush.msra.mxu0 0.0
    %281 = vmatpush.msra.mxu0 0.0
    %282 = vmatpush.msra.mxu0 0.0
    %283 = vmatpush.msra.mxu0 %v263
    %284 = vmatmul.f32.gmra.mxu0 %v266
    %v285 = vpop.f32.mrf.mxu0
    %v286 = vadd.f32 0.0, %v285
    %287 = vdwg.mxu0
    %288 = vrot.lane.b32.xlu0 %v218, 120
    %v289 = vpop.permute.xlu0 %288
    %290 = vrot.lane.b32.xlu0 %v213, 88
    %v291 = vpop.permute.xlu0 %290
    %v292 = vsel %vm222, %v289, 0
    %v294 = vsel %vm222, %v291, 0
    %296 = vmatpush.xpose.msra.mxu0 0.0
    %297 = vmatpush.xpose.msra.mxu0 0.0
    %298 = vmatpush.xpose.msra.mxu0 0.0
    %299 = vmatpush.xpose.msra.mxu0 0.0
    %300 = vmatpush.xpose.msra.mxu0 0.0
    %301 = vmatpush.xpose.msra.mxu0 0.0
    %302 = vmatpush.xpose.msra.mxu0 0.0
    %303 = vmatpush.xpose.msra.mxu0 0.0
    %304 = vmatpush.xpose.msra.mxu0 0.0
    %305 = vmatpush.xpose.msra.mxu0 0.0
    %306 = vmatpush.xpose.msra.mxu0 0.0
    %307 = vmatpush.xpose.msra.mxu0 0.0
    %308 = vmatpush.xpose.msra.mxu0 0.0
    %309 = vmatpush.xpose.msra.mxu0 0.0
    %310 = vmatpush.xpose.msra.mxu0 0.0
    %311 = vmatpush.xpose.msra.mxu0 %v294
    %312 = vmatmul.f32.gmra.mxu0 %v292
    %v313 = vpop.f32.mrf.mxu0
    %v314 = vadd.f32 0.0, %v313
    %315 = vdwg.mxu0
    %v316 = vsel %vm222, %v314, -inf
    %317 = vmax.xlane.f32.xlu0 %v316
    %v318 = vpop.xlane.xlu0 %317
    %v319 = vsub.f32 %v314, %v318
    %v320 = vmul.f32 %v319, 1.442695
    %v321 = vpow.pop %v320
    %v322 = vsel %vm222, %v321, 0.0
    %323 = vadd.xlane.f32.xlu0 %v322
    %v324 = vpop.xlane.xlu0 %323
    %v325 = vrcp.pop %v324
    %v326 = vmul.f32 %v324, %v325
    %v327 = vsub.f32 2.0, %v326
    %v328 = vmul.f32 %v325, %v327
    %v329 = vmul.f32 %v321, %v328
    %330 = vrot.lane.b32.xlu0 %v213, 56
    %v331 = vpop.permute.xlu0 %330
    %v334 = vsel %vm222, %v329, 0
    %336 = vmatpush.msra.mxu0 0.0
    %337 = vmatpush.msra.mxu0 0.0
    %338 = vmatpush.msra.mxu0 0.0
    %339 = vmatpush.msra.mxu0 0.0
    %340 = vmatpush.msra.mxu0 0.0
    %341 = vmatpush.msra.mxu0 0.0
    %342 = vmatpush.msra.mxu0 0.0
    %343 = vmatpush.msra.mxu0 0.0
    %344 = vmatpush.msra.mxu0 0.0
    %345 = vmatpush.msra.mxu0 0.0
    %346 = vmatpush.msra.mxu0 0.0
    %347 = vmatpush.msra.mxu0 0.0
    %348 = vmatpush.msra.mxu0 0.0
    %349 = vmatpush.msra.mxu0 0.0
    %350 = vmatpush.msra.mxu0 0.0
    %351 = vmatpush.msra.mxu0 %v331
    %352 = vmatmul.f32.gmra.mxu0 %v334
    %v353 = vpop.f32.mrf.mxu0
    %v354 = vadd.f32 0.0, %v353
    %355 = vdwg.mxu0
    %v357 = vsel %vm222, %v354, 0
    %359 = vmatpush.msra.mxu0 0.0
    %360 = vmatpush.msra.mxu0 0.0
    %361 = vmatpush.msra.mxu0 0.0
    %362 = vmatpush.msra.mxu0 0.0
    %363 = vmatpush.msra.mxu0 0.0
    %364 = vmatpush.msra.mxu0 0.0
    %365 = vmatpush.msra.mxu0 0.0
    %366 = vmatpush.msra.mxu0 0.0
    %367 = vmatpush.msra.mxu0 0.0
    %368 = vmatpush.msra.mxu0 0.0
    %369 = vmatpush.msra.mxu0 0.0
    %370 = vmatpush.msra.mxu0 0.0
    %371 = vmatpush.msra.mxu0 0.0
    %372 = vmatpush.msra.mxu0 0.0
    %373 = vmatpush.msra.mxu0 0.0
    %374 = vmatpush.msra.mxu0 %v163
    %375 = vmatmul.f32.gmra.mxu0 %v357
    %v376 = vpop.f32.mrf.mxu0
    %v377 = vadd.f32 0.0, %v376
    %378 = vdwg.mxu0
    %v380 = vsel %vm222, %v286, 0
    %382 = vmatpush.msra.mxu0 0.0
    %383 = vmatpush.msra.mxu0 0.0
    %384 = vmatpush.msra.mxu0 0.0
    %385 = vmatpush.msra.mxu0 0.0
    %386 = vmatpush.msra.mxu0 0.0
    %387 = vmatpush.msra.mxu0 0.0
    %388 = vmatpush.msra.mxu0 0.0
    %389 = vmatpush.msra.mxu0 0.0
    %390 = vmatpush.msra.mxu0 0.0
    %391 = vmatpush.msra.mxu0 0.0
    %392 = vmatpush.msra.mxu0 0.0
    %393 = vmatpush.msra.mxu0 0.0
    %394 = vmatpush.msra.mxu0 0.0
    %395 = vmatpush.msra.mxu0 0.0
    %396 = vmatpush.msra.mxu0 0.0
    %397 = vmatpush.msra.mxu0 %v162
    %398 = vmatmul.f32.gmra.mxu0 %v380
    %v399 = vpop.f32.mrf.mxu0
    %v400 = vadd.f32 %v377, %v399
    %401 = vdwg.mxu0
    %402 = vrot.lane.b32.xlu0 %v218, 112
    %v403 = vpop.permute.xlu0 %402
    %404 = vrot.lane.b32.xlu0 %v213, 80
    %v405 = vpop.permute.xlu0 %404
    %v406 = vsel %vm222, %v403, 0
    %v408 = vsel %vm222, %v405, 0
    %410 = vmatpush.xpose.msra.mxu0 0.0
    %411 = vmatpush.xpose.msra.mxu0 0.0
    %412 = vmatpush.xpose.msra.mxu0 0.0
    %413 = vmatpush.xpose.msra.mxu0 0.0
    %414 = vmatpush.xpose.msra.mxu0 0.0
    %415 = vmatpush.xpose.msra.mxu0 0.0
    %416 = vmatpush.xpose.msra.mxu0 0.0
    %417 = vmatpush.xpose.msra.mxu0 0.0
    %418 = vmatpush.xpose.msra.mxu0 0.0
    %419 = vmatpush.xpose.msra.mxu0 0.0
    %420 = vmatpush.xpose.msra.mxu0 0.0
    %421 = vmatpush.xpose.msra.mxu0 0.0
    %422 = vmatpush.xpose.msra.mxu0 0.0
    %423 = vmatpush.xpose.msra.mxu0 0.0
    %424 = vmatpush.xpose.msra.mxu0 0.0
    %425 = vmatpush.xpose.msra.mxu0 %v408
    %426 = vmatmul.f32.gmra.mxu0 %v406
    %v427 = vpop.f32.mrf.mxu0
    %v428 = vadd.f32 0.0, %v427
    %429 = vdwg.mxu0
    %v430 = vsel %vm222, %v428, -inf
    %431 = vmax.xlane.f32.xlu0 %v430
    %v432 = vpop.xlane.xlu0 %431
    %v433 = vsub.f32 %v428, %v432
    %v434 = vmul.f32 %v433, 1.442695
    %v435 = vpow.pop %v434
    %v436 = vsel %vm222, %v435, 0.0
    %437 = vadd.xlane.f32.xlu0 %v436
    %v438 = vpop.xlane.xlu0 %437
    %v439 = vrcp.pop %v438
    %v440 = vmul.f32 %v438, %v439
    %v441 = vsub.f32 2.0, %v440
    %v442 = vmul.f32 %v439, %v441
    %v443 = vmul.f32 %v435, %v442
    %444 = vrot.lane.b32.xlu0 %v213, 48
    %v445 = vpop.permute.xlu0 %444
    %v448 = vsel %vm222, %v443, 0
    %450 = vmatpush.msra.mxu0 0.0
    %451 = vmatpush.msra.mxu0 0.0
    %452 = vmatpush.msra.mxu0 0.0
    %453 = vmatpush.msra.mxu0 0.0
    %454 = vmatpush.msra.mxu0 0.0
    %455 = vmatpush.msra.mxu0 0.0
    %456 = vmatpush.msra.mxu0 0.0
    %457 = vmatpush.msra.mxu0 0.0
    %458 = vmatpush.msra.mxu0 0.0
    %459 = vmatpush.msra.mxu0 0.0
    %460 = vmatpush.msra.mxu0 0.0
    %461 = vmatpush.msra.mxu0 0.0
    %462 = vmatpush.msra.mxu0 0.0
    %463 = vmatpush.msra.mxu0 0.0
    %464 = vmatpush.msra.mxu0 0.0
    %465 = vmatpush.msra.mxu0 %v445
    %466 = vmatmul.f32.gmra.mxu0 %v448
    %v467 = vpop.f32.mrf.mxu0
    %v468 = vadd.f32 0.0, %v467
    %469 = vdwg.mxu0
    %v471 = vsel %vm222, %v468, 0
    %473 = vmatpush.msra.mxu0 0.0
    %474 = vmatpush.msra.mxu0 0.0
    %475 = vmatpush.msra.mxu0 0.0
    %476 = vmatpush.msra.mxu0 0.0
    %477 = vmatpush.msra.mxu0 0.0
    %478 = vmatpush.msra.mxu0 0.0
    %479 = vmatpush.msra.mxu0 0.0
    %480 = vmatpush.msra.mxu0 0.0
    %481 = vmatpush.msra.mxu0 0.0
    %482 = vmatpush.msra.mxu0 0.0
    %483 = vmatpush.msra.mxu0 0.0
    %484 = vmatpush.msra.mxu0 0.0
    %485 = vmatpush.msra.mxu0 0.0
    %486 = vmatpush.msra.mxu0 0.0
    %487 = vmatpush.msra.mxu0 0.0
    %488 = vmatpush.msra.mxu0 %v164
    %489 = vmatmul.f32.gmra.mxu0 %v471
    %v490 = vpop.f32.mrf.mxu0
    %v491 = vadd.f32 0.0, %v490
    %492 = vdwg.mxu0
    %v493 = vadd.f32 %v400, %v491
    %494 = vrot.lane.b32.xlu0 %v218, 104
    %v495 = vpop.permute.xlu0 %494
    %496 = vrot.lane.b32.xlu0 %v213, 72
    %v497 = vpop.permute.xlu0 %496
    %v498 = vsel %vm222, %v495, 0
    %v500 = vsel %vm222, %v497, 0
    %502 = vmatpush.xpose.msra.mxu0 0.0
    %503 = vmatpush.xpose.msra.mxu0 0.0
    %504 = vmatpush.xpose.msra.mxu0 0.0
    %505 = vmatpush.xpose.msra.mxu0 0.0
    %506 = vmatpush.xpose.msra.mxu0 0.0
    %507 = vmatpush.xpose.msra.mxu0 0.0
    %508 = vmatpush.xpose.msra.mxu0 0.0
    %509 = vmatpush.xpose.msra.mxu0 0.0
    %510 = vmatpush.xpose.msra.mxu0 0.0
    %511 = vmatpush.xpose.msra.mxu0 0.0
    %512 = vmatpush.xpose.msra.mxu0 0.0
    %513 = vmatpush.xpose.msra.mxu0 0.0
    %514 = vmatpush.xpose.msra.mxu0 0.0
    %515 = vmatpush.xpose.msra.mxu0 0.0
    %516 = vmatpush.xpose.msra.mxu0 0.0
    %517 = vmatpush.xpose.msra.mxu0 %v500
    %518 = vmatmul.f32.gmra.mxu0 %v498
    %v519 = vpop.f32.mrf.mxu0
    %v520 = vadd.f32 0.0, %v519
    %521 = vdwg.mxu0
    %v522 = vsel %vm222, %v520, -inf
    %523 = vmax.xlane.f32.xlu0 %v522
    %v524 = vpop.xlane.xlu0 %523
    %v525 = vsub.f32 %v520, %v524
    %v526 = vmul.f32 %v525, 1.442695
    %v527 = vpow.pop %v526
    %v528 = vsel %vm222, %v527, 0.0
    %529 = vadd.xlane.f32.xlu0 %v528
    %v530 = vpop.xlane.xlu0 %529
    %v531 = vrcp.pop %v530
    %v532 = vmul.f32 %v530, %v531
    %v533 = vsub.f32 2.0, %v532
    %v534 = vmul.f32 %v531, %v533
    %v535 = vmul.f32 %v527, %v534
    %536 = vrot.lane.b32.xlu0 %v213, 40
    %v537 = vpop.permute.xlu0 %536
    %v540 = vsel %vm222, %v535, 0
    %542 = vmatpush.msra.mxu0 0.0
    %543 = vmatpush.msra.mxu0 0.0
    %544 = vmatpush.msra.mxu0 0.0
    %545 = vmatpush.msra.mxu0 0.0
    %546 = vmatpush.msra.mxu0 0.0
    %547 = vmatpush.msra.mxu0 0.0
    %548 = vmatpush.msra.mxu0 0.0
    %549 = vmatpush.msra.mxu0 0.0
    %550 = vmatpush.msra.mxu0 0.0
    %551 = vmatpush.msra.mxu0 0.0
    %552 = vmatpush.msra.mxu0 0.0
    %553 = vmatpush.msra.mxu0 0.0
    %554 = vmatpush.msra.mxu0 0.0
    %555 = vmatpush.msra.mxu0 0.0
    %556 = vmatpush.msra.mxu0 0.0
    %557 = vmatpush.msra.mxu0 %v537
    %558 = vmatmul.f32.gmra.mxu0 %v540
    %v559 = vpop.f32.mrf.mxu0
    %v560 = vadd.f32 0.0, %v559
    %561 = vdwg.mxu0
    %v563 = vsel %vm222, %v560, 0
    %565 = vmatpush.msra.mxu0 0.0
    %566 = vmatpush.msra.mxu0 0.0
    %567 = vmatpush.msra.mxu0 0.0
    %568 = vmatpush.msra.mxu0 0.0
    %569 = vmatpush.msra.mxu0 0.0
    %570 = vmatpush.msra.mxu0 0.0
    %571 = vmatpush.msra.mxu0 0.0
    %572 = vmatpush.msra.mxu0 0.0
    %573 = vmatpush.msra.mxu0 0.0
    %574 = vmatpush.msra.mxu0 0.0
    %575 = vmatpush.msra.mxu0 0.0
    %576 = vmatpush.msra.mxu0 0.0
    %577 = vmatpush.msra.mxu0 0.0
    %578 = vmatpush.msra.mxu0 0.0
    %579 = vmatpush.msra.mxu0 0.0
    %580 = vmatpush.msra.mxu0 %v165
    %581 = vmatmul.f32.gmra.mxu0 %v563
    %v582 = vpop.f32.mrf.mxu0
    %v583 = vadd.f32 0.0, %v582
    %584 = vdwg.mxu0
    %v585 = vadd.f32 %v493, %v583
    %v586 = vmul.f32 %v216, 0.35355338
    %588 = vrot.lane.b32.xlu0 %v216, 96
    %v589 = vpop.permute.xlu0 %588
    %v591 = vsel %vm222, %v586, 0
    %v593 = vsel %vm222, %v589, 0
    %595 = vmatpush.xpose.msra.mxu0 0.0
    %596 = vmatpush.xpose.msra.mxu0 0.0
    %597 = vmatpush.xpose.msra.mxu0 0.0
    %598 = vmatpush.xpose.msra.mxu0 0.0
    %599 = vmatpush.xpose.msra.mxu0 0.0
    %600 = vmatpush.xpose.msra.mxu0 0.0
    %601 = vmatpush.xpose.msra.mxu0 0.0
    %602 = vmatpush.xpose.msra.mxu0 0.0
    %603 = vmatpush.xpose.msra.mxu0 0.0
    %604 = vmatpush.xpose.msra.mxu0 0.0
    %605 = vmatpush.xpose.msra.mxu0 0.0
    %606 = vmatpush.xpose.msra.mxu0 0.0
    %607 = vmatpush.xpose.msra.mxu0 0.0
    %608 = vmatpush.xpose.msra.mxu0 0.0
    %609 = vmatpush.xpose.msra.mxu0 0.0
    %610 = vmatpush.xpose.msra.mxu0 %v593
    %611 = vmatmul.f32.gmra.mxu0 %v591
    %v612 = vpop.f32.mrf.mxu0
    %v613 = vadd.f32 0.0, %v612
    %614 = vdwg.mxu0
    %v615 = vsel %vm222, %v613, -inf
    %616 = vmax.xlane.f32.xlu0 %v615
    %v617 = vpop.xlane.xlu0 %616
    %v618 = vsub.f32 %v613, %v617
    %v619 = vmul.f32 %v618, 1.442695
    %v620 = vpow.pop %v619
    %v621 = vsel %vm222, %v620, 0.0
    %622 = vadd.xlane.f32.xlu0 %v621
    %v623 = vpop.xlane.xlu0 %622
    %v624 = vrcp.pop %v623
    %v625 = vmul.f32 %v623, %v624
    %v626 = vsub.f32 2.0, %v625
    %v627 = vmul.f32 %v624, %v626
    %v628 = vmul.f32 %v620, %v627
    %629 = vrot.lane.b32.xlu0 %v216, 64
    %v630 = vpop.permute.xlu0 %629
    %v633 = vsel %vm222, %v628, 0
    %635 = vmatpush.msra.mxu0 0.0
    %636 = vmatpush.msra.mxu0 0.0
    %637 = vmatpush.msra.mxu0 0.0
    %638 = vmatpush.msra.mxu0 0.0
    %639 = vmatpush.msra.mxu0 0.0
    %640 = vmatpush.msra.mxu0 0.0
    %641 = vmatpush.msra.mxu0 0.0
    %642 = vmatpush.msra.mxu0 0.0
    %643 = vmatpush.msra.mxu0 0.0
    %644 = vmatpush.msra.mxu0 0.0
    %645 = vmatpush.msra.mxu0 0.0
    %646 = vmatpush.msra.mxu0 0.0
    %647 = vmatpush.msra.mxu0 0.0
    %648 = vmatpush.msra.mxu0 0.0
    %649 = vmatpush.msra.mxu0 0.0
    %650 = vmatpush.msra.mxu0 %v630
    %651 = vmatmul.f32.gmra.mxu0 %v633
    %v652 = vpop.f32.mrf.mxu0
    %v653 = vadd.f32 0.0, %v652
    %654 = vdwg.mxu0
    %655 = vrot.lane.b32.xlu0 %v586, 120
    %v656 = vpop.permute.xlu0 %655
    %657 = vrot.lane.b32.xlu0 %v216, 88
    %v658 = vpop.permute.xlu0 %657
    %v659 = vsel %vm222, %v656, 0
    %v661 = vsel %vm222, %v658, 0
    %663 = vmatpush.xpose.msra.mxu0 0.0
    %664 = vmatpush.xpose.msra.mxu0 0.0
    %665 = vmatpush.xpose.msra.mxu0 0.0
    %666 = vmatpush.xpose.msra.mxu0 0.0
    %667 = vmatpush.xpose.msra.mxu0 0.0
    %668 = vmatpush.xpose.msra.mxu0 0.0
    %669 = vmatpush.xpose.msra.mxu0 0.0
    %670 = vmatpush.xpose.msra.mxu0 0.0
    %671 = vmatpush.xpose.msra.mxu0 0.0
    %672 = vmatpush.xpose.msra.mxu0 0.0
    %673 = vmatpush.xpose.msra.mxu0 0.0
    %674 = vmatpush.xpose.msra.mxu0 0.0
    %675 = vmatpush.xpose.msra.mxu0 0.0
    %676 = vmatpush.xpose.msra.mxu0 0.0
    %677 = vmatpush.xpose.msra.mxu0 0.0
    %678 = vmatpush.xpose.msra.mxu0 %v661
    %679 = vmatmul.f32.gmra.mxu0 %v659
    %v680 = vpop.f32.mrf.mxu0
    %v681 = vadd.f32 0.0, %v680
    %682 = vdwg.mxu0
    %v683 = vsel %vm222, %v681, -inf
    %684 = vmax.xlane.f32.xlu0 %v683
    %v685 = vpop.xlane.xlu0 %684
    %v686 = vsub.f32 %v681, %v685
    %v687 = vmul.f32 %v686, 1.442695
    %v688 = vpow.pop %v687
    %v689 = vsel %vm222, %v688, 0.0
    %690 = vadd.xlane.f32.xlu0 %v689
    %v691 = vpop.xlane.xlu0 %690
    %v692 = vrcp.pop %v691
    %v693 = vmul.f32 %v691, %v692
    %v694 = vsub.f32 2.0, %v693
    %v695 = vmul.f32 %v692, %v694
    %v696 = vmul.f32 %v688, %v695
    %697 = vrot.lane.b32.xlu0 %v216, 56
    %v698 = vpop.permute.xlu0 %697
    %v701 = vsel %vm222, %v696, 0
    %703 = vmatpush.msra.mxu0 0.0
    %704 = vmatpush.msra.mxu0 0.0
    %705 = vmatpush.msra.mxu0 0.0
    %706 = vmatpush.msra.mxu0 0.0
    %707 = vmatpush.msra.mxu0 0.0
    %708 = vmatpush.msra.mxu0 0.0
    %709 = vmatpush.msra.mxu0 0.0
    %710 = vmatpush.msra.mxu0 0.0
    %711 = vmatpush.msra.mxu0 0.0
    %712 = vmatpush.msra.mxu0 0.0
    %713 = vmatpush.msra.mxu0 0.0
    %714 = vmatpush.msra.mxu0 0.0
    %715 = vmatpush.msra.mxu0 0.0
    %716 = vmatpush.msra.mxu0 0.0
    %717 = vmatpush.msra.mxu0 0.0
    %718 = vmatpush.msra.mxu0 %v698
    %719 = vmatmul.f32.gmra.mxu0 %v701
    %v720 = vpop.f32.mrf.mxu0
    %v721 = vadd.f32 0.0, %v720
    %722 = vdwg.mxu0
    %v724 = vsel %vm222, %v721, 0
    %726 = vmatpush.msra.mxu0 0.0
    %727 = vmatpush.msra.mxu0 0.0
    %728 = vmatpush.msra.mxu0 0.0
    %729 = vmatpush.msra.mxu0 0.0
    %730 = vmatpush.msra.mxu0 0.0
    %731 = vmatpush.msra.mxu0 0.0
    %732 = vmatpush.msra.mxu0 0.0
    %733 = vmatpush.msra.mxu0 0.0
    %734 = vmatpush.msra.mxu0 0.0
    %735 = vmatpush.msra.mxu0 0.0
    %736 = vmatpush.msra.mxu0 0.0
    %737 = vmatpush.msra.mxu0 0.0
    %738 = vmatpush.msra.mxu0 0.0
    %739 = vmatpush.msra.mxu0 0.0
    %740 = vmatpush.msra.mxu0 0.0
    %741 = vmatpush.msra.mxu0 %v163
    %742 = vmatmul.f32.gmra.mxu0 %v724
    %v743 = vpop.f32.mrf.mxu0
    %v744 = vadd.f32 0.0, %v743
    %745 = vdwg.mxu0
    %v747 = vsel %vm222, %v653, 0
    %749 = vmatpush.msra.mxu0 0.0
    %750 = vmatpush.msra.mxu0 0.0
    %751 = vmatpush.msra.mxu0 0.0
    %752 = vmatpush.msra.mxu0 0.0
    %753 = vmatpush.msra.mxu0 0.0
    %754 = vmatpush.msra.mxu0 0.0
    %755 = vmatpush.msra.mxu0 0.0
    %756 = vmatpush.msra.mxu0 0.0
    %757 = vmatpush.msra.mxu0 0.0
    %758 = vmatpush.msra.mxu0 0.0
    %759 = vmatpush.msra.mxu0 0.0
    %760 = vmatpush.msra.mxu0 0.0
    %761 = vmatpush.msra.mxu0 0.0
    %762 = vmatpush.msra.mxu0 0.0
    %763 = vmatpush.msra.mxu0 0.0
    %764 = vmatpush.msra.mxu0 %v162
    %765 = vmatmul.f32.gmra.mxu0 %v747
    %v766 = vpop.f32.mrf.mxu0
    %v767 = vadd.f32 %v744, %v766
    %768 = vdwg.mxu0
    %769 = vrot.lane.b32.xlu0 %v586, 112
    %v770 = vpop.permute.xlu0 %769
    %771 = vrot.lane.b32.xlu0 %v216, 80
    %v772 = vpop.permute.xlu0 %771
    %v773 = vsel %vm222, %v770, 0
    %v775 = vsel %vm222, %v772, 0
    %777 = vmatpush.xpose.msra.mxu0 0.0
    %778 = vmatpush.xpose.msra.mxu0 0.0
    %779 = vmatpush.xpose.msra.mxu0 0.0
    %780 = vmatpush.xpose.msra.mxu0 0.0
    %781 = vmatpush.xpose.msra.mxu0 0.0
    %782 = vmatpush.xpose.msra.mxu0 0.0
    %783 = vmatpush.xpose.msra.mxu0 0.0
    %784 = vmatpush.xpose.msra.mxu0 0.0
    %785 = vmatpush.xpose.msra.mxu0 0.0
    %786 = vmatpush.xpose.msra.mxu0 0.0
    %787 = vmatpush.xpose.msra.mxu0 0.0
    %788 = vmatpush.xpose.msra.mxu0 0.0
    %789 = vmatpush.xpose.msra.mxu0 0.0
    %790 = vmatpush.xpose.msra.mxu0 0.0
    %791 = vmatpush.xpose.msra.mxu0 0.0
    %792 = vmatpush.xpose.msra.mxu0 %v775
    %793 = vmatmul.f32.gmra.mxu0 %v773
    %v794 = vpop.f32.mrf.mxu0
    %v795 = vadd.f32 0.0, %v794
    %796 = vdwg.mxu0
    %v797 = vsel %vm222, %v795, -inf
    %798 = vmax.xlane.f32.xlu0 %v797
    %v799 = vpop.xlane.xlu0 %798
    %v800 = vsub.f32 %v795, %v799
    %v801 = vmul.f32 %v800, 1.442695
    %v802 = vpow.pop %v801
    %v803 = vsel %vm222, %v802, 0.0
    %804 = vadd.xlane.f32.xlu0 %v803
    %v805 = vpop.xlane.xlu0 %804
    %v806 = vrcp.pop %v805
    %v807 = vmul.f32 %v805, %v806
    %v808 = vsub.f32 2.0, %v807
    %v809 = vmul.f32 %v806, %v808
    %v810 = vmul.f32 %v802, %v809
    %811 = vrot.lane.b32.xlu0 %v216, 48
    %v812 = vpop.permute.xlu0 %811
    %v815 = vsel %vm222, %v810, 0
    %817 = vmatpush.msra.mxu0 0.0
    %818 = vmatpush.msra.mxu0 0.0
    %819 = vmatpush.msra.mxu0 0.0
    %820 = vmatpush.msra.mxu0 0.0
    %821 = vmatpush.msra.mxu0 0.0
    %822 = vmatpush.msra.mxu0 0.0
    %823 = vmatpush.msra.mxu0 0.0
    %824 = vmatpush.msra.mxu0 0.0
    %825 = vmatpush.msra.mxu0 0.0
    %826 = vmatpush.msra.mxu0 0.0
    %827 = vmatpush.msra.mxu0 0.0
    %828 = vmatpush.msra.mxu0 0.0
    %829 = vmatpush.msra.mxu0 0.0
    %830 = vmatpush.msra.mxu0 0.0
    %831 = vmatpush.msra.mxu0 0.0
    %832 = vmatpush.msra.mxu0 %v812
    %833 = vmatmul.f32.gmra.mxu0 %v815
    %v834 = vpop.f32.mrf.mxu0
    %v835 = vadd.f32 0.0, %v834
    %836 = vdwg.mxu0
    %v838 = vsel %vm222, %v835, 0
    %840 = vmatpush.msra.mxu0 0.0
    %841 = vmatpush.msra.mxu0 0.0
    %842 = vmatpush.msra.mxu0 0.0
    %843 = vmatpush.msra.mxu0 0.0
    %844 = vmatpush.msra.mxu0 0.0
    %845 = vmatpush.msra.mxu0 0.0
    %846 = vmatpush.msra.mxu0 0.0
    %847 = vmatpush.msra.mxu0 0.0
    %848 = vmatpush.msra.mxu0 0.0
    %849 = vmatpush.msra.mxu0 0.0
    %850 = vmatpush.msra.mxu0 0.0
    %851 = vmatpush.msra.mxu0 0.0
    %852 = vmatpush.msra.mxu0 0.0
    %853 = vmatpush.msra.mxu0 0.0
    %854 = vmatpush.msra.mxu0 0.0
    %855 = vmatpush.msra.mxu0 %v164
    %856 = vmatmul.f32.gmra.mxu0 %v838
    %v857 = vpop.f32.mrf.mxu0
    %v858 = vadd.f32 0.0, %v857
    %859 = vdwg.mxu0
    %v860 = vadd.f32 %v767, %v858
    %861 = vrot.lane.b32.xlu0 %v586, 104
    %v862 = vpop.permute.xlu0 %861
    %863 = vrot.lane.b32.xlu0 %v216, 72
    %v864 = vpop.permute.xlu0 %863
    %v865 = vsel %vm222, %v862, 0
    %v867 = vsel %vm222, %v864, 0
    %869 = vmatpush.xpose.msra.mxu0 0.0
    %870 = vmatpush.xpose.msra.mxu0 0.0
    %871 = vmatpush.xpose.msra.mxu0 0.0
    %872 = vmatpush.xpose.msra.mxu0 0.0
    %873 = vmatpush.xpose.msra.mxu0 0.0
    %874 = vmatpush.xpose.msra.mxu0 0.0
    %875 = vmatpush.xpose.msra.mxu0 0.0
    %876 = vmatpush.xpose.msra.mxu0 0.0
    %877 = vmatpush.xpose.msra.mxu0 0.0
    %878 = vmatpush.xpose.msra.mxu0 0.0
    %879 = vmatpush.xpose.msra.mxu0 0.0
    %880 = vmatpush.xpose.msra.mxu0 0.0
    %881 = vmatpush.xpose.msra.mxu0 0.0
    %882 = vmatpush.xpose.msra.mxu0 0.0
    %883 = vmatpush.xpose.msra.mxu0 0.0
    %884 = vmatpush.xpose.msra.mxu0 %v867
    %885 = vmatmul.f32.gmra.mxu0 %v865
    %v886 = vpop.f32.mrf.mxu0
    %v887 = vadd.f32 0.0, %v886
    %888 = vdwg.mxu0
    %v889 = vsel %vm222, %v887, -inf
    %890 = vmax.xlane.f32.xlu0 %v889
    %v891 = vpop.xlane.xlu0 %890
    %v892 = vsub.f32 %v887, %v891
    %v893 = vmul.f32 %v892, 1.442695
    %v894 = vpow.pop %v893
    %v895 = vsel %vm222, %v894, 0.0
    %896 = vadd.xlane.f32.xlu0 %v895
    %v897 = vpop.xlane.xlu0 %896
    %v898 = vrcp.pop %v897
    %v899 = vmul.f32 %v897, %v898
    %v900 = vsub.f32 2.0, %v899
    %v901 = vmul.f32 %v898, %v900
    %v902 = vmul.f32 %v894, %v901
    %903 = vrot.lane.b32.xlu0 %v216, 40
    %v904 = vpop.permute.xlu0 %903
    %v907 = vsel %vm222, %v902, 0
    %909 = vmatpush.msra.mxu0 0.0
    %910 = vmatpush.msra.mxu0 0.0
    %911 = vmatpush.msra.mxu0 0.0
    %912 = vmatpush.msra.mxu0 0.0
    %913 = vmatpush.msra.mxu0 0.0
    %914 = vmatpush.msra.mxu0 0.0
    %915 = vmatpush.msra.mxu0 0.0
    %916 = vmatpush.msra.mxu0 0.0
    %917 = vmatpush.msra.mxu0 0.0
    %918 = vmatpush.msra.mxu0 0.0
    %919 = vmatpush.msra.mxu0 0.0
    %920 = vmatpush.msra.mxu0 0.0
    %921 = vmatpush.msra.mxu0 0.0
    %922 = vmatpush.msra.mxu0 0.0
    %923 = vmatpush.msra.mxu0 0.0
    %924 = vmatpush.msra.mxu0 %v904
    %925 = vmatmul.f32.gmra.mxu0 %v907
    %v926 = vpop.f32.mrf.mxu0
    %v927 = vadd.f32 0.0, %v926
    %928 = vdwg.mxu0
    %v930 = vsel %vm222, %v927, 0
    %932 = vmatpush.msra.mxu0 0.0
    %933 = vmatpush.msra.mxu0 0.0
    %934 = vmatpush.msra.mxu0 0.0
    %935 = vmatpush.msra.mxu0 0.0
    %936 = vmatpush.msra.mxu0 0.0
    %937 = vmatpush.msra.mxu0 0.0
    %938 = vmatpush.msra.mxu0 0.0
    %939 = vmatpush.msra.mxu0 0.0
    %940 = vmatpush.msra.mxu0 0.0
    %941 = vmatpush.msra.mxu0 0.0
    %942 = vmatpush.msra.mxu0 0.0
    %943 = vmatpush.msra.mxu0 0.0
    %944 = vmatpush.msra.mxu0 0.0
    %945 = vmatpush.msra.mxu0 0.0
    %946 = vmatpush.msra.mxu0 0.0
    %947 = vmatpush.msra.mxu0 %v165
    %948 = vmatmul.f32.gmra.mxu0 %v930
    %v949 = vpop.f32.mrf.mxu0
    %v950 = vadd.f32 0.0, %v949
    %951 = vdwg.mxu0
    %v952 = vadd.f32 %v860, %v950
    %v954 = vperm.slane %v166, 0
    %v956 = vadd.f32 %v585, %v954
    %v957 = vadd.f32 %v952, %v954
    %v958 = vadd.f32 %v154, %v956
    %v959 = vadd.f32 %v156, %v957
    %v960 = vsel %vm188, %v958, 0.0
    %961 = vadd.xlane.f32.xlu0 %v960
    %v962 = vpop.xlane.xlu0 %961
    %v963 = vsel %vm188, %v959, 0.0
    %964 = vadd.xlane.f32.xlu0 %v963
    %v965 = vpop.xlane.xlu0 %964
    %v966 = vrcp.pop 32.0
    %v967 = vmul.f32 32.0, %v966
    %v968 = vsub.f32 1.0, %v967
    %v969 = vmul.f32 %v966, %v968
    %v970 = vadd.f32 %v966, %v969
    %vm971 = vweird.f32 %v966
    %v972 = vsel %vm971, %v966, %v970
    %v973 = vmul.f32 %v962, %v972
    %v974 = vmul.f32 %v965, %v972
    %v975 = vsub.f32 %v958, %v973
    %v976 = vsub.f32 %v959, %v974
    %v977 = vmul.f32 %v975, %v975
    %v978 = vmul.f32 %v976, %v976
    %v979 = vsel %vm188, %v977, 0.0
    %980 = vadd.xlane.f32.xlu0 %v979
    %v981 = vpop.xlane.xlu0 %980
    %v982 = vsel %vm188, %v978, 0.0
    %983 = vadd.xlane.f32.xlu0 %v982
    %v984 = vpop.xlane.xlu0 %983
    %v985 = vmul.f32 %v981, %v972
    %v986 = vmul.f32 %v984, %v972
    %v987 = vadd.f32 %v985, 1e-05
    %v988 = vadd.f32 %v986, 1e-05
    %v989 = vrsqrt.pop %v987
    %v990 = vmul.f32 %v989, %v987
    %v991 = vmul.f32 %v990, %v989
    %v992 = vmul.f32 0.5, %v991
    %v993 = vsub.f32 1.5, %v992
    %v994 = vmul.f32 %v989, %v993
    %vm995 = vweird.f32 %v987
    %vm996 = vweird.f32 %v989
    %vm997 = vmor %vm995, %vm996
    %v998 = vsel %vm997, %v989, %v994
    %v999 = vrsqrt.pop %v988
    %v1000 = vmul.f32 %v999, %v988
    %v1001 = vmul.f32 %v1000, %v999
    %v1002 = vmul.f32 0.5, %v1001
    %v1003 = vsub.f32 1.5, %v1002
    %v1004 = vmul.f32 %v999, %v1003
    %vm1005 = vweird.f32 %v988
    %vm1006 = vweird.f32 %v999
    %vm1007 = vmor %vm1005, %vm1006
    %v1008 = vsel %vm1007, %v999, %v1004
    %v1009 = vmul.f32 %v975, %v998
    %v1010 = vmul.f32 %v976, %v1008
    %v1012 = vperm.slane %v167, 0
    %v1014 = vmul.f32 %v1009, %v1012
    %v1015 = vmul.f32 %v1010, %v1012
    %v1017 = vperm.slane %v168, 0
    %v1019 = vadd.f32 %v1014, %v1017
    %v1020 = vadd.f32 %v1015, %v1017
    %v1022 = vperm.slane %v173, 0
    %v1025 = vsel %vm188, %v1019, 0
    %v1028 = vsel %vm188, %v1020, 0
    %1030 = vmatpush.msra.mxu0 0.0
    %1031 = vmatpush.msra.mxu0 0.0
    %1032 = vmatpush.msra.mxu0 0.0
    %1033 = vmatpush.msra.mxu0 0.0
    %1034 = vmatpush.msra.mxu0 0.0
    %1035 = vmatpush.msra.mxu0 0.0
    %1036 = vmatpush.msra.mxu0 0.0
    %1037 = vmatpush.msra.mxu0 0.0
    %1038 = vmatpush.msra.mxu0 0.0
    %1039 = vmatpush.msra.mxu0 0.0
    %1040 = vmatpush.msra.mxu0 0.0
    %1041 = vmatpush.msra.mxu0 0.0
    %1042 = vmatpush.msra.mxu0 %v172
    %1043 = vmatpush.msra.mxu0 %v171
    %1044 = vmatpush.msra.mxu0 %v170
    %1045 = vmatpush.msra.mxu0 %v169
    %1046 = vmatmul.f32.gmra.mxu0 %v1025
    %v1047 = vpop.f32.mrf.mxu0
    %v1048 = vadd.f32 %v1022, %v1047
    %1049 = vmatmul.f32.gmra.mxu0 %v1028
    %v1050 = vpop.f32.mrf.mxu0
    %v1051 = vadd.f32 %v1022, %v1050
    %1052 = vdwg.mxu0
    %v1053 = vmax.f32 %v1048, 0.0
    %v1054 = vmax.f32 %v1051, 0.0
    %v1056 = vperm.slane %v182, 0
    %vm1058 = vcmask 523264
    %v1060 = vsel %vm1058, %v1053, 0
    %v1063 = vsel %vm1058, %v1054, 0
    %1065 = vmatpush.msra.mxu0 0.0
    %1066 = vmatpush.msra.mxu0 0.0
    %1067 = vmatpush.msra.mxu0 0.0
    %1068 = vmatpush.msra.mxu0 0.0
    %1069 = vmatpush.msra.mxu0 0.0
    %1070 = vmatpush.msra.mxu0 0.0
    %1071 = vmatpush.msra.mxu0 0.0
    %1072 = vmatpush.msra.mxu0 0.0
    %1073 = vmatpush.msra.mxu0 %v181
    %1074 = vmatpush.msra.mxu0 %v180
    %1075 = vmatpush.msra.mxu0 %v179
    %1076 = vmatpush.msra.mxu0 %v178
    %1077 = vmatpush.msra.mxu0 %v177
    %1078 = vmatpush.msra.mxu0 %v176
    %1079 = vmatpush.msra.mxu0 %v175
    %1080 = vmatpush.msra.mxu0 %v174
    %1081 = vmatmul.f32.gmra.mxu0 %v1060
    %v1082 = vpop.f32.mrf.mxu0
    %v1083 = vadd.f32 %v1056, %v1082
    %1084 = vmatmul.f32.gmra.mxu0 %v1063
    %v1085 = vpop.f32.mrf.mxu0
    %v1086 = vadd.f32 %v1056, %v1085
    %1087 = vdwg.mxu0
    %v1088 = vadd.f32 %v1019, %v1083
    %v1089 = vadd.f32 %v1020, %v1086
    %v1090 = vsel %vm188, %v1088, 0.0
    %1091 = vadd.xlane.f32.xlu0 %v1090
    %v1092 = vpop.xlane.xlu0 %1091
    %v1093 = vsel %vm188, %v1089, 0.0
    %1094 = vadd.xlane.f32.xlu0 %v1093
    %v1095 = vpop.xlane.xlu0 %1094
    %v1096 = vmul.f32 %v1092, %v972
    %v1097 = vmul.f32 %v1095, %v972
    %v1098 = vsub.f32 %v1088, %v1096
    %v1099 = vsub.f32 %v1089, %v1097
    %v1100 = vmul.f32 %v1098, %v1098
    %v1101 = vmul.f32 %v1099, %v1099
    %v1102 = vsel %vm188, %v1100, 0.0
    %1103 = vadd.xlane.f32.xlu0 %v1102
    %v1104 = vpop.xlane.xlu0 %1103
    %v1105 = vsel %vm188, %v1101, 0.0
    %1106 = vadd.xlane.f32.xlu0 %v1105
    %v1107 = vpop.xlane.xlu0 %1106
    %v1108 = vmul.f32 %v1104, %v972
    %v1109 = vmul.f32 %v1107, %v972
    %v1110 = vadd.f32 %v1108, 1e-05
    %v1111 = vadd.f32 %v1109, 1e-05
    %v1112 = vrsqrt.pop %v1110
    %v1113 = vmul.f32 %v1112, %v1110
    %v1114 = vmul.f32 %v1113, %v1112
    %v1115 = vmul.f32 0.5, %v1114
    %v1116 = vsub.f32 1.5, %v1115
    %v1117 = vmul.f32 %v1112, %v1116
    %vm1118 = vweird.f32 %v1110
    %vm1119 = vweird.f32 %v1112
    %vm1120 = vmor %vm1118, %vm1119
    %v1121 = vsel %vm1120, %v1112, %v1117
    %v1122 = vrsqrt.pop %v1111
    %v1123 = vmul.f32 %v1122, %v1111
    %v1124 = vmul.f32 %v1123, %v1122
    %v1125 = vmul.f32 0.5, %v1124
    %v1126 = vsub.f32 1.5, %v1125
    %v1127 = vmul.f32 %v1122, %v1126
    %vm1128 = vweird.f32 %v1111
    %vm1129 = vweird.f32 %v1122
    %vm1130 = vmor %vm1128, %vm1129
    %v1131 = vsel %vm1130, %v1122, %v1127
    %v1132 = vmul.f32 %v1098, %v1121
    %v1133 = vmul.f32 %v1099, %v1131
    %v1135 = vperm.slane %v183, 0
    %v1137 = vmul.f32 %v1132, %v1135
    %v1138 = vmul.f32 %v1133, %v1135
    %v1140 = vperm.slane %v184, 0
    %v1142 = vadd.f32 %v1137, %v1140
    %v1143 = vadd.f32 %v1138, %v1140
    %s1144 = scalar_lea.vmem %s1, 32
    %v1145 = vld [vmem:[%s1144] sm:$0xff]
    %v1146 = vld [vmem:[%s1144 + $0x8] sm:$0xff]
    %v1147 = vld [vmem:[%s1144 + $0x10] sm:$0xff]
    %v1148 = vld [vmem:[%s1144 + $0x18] sm:$0xff]
    %s1149 = scalar_lea.vmem [#allocation5], 1
    %v1150 = vld [vmem:[%s1149] sm:$0x1]
    %s1151 = scalar_lea.vmem %s3, 32
    %v1152 = vld [vmem:[%s1151] sm:$0xff]
    %v1153 = vld [vmem:[%s1151 + $0x8] sm:$0xff]
    %v1154 = vld [vmem:[%s1151 + $0x10] sm:$0xff]
    %v1155 = vld [vmem:[%s1151 + $0x18] sm:$0xff]
    %s1156 = scalar_lea.vmem %s4, 1
    %v1157 = vld [vmem:[%s1156] sm:$0x1]
    %s1158 = scalar_lea.vmem [#allocation7], 1
    %v1159 = vld [vmem:[%s1158] sm:$0x1]
    %s1160 = scalar_lea.vmem %s6, 1
    %v1161 = vld [vmem:[%s1160] sm:$0x1]
    %s1162 = scalar_lea.vmem %s7, 32
    %v1163 = vld [vmem:[%s1162] sm:$0xff]
    %v1164 = vld [vmem:[%s1162 + $0x8] sm:$0xff]
    %v1165 = vld [vmem:[%s1162 + $0x10] sm:$0xff]
    %v1166 = vld [vmem:[%s1162 + $0x18] sm:$0xff]
    %s1167 = scalar_lea.vmem [#allocation8], 1
    %v1168 = vld [vmem:[%s1167] sm:$0x1]
    %s1169 = scalar_lea.vmem %s9, 64
    %v1170 = vld [vmem:[%s1169] sm:$0xff]
    %v1171 = vld [vmem:[%s1169 + $0x8] sm:$0xff]
    %v1172 = vld [vmem:[%s1169 + $0x10] sm:$0xff]
    %v1173 = vld [vmem:[%s1169 + $0x18] sm:$0xff]
    %v1174 = vld [vmem:[%s1169 + $0x20] sm:$0xff]
    %v1175 = vld [vmem:[%s1169 + $0x28] sm:$0xff]
    %v1176 = vld [vmem:[%s1169 + $0x30] sm:$0xff]
    %v1177 = vld [vmem:[%s1169 + $0x38] sm:$0xff]
    %s1178 = scalar_lea.vmem %s10, 1
    %v1179 = vld [vmem:[%s1178] sm:$0x1]
    %s1180 = scalar_lea.vmem %s11, 1
    %v1181 = vld [vmem:[%s1180] sm:$0x1]
    %s1182 = scalar_lea.vmem %s12, 1
    %v1183 = vld [vmem:[%s1182] sm:$0x1]
    %v1185 = vperm.slane %v1150, 0
    %v1188 = vsel %vm188, %v1142, 0
    %v1191 = vsel %vm188, %v1143, 0
    %1193 = vmatpush.msra.mxu0 0.0
    %1194 = vmatpush.msra.mxu0 0.0
    %1195 = vmatpush.msra.mxu0 0.0
    %1196 = vmatpush.msra.mxu0 0.0
    %1197 = vmatpush.msra.mxu0 0.0
    %1198 = vmatpush.msra.mxu0 0.0
    %1199 = vmatpush.msra.mxu0 0.0
    %1200 = vmatpush.msra.mxu0 0.0
    %1201 = vmatpush.msra.mxu0 0.0
    %1202 = vmatpush.msra.mxu0 0.0
    %1203 = vmatpush.msra.mxu0 0.0
    %1204 = vmatpush.msra.mxu0 0.0
    %1205 = vmatpush.msra.mxu0 %v1148
    %1206 = vmatpush.msra.mxu0 %v1147
    %1207 = vmatpush.msra.mxu0 %v1146
    %1208 = vmatpush.msra.mxu0 %v1145
    %1209 = vmatmul.f32.gmra.mxu0 %v1188
    %v1210 = vpop.f32.mrf.mxu0
    %v1211 = vadd.f32 %v1185, %v1210
    %1212 = vmatmul.f32.gmra.mxu0 %v1191
    %v1213 = vpop.f32.mrf.mxu0
    %v1214 = vadd.f32 %v1185, %v1213
    %1215 = vdwg.mxu0
    %v1216 = vmul.f32 %v1211, 0.35355338
    %1218 = vrot.lane.b32.xlu0 %v1211, 96
    %v1219 = vpop.permute.xlu0 %1218
    %v1221 = vsel %vm222, %v1216, 0
    %v1223 = vsel %vm222, %v1219, 0
    %1225 = vmatpush.xpose.msra.mxu0 0.0
    %1226 = vmatpush.xpose.msra.mxu0 0.0
    %1227 = vmatpush.xpose.msra.mxu0 0.0
    %1228 = vmatpush.xpose.msra.mxu0 0.0
    %1229 = vmatpush.xpose.msra.mxu0 0.0
    %1230 = vmatpush.xpose.msra.mxu0 0.0
    %1231 = vmatpush.xpose.msra.mxu0 0.0
    %1232 = vmatpush.xpose.msra.mxu0 0.0
    %1233 = vmatpush.xpose.msra.mxu0 0.0
    %1234 = vmatpush.xpose.msra.mxu0 0.0
    %1235 = vmatpush.xpose.msra.mxu0 0.0
    %1236 = vmatpush.xpose.msra.mxu0 0.0
    %1237 = vmatpush.xpose.msra.mxu0 0.0
    %1238 = vmatpush.xpose.msra.mxu0 0.0
    %1239 = vmatpush.xpose.msra.mxu0 0.0
    %1240 = vmatpush.xpose.msra.mxu0 %v1223
    %1241 = vmatmul.f32.gmra.mxu0 %v1221
    %v1242 = vpop.f32.mrf.mxu0
    %v1243 = vadd.f32 0.0, %v1242
    %1244 = vdwg.mxu0
    %v1245 = vsel %vm222, %v1243, -inf
    %1246 = vmax.xlane.f32.xlu0 %v1245
    %v1247 = vpop.xlane.xlu0 %1246
    %v1248 = vsub.f32 %v1243, %v1247
    %v1249 = vmul.f32 %v1248, 1.442695
    %v1250 = vpow.pop %v1249
    %v1251 = vsel %vm222, %v1250, 0.0
    %1252 = vadd.xlane.f32.xlu0 %v1251
    %v1253 = vpop.xlane.xlu0 %1252
    %v1254 = vrcp.pop %v1253
    %v1255 = vmul.f32 %v1253, %v1254
    %v1256 = vsub.f32 2.0, %v1255
    %v1257 = vmul.f32 %v1254, %v1256
    %v1258 = vmul.f32 %v1250, %v1257
    %1259 = vrot.lane.b32.xlu0 %v1211, 64
    %v1260 = vpop.permute.xlu0 %1259
    %v1263 = vsel %vm222, %v1258, 0
    %1265 = vmatpush.msra.mxu0 0.0
    %1266 = vmatpush.msra.mxu0 0.0
    %1267 = vmatpush.msra.mxu0 0.0
    %1268 = vmatpush.msra.mxu0 0.0
    %1269 = vmatpush.msra.mxu0 0.0
    %1270 = vmatpush.msra.mxu0 0.0
    %1271 = vmatpush.msra.mxu0 0.0
    %1272 = vmatpush.msra.mxu0 0.0
    %1273 = vmatpush.msra.mxu0 0.0
    %1274 = vmatpush.msra.mxu0 0.0
    %1275 = vmatpush.msra.mxu0 0.0
    %1276 = vmatpush.msra.mxu0 0.0
    %1277 = vmatpush.msra.mxu0 0.0
    %1278 = vmatpush.msra.mxu0 0.0
    %1279 = vmatpush.msra.mxu0 0.0
    %1280 = vmatpush.msra.mxu0 %v1260
    %1281 = vmatmul.f32.gmra.mxu0 %v1263
    %v1282 = vpop.f32.mrf.mxu0
    %v1283 = vadd.f32 0.0, %v1282
    %1284 = vdwg.mxu0
    %1285 = vrot.lane.b32.xlu0 %v1216, 120
    %v1286 = vpop.permute.xlu0 %1285
    %1287 = vrot.lane.b32.xlu0 %v1211, 88
    %v1288 = vpop.permute.xlu0 %1287
    %v1289 = vsel %vm222, %v1286, 0
    %v1291 = vsel %vm222, %v1288, 0
    %1293 = vmatpush.xpose.msra.mxu0 0.0
    %1294 = vmatpush.xpose.msra.mxu0 0.0
    %1295 = vmatpush.xpose.msra.mxu0 0.0
    %1296 = vmatpush.xpose.msra.mxu0 0.0
    %1297 = vmatpush.xpose.msra.mxu0 0.0
    %1298 = vmatpush.xpose.msra.mxu0 0.0
    %1299 = vmatpush.xpose.msra.mxu0 0.0
    %1300 = vmatpush.xpose.msra.mxu0 0.0
    %1301 = vmatpush.xpose.msra.mxu0 0.0
    %1302 = vmatpush.xpose.msra.mxu0 0.0
    %1303 = vmatpush.xpose.msra.mxu0 0.0
    %1304 = vmatpush.xpose.msra.mxu0 0.0
    %1305 = vmatpush.xpose.msra.mxu0 0.0
    %1306 = vmatpush.xpose.msra.mxu0 0.0
    %1307 = vmatpush.xpose.msra.mxu0 0.0
    %1308 = vmatpush.xpose.msra.mxu0 %v1291
    %1309 = vmatmul.f32.gmra.mxu0 %v1289
    %v1310 = vpop.f32.mrf.mxu0
    %v1311 = vadd.f32 0.0, %v1310
    %1312 = vdwg.mxu0
    %v1313 = vsel %vm222, %v1311, -inf
    %1314 = vmax.xlane.f32.xlu0 %v1313
    %v1315 = vpop.xlane.xlu0 %1314
    %v1316 = vsub.f32 %v1311, %v1315
    %v1317 = vmul.f32 %v1316, 1.442695
    %v1318 = vpow.pop %v1317
    %v1319 = vsel %vm222, %v1318, 0.0
    %1320 = vadd.xlane.f32.xlu0 %v1319
    %v1321 = vpop.xlane.xlu0 %1320
    %v1322 = vrcp.pop %v1321
    %v1323 = vmul.f32 %v1321, %v1322
    %v1324 = vsub.f32 2.0, %v1323
    %v1325 = vmul.f32 %v1322, %v1324
    %v1326 = vmul.f32 %v1318, %v1325
    %1327 = vrot.lane.b32.xlu0 %v1211, 56
    %v1328 = vpop.permute.xlu0 %1327
    %v1331 = vsel %vm222, %v1326, 0
    %1333 = vmatpush.msra.mxu0 0.0
    %1334 = vmatpush.msra.mxu0 0.0
    %1335 = vmatpush.msra.mxu0 0.0
    %1336 = vmatpush.msra.mxu0 0.0
    %1337 = vmatpush.msra.mxu0 0.0
    %1338 = vmatpush.msra.mxu0 0.0
    %1339 = vmatpush.msra.mxu0 0.0
    %1340 = vmatpush.msra.mxu0 0.0
    %1341 = vmatpush.msra.mxu0 0.0
    %1342 = vmatpush.msra.mxu0 0.0
    %1343 = vmatpush.msra.mxu0 0.0
    %1344 = vmatpush.msra.mxu0 0.0
    %1345 = vmatpush.msra.mxu0 0.0
    %1346 = vmatpush.msra.mxu0 0.0
    %1347 = vmatpush.msra.mxu0 0.0
    %1348 = vmatpush.msra.mxu0 %v1328
    %1349 = vmatmul.f32.gmra.mxu0 %v1331
    %v1350 = vpop.f32.mrf.mxu0
    %v1351 = vadd.f32 0.0, %v1350
    %1352 = vdwg.mxu0
    %v1354 = vsel %vm222, %v1351, 0
    %1356 = vmatpush.msra.mxu0 0.0
    %1357 = vmatpush.msra.mxu0 0.0
    %1358 = vmatpush.msra.mxu0 0.0
    %1359 = vmatpush.msra.mxu0 0.0
    %1360 = vmatpush.msra.mxu0 0.0
    %1361 = vmatpush.msra.mxu0 0.0
    %1362 = vmatpush.msra.mxu0 0.0
    %1363 = vmatpush.msra.mxu0 0.0
    %1364 = vmatpush.msra.mxu0 0.0
    %1365 = vmatpush.msra.mxu0 0.0
    %1366 = vmatpush.msra.mxu0 0.0
    %1367 = vmatpush.msra.mxu0 0.0
    %1368 = vmatpush.msra.mxu0 0.0
    %1369 = vmatpush.msra.mxu0 0.0
    %1370 = vmatpush.msra.mxu0 0.0
    %1371 = vmatpush.msra.mxu0 %v1153
    %1372 = vmatmul.f32.gmra.mxu0 %v1354
    %v1373 = vpop.f32.mrf.mxu0
    %v1374 = vadd.f32 0.0, %v1373
    %1375 = vdwg.mxu0
    %v1377 = vsel %vm222, %v1283, 0
    %1379 = vmatpush.msra.mxu0 0.0
    %1380 = vmatpush.msra.mxu0 0.0
    %1381 = vmatpush.msra.mxu0 0.0
    %1382 = vmatpush.msra.mxu0 0.0
    %1383 = vmatpush.msra.mxu0 0.0
    %1384 = vmatpush.msra.mxu0 0.0
    %1385 = vmatpush.msra.mxu0 0.0
    %1386 = vmatpush.msra.mxu0 0.0
    %1387 = vmatpush.msra.mxu0 0.0
    %1388 = vmatpush.msra.mxu0 0.0
    %1389 = vmatpush.msra.mxu0 0.0
    %1390 = vmatpush.msra.mxu0 0.0
    %1391 = vmatpush.msra.mxu0 0.0
    %1392 = vmatpush.msra.mxu0 0.0
    %1393 = vmatpush.msra.mxu0 0.0
    %1394 = vmatpush.msra.mxu0 %v1152
    %1395 = vmatmul.f32.gmra.mxu0 %v1377
    %v1396 = vpop.f32.mrf.mxu0
    %v1397 = vadd.f32 %v1374, %v1396
    %1398 = vdwg.mxu0
    %1399 = vrot.lane.b32.xlu0 %v1216, 112
    %v1400 = vpop.permute.xlu0 %1399
    %1401 = vrot.lane.b32.xlu0 %v1211, 80
    %v1402 = vpop.permute.xlu0 %1401
    %v1403 = vsel %vm222, %v1400, 0
    %v1405 = vsel %vm222, %v1402, 0
    %1407 = vmatpush.xpose.msra.mxu0 0.0
    %1408 = vmatpush.xpose.msra.mxu0 0.0
    %1409 = vmatpush.xpose.msra.mxu0 0.0
    %1410 = vmatpush.xpose.msra.mxu0 0.0
    %1411 = vmatpush.xpose.msra.mxu0 0.0
    %1412 = vmatpush.xpose.msra.mxu0 0.0
    %1413 = vmatpush.xpose.msra.mxu0 0.0
    %1414 = vmatpush.xpose.msra.mxu0 0.0
    %1415 = vmatpush.xpose.msra.mxu0 0.0
    %1416 = vmatpush.xpose.msra.mxu0 0.0
    %1417 = vmatpush.xpose.msra.mxu0 0.0
    %1418 = vmatpush.xpose.msra.mxu0 0.0
    %1419 = vmatpush.xpose.msra.mxu0 0.0
    %1420 = vmatpush.xpose.msra.mxu0 0.0
    %1421 = vmatpush.xpose.msra.mxu0 0.0
    %1422 = vmatpush.xpose.msra.mxu0 %v1405
    %1423 = vmatmul.f32.gmra.mxu0 %v1403
    %v1424 = vpop.f32.mrf.mxu0
    %v1425 = vadd.f32 0.0, %v1424
    %1426 = vdwg.mxu0
    %v1427 = vsel %vm222, %v1425, -inf
    %1428 = vmax.xlane.f32.xlu0 %v1427
    %v1429 = vpop.xlane.xlu0 %1428
    %v1430 = vsub.f32 %v1425, %v1429
    %v1431 = vmul.f32 %v1430, 1.442695
    %v1432 = vpow.pop %v1431
    %v1433 = vsel %vm222, %v1432, 0.0
    %1434 = vadd.xlane.f32.xlu0 %v1433
    %v1435 = vpop.xlane.xlu0 %1434
    %v1436 = vrcp.pop %v1435
    %v1437 = vmul.f32 %v1435, %v1436
    %v1438 = vsub.f32 2.0, %v1437
    %v1439 = vmul.f32 %v1436, %v1438
    %v1440 = vmul.f32 %v1432, %v1439
    %1441 = vrot.lane.b32.xlu0 %v1211, 48
    %v1442 = vpop.permute.xlu0 %1441
    %v1445 = vsel %vm222, %v1440, 0
    %1447 = vmatpush.msra.mxu0 0.0
    %1448 = vmatpush.msra.mxu0 0.0
    %1449 = vmatpush.msra.mxu0 0.0
    %1450 = vmatpush.msra.mxu0 0.0
    %1451 = vmatpush.msra.mxu0 0.0
    %1452 = vmatpush.msra.mxu0 0.0
    %1453 = vmatpush.msra.mxu0 0.0
    %1454 = vmatpush.msra.mxu0 0.0
    %1455 = vmatpush.msra.mxu0 0.0
    %1456 = vmatpush.msra.mxu0 0.0
    %1457 = vmatpush.msra.mxu0 0.0
    %1458 = vmatpush.msra.mxu0 0.0
    %1459 = vmatpush.msra.mxu0 0.0
    %1460 = vmatpush.msra.mxu0 0.0
    %1461 = vmatpush.msra.mxu0 0.0
    %1462 = vmatpush.msra.mxu0 %v1442
    %1463 = vmatmul.f32.gmra.mxu0 %v1445
    %v1464 = vpop.f32.mrf.mxu0
    %v1465 = vadd.f32 0.0, %v1464
    %1466 = vdwg.mxu0
    %v1468 = vsel %vm222, %v1465, 0
    %1470 = vmatpush.msra.mxu0 0.0
    %1471 = vmatpush.msra.mxu0 0.0
    %1472 = vmatpush.msra.mxu0 0.0
    %1473 = vmatpush.msra.mxu0 0.0
    %1474 = vmatpush.msra.mxu0 0.0
    %1475 = vmatpush.msra.mxu0 0.0
    %1476 = vmatpush.msra.mxu0 0.0
    %1477 = vmatpush.msra.mxu0 0.0
    %1478 = vmatpush.msra.mxu0 0.0
    %1479 = vmatpush.msra.mxu0 0.0
    %1480 = vmatpush.msra.mxu0 0.0
    %1481 = vmatpush.msra.mxu0 0.0
    %1482 = vmatpush.msra.mxu0 0.0
    %1483 = vmatpush.msra.mxu0 0.0
    %1484 = vmatpush.msra.mxu0 0.0
    %1485 = vmatpush.msra.mxu0 %v1154
    %1486 = vmatmul.f32.gmra.mxu0 %v1468
    %v1487 = vpop.f32.mrf.mxu0
    %v1488 = vadd.f32 0.0, %v1487
    %1489 = vdwg.mxu0
    %v1490 = vadd.f32 %v1397, %v1488
    %1491 = vrot.lane.b32.xlu0 %v1216, 104
    %v1492 = vpop.permute.xlu0 %1491
    %1493 = vrot.lane.b32.xlu0 %v1211, 72
    %v1494 = vpop.permute.xlu0 %1493
    %v1495 = vsel %vm222, %v1492, 0
    %v1497 = vsel %vm222, %v1494, 0
    %1499 = vmatpush.xpose.msra.mxu0 0.0
    %1500 = vmatpush.xpose.msra.mxu0 0.0
    %1501 = vmatpush.xpose.msra.mxu0 0.0
    %1502 = vmatpush.xpose.msra.mxu0 0.0
    %1503 = vmatpush.xpose.msra.mxu0 0.0
    %1504 = vmatpush.xpose.msra.mxu0 0.0
    %1505 = vmatpush.xpose.msra.mxu0 0.0
    %1506 = vmatpush.xpose.msra.mxu0 0.0
    %1507 = vmatpush.xpose.msra.mxu0 0.0
    %1508 = vmatpush.xpose.msra.mxu0 0.0
    %1509 = vmatpush.xpose.msra.mxu0 0.0
    %1510 = vmatpush.xpose.msra.mxu0 0.0
    %1511 = vmatpush.xpose.msra.mxu0 0.0
    %1512 = vmatpush.xpose.msra.mxu0 0.0
    %1513 = vmatpush.xpose.msra.mxu0 0.0
    %1514 = vmatpush.xpose.msra.mxu0 %v1497
    %1515 = vmatmul.f32.gmra.mxu0 %v1495
    %v1516 = vpop.f32.mrf.mxu0
    %v1517 = vadd.f32 0.0, %v1516
    %1518 = vdwg.mxu0
    %v1519 = vsel %vm222, %v1517, -inf
    %1520 = vmax.xlane.f32.xlu0 %v1519
    %v1521 = vpop.xlane.xlu0 %1520
    %v1522 = vsub.f32 %v1517, %v1521
    %v1523 = vmul.f32 %v1522, 1.442695
    %v1524 = vpow.pop %v1523
    %v1525 = vsel %vm222, %v1524, 0.0
    %1526 = vadd.xlane.f32.xlu0 %v1525
    %v1527 = vpop.xlane.xlu0 %1526
    %v1528 = vrcp.pop %v1527
    %v1529 = vmul.f32 %v1527, %v1528
    %v1530 = vsub.f32 2.0, %v1529
    %v1531 = vmul.f32 %v1528, %v1530
    %v1532 = vmul.f32 %v1524, %v1531
    %1533 = vrot.lane.b32.xlu0 %v1211, 40
    %v1534 = vpop.permute.xlu0 %1533
    %v1537 = vsel %vm222, %v1532, 0
    %1539 = vmatpush.msra.mxu0 0.0
    %1540 = vmatpush.msra.mxu0 0.0
    %1541 = vmatpush.msra.mxu0 0.0
    %1542 = vmatpush.msra.mxu0 0.0
    %1543 = vmatpush.msra.mxu0 0.0
    %1544 = vmatpush.msra.mxu0 0.0
    %1545 = vmatpush.msra.mxu0 0.0
    %1546 = vmatpush.msra.mxu0 0.0
    %1547 = vmatpush.msra.mxu0 0.0
    %1548 = vmatpush.msra.mxu0 0.0
    %1549 = vmatpush.msra.mxu0 0.0
    %1550 = vmatpush.msra.mxu0 0.0
    %1551 = vmatpush.msra.mxu0 0.0
    %1552 = vmatpush.msra.mxu0 0.0
    %1553 = vmatpush.msra.mxu0 0.0
    %1554 = vmatpush.msra.mxu0 %v1534
    %1555 = vmatmul.f32.gmra.mxu0 %v1537
    %v1556 = vpop.f32.mrf.mxu0
    %v1557 = vadd.f32 0.0, %v1556
    %1558 = vdwg.mxu0
    %v1560 = vsel %vm222, %v1557, 0
    %1562 = vmatpush.msra.mxu0 0.0
    %1563 = vmatpush.msra.mxu0 0.0
    %1564 = vmatpush.msra.mxu0 0.0
    %1565 = vmatpush.msra.mxu0 0.0
    %1566 = vmatpush.msra.mxu0 0.0
    %1567 = vmatpush.msra.mxu0 0.0
    %1568 = vmatpush.msra.mxu0 0.0
    %1569 = vmatpush.msra.mxu0 0.0
    %1570 = vmatpush.msra.mxu0 0.0
    %1571 = vmatpush.msra.mxu0 0.0
    %1572 = vmatpush.msra.mxu0 0.0
    %1573 = vmatpush.msra.mxu0 0.0
    %1574 = vmatpush.msra.mxu0 0.0
    %1575 = vmatpush.msra.mxu0 0.0
    %1576 = vmatpush.msra.mxu0 0.0
    %1577 = vmatpush.msra.mxu0 %v1155
    %1578 = vmatmul.f32.gmra.mxu0 %v1560
    %v1579 = vpop.f32.mrf.mxu0
    %v1580 = vadd.f32 0.0, %v1579
    %1581 = vdwg.mxu0
    %v1582 = vadd.f32 %v1490, %v1580
    %v1583 = vmul.f32 %v1214, 0.35355338
    %1585 = vrot.lane.b32.xlu0 %v1214, 96
    %v1586 = vpop.permute.xlu0 %1585
    %v1588 = vsel %vm222, %v1583, 0
    %v1590 = vsel %vm222, %v1586, 0
    %1592 = vmatpush.xpose.msra.mxu0 0.0
    %1593 = vmatpush.xpose.msra.mxu0 0.0
    %1594 = vmatpush.xpose.msra.mxu0 0.0
    %1595 = vmatpush.xpose.msra.mxu0 0.0
    %1596 = vmatpush.xpose.msra.mxu0 0.0
    %1597 = vmatpush.xpose.msra.mxu0 0.0
    %1598 = vmatpush.xpose.msra.mxu0 0.0
    %1599 = vmatpush.xpose.msra.mxu0 0.0
    %1600 = vmatpush.xpose.msra.mxu0 0.0
    %1601 = vmatpush.xpose.msra.mxu0 0.0
    %1602 = vmatpush.xpose.msra.mxu0 0.0
    %1603 = vmatpush.xpose.msra.mxu0 0.0
    %1604 = vmatpush.xpose.msra.mxu0 0.0
    %1605 = vmatpush.xpose.msra.mxu0 0.0
    %1606 = vmatpush.xpose.msra.mxu0 0.0
    %1607 = vmatpush.xpose.msra.mxu0 %v1590
    %1608 = vmatmul.f32.gmra.mxu0 %v1588
    %v1609 = vpop.f32.mrf.mxu0
    %v1610 = vadd.f32 0.0, %v1609
    %1611 = vdwg.mxu0
    %v1612 = vsel %vm222, %v1610, -inf
    %1613 = vmax.xlane.f32.xlu0 %v1612
    %v1614 = vpop.xlane.xlu0 %1613
    %v1615 = vsub.f32 %v1610, %v1614
    %v1616 = vmul.f32 %v1615, 1.442695
    %v1617 = vpow.pop %v1616
    %v1618 = vsel %vm222, %v1617, 0.0
    %1619 = vadd.xlane.f32.xlu0 %v1618
    %v1620 = vpop.xlane.xlu0 %1619
    %v1621 = vrcp.pop %v1620
    %v1622 = vmul.f32 %v1620, %v1621
    %v1623 = vsub.f32 2.0, %v1622
    %v1624 = vmul.f32 %v1621, %v1623
    %v1625 = vmul.f32 %v1617, %v1624
    %1626 = vrot.lane.b32.xlu0 %v1214, 64
    %v1627 = vpop.permute.xlu0 %1626
    %v1630 = vsel %vm222, %v1625, 0
    %1632 = vmatpush.msra.mxu0 0.0
    %1633 = vmatpush.msra.mxu0 0.0
    %1634 = vmatpush.msra.mxu0 0.0
    %1635 = vmatpush.msra.mxu0 0.0
    %1636 = vmatpush.msra.mxu0 0.0
    %1637 = vmatpush.msra.mxu0 0.0
    %1638 = vmatpush.msra.mxu0 0.0
    %1639 = vmatpush.msra.mxu0 0.0
    %1640 = vmatpush.msra.mxu0 0.0
    %1641 = vmatpush.msra.mxu0 0.0
    %1642 = vmatpush.msra.mxu0 0.0
    %1643 = vmatpush.msra.mxu0 0.0
    %1644 = vmatpush.msra.mxu0 0.0
    %1645 = vmatpush.msra.mxu0 0.0
    %1646 = vmatpush.msra.mxu0 0.0
    %1647 = vmatpush.msra.mxu0 %v1627
    %1648 = vmatmul.f32.gmra.mxu0 %v1630
    %v1649 = vpop.f32.mrf.mxu0
    %v1650 = vadd.f32 0.0, %v1649
    %1651 = vdwg.mxu0
    %1652 = vrot.lane.b32.xlu0 %v1583, 120
    %v1653 = vpop.permute.xlu0 %1652
    %1654 = vrot.lane.b32.xlu0 %v1214, 88
    %v1655 = vpop.permute.xlu0 %1654
    %v1656 = vsel %vm222, %v1653, 0
    %v1658 = vsel %vm222, %v1655, 0
    %1660 = vmatpush.xpose.msra.mxu0 0.0
    %1661 = vmatpush.xpose.msra.mxu0 0.0
    %1662 = vmatpush.xpose.msra.mxu0 0.0
    %1663 = vmatpush.xpose.msra.mxu0 0.0
    %1664 = vmatpush.xpose.msra.mxu0 0.0
    %1665 = vmatpush.xpose.msra.mxu0 0.0
    %1666 = vmatpush.xpose.msra.mxu0 0.0
    %1667 = vmatpush.xpose.msra.mxu0 0.0
    %1668 = vmatpush.xpose.msra.mxu0 0.0
    %1669 = vmatpush.xpose.msra.mxu0 0.0
    %1670 = vmatpush.xpose.msra.mxu0 0.0
    %1671 = vmatpush.xpose.msra.mxu0 0.0
    %1672 = vmatpush.xpose.msra.mxu0 0.0
    %1673 = vmatpush.xpose.msra.mxu0 0.0
    %1674 = vmatpush.xpose.msra.mxu0 0.0
    %1675 = vmatpush.xpose.msra.mxu0 %v1658
    %1676 = vmatmul.f32.gmra.mxu0 %v1656
    %v1677 = vpop.f32.mrf.mxu0
    %v1678 = vadd.f32 0.0, %v1677
    %1679 = vdwg.mxu0
    %v1680 = vsel %vm222, %v1678, -inf
    %1681 = vmax.xlane.f32.xlu0 %v1680
    %v1682 = vpop.xlane.xlu0 %1681
    %v1683 = vsub.f32 %v1678, %v1682
    %v1684 = vmul.f32 %v1683, 1.442695
    %v1685 = vpow.pop %v1684
    %v1686 = vsel %vm222, %v1685, 0.0
    %1687 = vadd.xlane.f32.xlu0 %v1686
    %v1688 = vpop.xlane.xlu0 %1687
    %v1689 = vrcp.pop %v1688
    %v1690 = vmul.f32 %v1688, %v1689
    %v1691 = vsub.f32 2.0, %v1690
    %v1692 = vmul.f32 %v1689, %v1691
    %v1693 = vmul.f32 %v1685, %v1692
    %1694 = vrot.lane.b32.xlu0 %v1214, 56
    %v1695 = vpop.permute.xlu0 %1694
    %v1698 = vsel %vm222, %v1693, 0
    %1700 = vmatpush.msra.mxu0 0.0
    %1701 = vmatpush.msra.mxu0 0.0
    %1702 = vmatpush.msra.mxu0 0.0
    %1703 = vmatpush.msra.mxu0 0.0
    %1704 = vmatpush.msra.mxu0 0.0
    %1705 = vmatpush.msra.mxu0 0.0
    %1706 = vmatpush.msra.mxu0 0.0
    %1707 = vmatpush.msra.mxu0 0.0
    %1708 = vmatpush.msra.mxu0 0.0
    %1709 = vmatpush.msra.mxu0 0.0
    %1710 = vmatpush.msra.mxu0 0.0
    %1711 = vmatpush.msra.mxu0 0.0
    %1712 = vmatpush.msra.mxu0 0.0
    %1713 = vmatpush.msra.mxu0 0.0
    %1714 = vmatpush.msra.mxu0 0.0
    %1715 = vmatpush.msra.mxu0 %v1695
    %1716 = vmatmul.f32.gmra.mxu0 %v1698
    %v1717 = vpop.f32.mrf.mxu0
    %v1718 = vadd.f32 0.0, %v1717
    %1719 = vdwg.mxu0
    %v1721 = vsel %vm222, %v1718, 0
    %1723 = vmatpush.msra.mxu0 0.0
    %1724 = vmatpush.msra.mxu0 0.0
    %1725 = vmatpush.msra.mxu0 0.0
    %1726 = vmatpush.msra.mxu0 0.0
    %1727 = vmatpush.msra.mxu0 0.0
    %1728 = vmatpush.msra.mxu0 0.0
    %1729 = vmatpush.msra.mxu0 0.0
    %1730 = vmatpush.msra.mxu0 0.0
    %1731 = vmatpush.msra.mxu0 0.0
    %1732 = vmatpush.msra.mxu0 0.0
    %1733 = vmatpush.msra.mxu0 0.0
    %1734 = vmatpush.msra.mxu0 0.0
    %1735 = vmatpush.msra.mxu0 0.0
    %1736 = vmatpush.msra.mxu0 0.0
    %1737 = vmatpush.msra.mxu0 0.0
    %1738 = vmatpush.msra.mxu0 %v1153
    %1739 = vmatmul.f32.gmra.mxu0 %v1721
    %v1740 = vpop.f32.mrf.mxu0
    %v1741 = vadd.f32 0.0, %v1740
    %1742 = vdwg.mxu0
    %v1744 = vsel %vm222, %v1650, 0
    %1746 = vmatpush.msra.mxu0 0.0
    %1747 = vmatpush.msra.mxu0 0.0
    %1748 = vmatpush.msra.mxu0 0.0
    %1749 = vmatpush.msra.mxu0 0.0
    %1750 = vmatpush.msra.mxu0 0.0
    %1751 = vmatpush.msra.mxu0 0.0
    %1752 = vmatpush.msra.mxu0 0.0
    %1753 = vmatpush.msra.mxu0 0.0
    %1754 = vmatpush.msra.mxu0 0.0
    %1755 = vmatpush.msra.mxu0 0.0
    %1756 = vmatpush.msra.mxu0 0.0
    %1757 = vmatpush.msra.mxu0 0.0
    %1758 = vmatpush.msra.mxu0 0.0
    %1759 = vmatpush.msra.mxu0 0.0
    %1760 = vmatpush.msra.mxu0 0.0
    %1761 = vmatpush.msra.mxu0 %v1152
    %1762 = vmatmul.f32.gmra.mxu0 %v1744
    %v1763 = vpop.f32.mrf.mxu0
    %v1764 = vadd.f32 %v1741, %v1763
    %1765 = vdwg.mxu0
    %1766 = vrot.lane.b32.xlu0 %v1583, 112
    %v1767 = vpop.permute.xlu0 %1766
    %1768 = vrot.lane.b32.xlu0 %v1214, 80
    %v1769 = vpop.permute.xlu0 %1768
    %v1770 = vsel %vm222, %v1767, 0
    %v1772 = vsel %vm222, %v1769, 0
    %1774 = vmatpush.xpose.msra.mxu0 0.0
    %1775 = vmatpush.xpose.msra.mxu0 0.0
    %1776 = vmatpush.xpose.msra.mxu0 0.0
    %1777 = vmatpush.xpose.msra.mxu0 0.0
    %1778 = vmatpush.xpose.msra.mxu0 0.0
    %1779 = vmatpush.xpose.msra.mxu0 0.0
    %1780 = vmatpush.xpose.msra.mxu0 0.0
    %1781 = vmatpush.xpose.msra.mxu0 0.0
    %1782 = vmatpush.xpose.msra.mxu0 0.0
    %1783 = vmatpush.xpose.msra.mxu0 0.0
    %1784 = vmatpush.xpose.msra.mxu0 0.0
    %1785 = vmatpush.xpose.msra.mxu0 0.0
    %1786 = vmatpush.xpose.msra.mxu0 0.0
    %1787 = vmatpush.xpose.msra.mxu0 0.0
    %1788 = vmatpush.xpose.msra.mxu0 0.0
    %1789 = vmatpush.xpose.msra.mxu0 %v1772
    %1790 = vmatmul.f32.gmra.mxu0 %v1770
    %v1791 = vpop.f32.mrf.mxu0
    %v1792 = vadd.f32 0.0, %v1791
    %1793 = vdwg.mxu0
    %v1794 = vsel %vm222, %v1792, -inf
    %1795 = vmax.xlane.f32.xlu0 %v1794
    %v1796 = vpop.xlane.xlu0 %1795
    %v1797 = vsub.f32 %v1792, %v1796
    %v1798 = vmul.f32 %v1797, 1.442695
    %v1799 = vpow.pop %v1798
    %v1800 = vsel %vm222, %v1799, 0.0
    %1801 = vadd.xlane.f32.xlu0 %v1800
    %v1802 = vpop.xlane.xlu0 %1801
    %v1803 = vrcp.pop %v1802
    %v1804 = vmul.f32 %v1802, %v1803
    %v1805 = vsub.f32 2.0, %v1804
    %v1806 = vmul.f32 %v1803, %v1805
    %v1807 = vmul.f32 %v1799, %v1806
    %1808 = vrot.lane.b32.xlu0 %v1214, 48
    %v1809 = vpop.permute.xlu0 %1808
    %v1812 = vsel %vm222, %v1807, 0
    %1814 = vmatpush.msra.mxu0 0.0
    %1815 = vmatpush.msra.mxu0 0.0
    %1816 = vmatpush.msra.mxu0 0.0
    %1817 = vmatpush.msra.mxu0 0.0
    %1818 = vmatpush.msra.mxu0 0.0
    %1819 = vmatpush.msra.mxu0 0.0
    %1820 = vmatpush.msra.mxu0 0.0
    %1821 = vmatpush.msra.mxu0 0.0
    %1822 = vmatpush.msra.mxu0 0.0
    %1823 = vmatpush.msra.mxu0 0.0
    %1824 = vmatpush.msra.mxu0 0.0
    %1825 = vmatpush.msra.mxu0 0.0
    %1826 = vmatpush.msra.mxu0 0.0
    %1827 = vmatpush.msra.mxu0 0.0
    %1828 = vmatpush.msra.mxu0 0.0
    %1829 = vmatpush.msra.mxu0 %v1809
    %1830 = vmatmul.f32.gmra.mxu0 %v1812
    %v1831 = vpop.f32.mrf.mxu0
    %v1832 = vadd.f32 0.0, %v1831
    %1833 = vdwg.mxu0
    %v1835 = vsel %vm222, %v1832, 0
    %1837 = vmatpush.msra.mxu0 0.0
    %1838 = vmatpush.msra.mxu0 0.0
    %1839 = vmatpush.msra.mxu0 0.0
    %1840 = vmatpush.msra.mxu0 0.0
    %1841 = vmatpush.msra.mxu0 0.0
    %1842 = vmatpush.msra.mxu0 0.0
    %1843 = vmatpush.msra.mxu0 0.0
    %1844 = vmatpush.msra.mxu0 0.0
    %1845 = vmatpush.msra.mxu0 0.0
    %1846 = vmatpush.msra.mxu0 0.0
    %1847 = vmatpush.msra.mxu0 0.0
    %1848 = vmatpush.msra.mxu0 0.0
    %1849 = vmatpush.msra.mxu0 0.0
    %1850 = vmatpush.msra.mxu0 0.0
    %1851 = vmatpush.msra.mxu0 0.0
    %1852 = vmatpush.msra.mxu0 %v1154
    %1853 = vmatmul.f32.gmra.mxu0 %v1835
    %v1854 = vpop.f32.mrf.mxu0
    %v1855 = vadd.f32 0.0, %v1854
    %1856 = vdwg.mxu0
    %v1857 = vadd.f32 %v1764, %v1855
    %1858 = vrot.lane.b32.xlu0 %v1583, 104
    %v1859 = vpop.permute.xlu0 %1858
    %1860 = vrot.lane.b32.xlu0 %v1214, 72
    %v1861 = vpop.permute.xlu0 %1860
    %v1862 = vsel %vm222, %v1859, 0
    %v1864 = vsel %vm222, %v1861, 0
    %1866 = vmatpush.xpose.msra.mxu0 0.0
    %1867 = vmatpush.xpose.msra.mxu0 0.0
    %1868 = vmatpush.xpose.msra.mxu0 0.0
    %1869 = vmatpush.xpose.msra.mxu0 0.0
    %1870 = vmatpush.xpose.msra.mxu0 0.0
    %1871 = vmatpush.xpose.msra.mxu0 0.0
    %1872 = vmatpush.xpose.msra.mxu0 0.0
    %1873 = vmatpush.xpose.msra.mxu0 0.0
    %1874 = vmatpush.xpose.msra.mxu0 0.0
    %1875 = vmatpush.xpose.msra.mxu0 0.0
    %1876 = vmatpush.xpose.msra.mxu0 0.0
    %1877 = vmatpush.xpose.msra.mxu0 0.0
    %1878 = vmatpush.xpose.msra.mxu0 0.0
    %1879 = vmatpush.xpose.msra.mxu0 0.0
    %1880 = vmatpush.xpose.msra.mxu0 0.0
    %1881 = vmatpush.xpose.msra.mxu0 %v1864
    %1882 = vmatmul.f32.gmra.mxu0 %v1862
    %v1883 = vpop.f32.mrf.mxu0
    %v1884 = vadd.f32 0.0, %v1883
    %1885 = vdwg.mxu0
    %v1886 = vsel %vm222, %v1884, -inf
    %1887 = vmax.xlane.f32.xlu0 %v1886
    %v1888 = vpop.xlane.xlu0 %1887
    %v1889 = vsub.f32 %v1884, %v1888
    %v1890 = vmul.f32 %v1889, 1.442695
    %v1891 = vpow.pop %v1890
    %v1892 = vsel %vm222, %v1891, 0.0
    %1893 = vadd.xlane.f32.xlu0 %v1892
    %v1894 = vpop.xlane.xlu0 %1893
    %v1895 = vrcp.pop %v1894
    %v1896 = vmul.f32 %v1894, %v1895
    %v1897 = vsub.f32 2.0, %v1896
    %v1898 = vmul.f32 %v1895, %v1897
    %v1899 = vmul.f32 %v1891, %v1898
    %1900 = vrot.lane.b32.xlu0 %v1214, 40
    %v1901 = vpop.permute.xlu0 %1900
    %v1904 = vsel %vm222, %v1899, 0
    %1906 = vmatpush.msra.mxu0 0.0
    %1907 = vmatpush.msra.mxu0 0.0
    %1908 = vmatpush.msra.mxu0 0.0
    %1909 = vmatpush.msra.mxu0 0.0
    %1910 = vmatpush.msra.mxu0 0.0
    %1911 = vmatpush.msra.mxu0 0.0
    %1912 = vmatpush.msra.mxu0 0.0
    %1913 = vmatpush.msra.mxu0 0.0
    %1914 = vmatpush.msra.mxu0 0.0
    %1915 = vmatpush.msra.mxu0 0.0
    %1916 = vmatpush.msra.mxu0 0.0
    %1917 = vmatpush.msra.mxu0 0.0
    %1918 = vmatpush.msra.mxu0 0.0
    %1919 = vmatpush.msra.mxu0 0.0
    %1920 = vmatpush.msra.mxu0 0.0
    %1921 = vmatpush.msra.mxu0 %v1901
    %1922 = vmatmul.f32.gmra.mxu0 %v1904
    %v1923 = vpop.f32.mrf.mxu0
    %v1924 = vadd.f32 0.0, %v1923
    %1925 = vdwg.mxu0
    %v1927 = vsel %vm222, %v1924, 0
    %1929 = vmatpush.msra.mxu0 0.0
    %1930 = vmatpush.msra.mxu0 0.0
    %1931 = vmatpush.msra.mxu0 0.0
    %1932 = vmatpush.msra.mxu0 0.0
    %1933 = vmatpush.msra.mxu0 0.0
    %1934 = vmatpush.msra.mxu0 0.0
    %1935 = vmatpush.msra.mxu0 0.0
    %1936 = vmatpush.msra.mxu0 0.0
    %1937 = vmatpush.msra.mxu0 0.0
    %1938 = vmatpush.msra.mxu0 0.0
    %1939 = vmatpush.msra.mxu0 0.0
    %1940 = vmatpush.msra.mxu0 0.0
    %1941 = vmatpush.msra.mxu0 0.0
    %1942 = vmatpush.msra.mxu0 0.0
    %1943 = vmatpush.msra.mxu0 0.0
    %1944 = vmatpush.msra.mxu0 %v1155
    %1945 = vmatmul.f32.gmra.mxu0 %v1927
    %v1946 = vpop.f32.mrf.mxu0
    %v1947 = vadd.f32 0.0, %v1946
    %1948 = vdwg.mxu0
    %v1949 = vadd.f32 %v1857, %v1947
    %v1951 = vperm.slane %v1157, 0
    %v1953 = vadd.f32 %v1582, %v1951
    %v1954 = vadd.f32 %v1949, %v1951
    %v1955 = vadd.f32 %v1142, %v1953
    %v1956 = vadd.f32 %v1143, %v1954
    %v1957 = vsel %vm188, %v1955, 0.0
    %1958 = vadd.xlane.f32.xlu0 %v1957
    %v1959 = vpop.xlane.xlu0 %1958
    %v1960 = vsel %vm188, %v1956, 0.0
    %1961 = vadd.xlane.f32.xlu0 %v1960
    %v1962 = vpop.xlane.xlu0 %1961
    %v1963 = vmul.f32 %v1959, %v972
    %v1964 = vmul.f32 %v1962, %v972
    %v1965 = vsub.f32 %v1955, %v1963
    %v1966 = vsub.f32 %v1956, %v1964
    %v1967 = vmul.f32 %v1965, %v1965
    %v1968 = vmul.f32 %v1966, %v1966
    %v1969 = vsel %vm188, %v1967, 0.0
    %1970 = vadd.xlane.f32.xlu0 %v1969
    %v1971 = vpop.xlane.xlu0 %1970
    %v1972 = vsel %vm188, %v1968, 0.0
    %1973 = vadd.xlane.f32.xlu0 %v1972
    %v1974 = vpop.xlane.xlu0 %1973
    %v1975 = vmul.f32 %v1971, %v972
    %v1976 = vmul.f32 %v1974, %v972
    %v1977 = vadd.f32 %v1975, 1e-05
    %v1978 = vadd.f32 %v1976, 1e-05
    %v1979 = vrsqrt.pop %v1977
    %v1980 = vmul.f32 %v1979, %v1977
    %v1981 = vmul.f32 %v1980, %v1979
    %v1982 = vmul.f32 0.5, %v1981
    %v1983 = vsub.f32 1.5, %v1982
    %v1984 = vmul.f32 %v1979, %v1983
    %vm1985 = vweird.f32 %v1977
    %vm1986 = vweird.f32 %v1979
    %vm1987 = vmor %vm1985, %vm1986
    %v1988 = vsel %vm1987, %v1979, %v1984
    %v1989 = vrsqrt.pop %v1978
    %v1990 = vmul.f32 %v1989, %v1978
    %v1991 = vmul.f32 %v1990, %v1989
    %v1992 = vmul.f32 0.5, %v1991
    %v1993 = vsub.f32 1.5, %v1992
    %v1994 = vmul.f32 %v1989, %v1993
    %vm1995 = vweird.f32 %v1978
    %vm1996 = vweird.f32 %v1989
    %vm1997 = vmor %vm1995, %vm1996
    %v1998 = vsel %vm1997, %v1989, %v1994
    %v1999 = vmul.f32 %v1965, %v1988
    %v2000 = vmul.f32 %v1966, %v1998
    %v2002 = vperm.slane %v1159, 0
    %v2004 = vmul.f32 %v1999, %v2002
    %v2005 = vmul.f32 %v2000, %v2002
    %v2007 = vperm.slane %v1161, 0
    %v2009 = vadd.f32 %v2004, %v2007
    %v2010 = vadd.f32 %v2005, %v2007
    %v2012 = vperm.slane %v1168, 0
    %v2015 = vsel %vm188, %v2009, 0
    %v2018 = vsel %vm188, %v2010, 0
    %2020 = vmatpush.msra.mxu0 0.0
    %2021 = vmatpush.msra.mxu0 0.0
    %2022 = vmatpush.msra.mxu0 0.0
    %2023 = vmatpush.msra.mxu0 0.0
    %2024 = vmatpush.msra.mxu0 0.0
    %2025 = vmatpush.msra.mxu0 0.0
    %2026 = vmatpush.msra.mxu0 0.0
    %2027 = vmatpush.msra.mxu0 0.0
    %2028 = vmatpush.msra.mxu0 0.0
    %2029 = vmatpush.msra.mxu0 0.0
    %2030 = vmatpush.msra.mxu0 0.0
    %2031 = vmatpush.msra.mxu0 0.0
    %2032 = vmatpush.msra.mxu0 %v1166
    %2033 = vmatpush.msra.mxu0 %v1165
    %2034 = vmatpush.msra.mxu0 %v1164
    %2035 = vmatpush.msra.mxu0 %v1163
    %2036 = vmatmul.f32.gmra.mxu0 %v2015
    %v2037 = vpop.f32.mrf.mxu0
    %v2038 = vadd.f32 %v2012, %v2037
    %2039 = vmatmul.f32.gmra.mxu0 %v2018
    %v2040 = vpop.f32.mrf.mxu0
    %v2041 = vadd.f32 %v2012, %v2040
    %2042 = vdwg.mxu0
    %v2043 = vmax.f32 %v2038, 0.0
    %v2044 = vmax.f32 %v2041, 0.0
    %v2046 = vperm.slane %v1179, 0
    %v2049 = vsel %vm1058, %v2043, 0
    %v2052 = vsel %vm1058, %v2044, 0
    %2054 = vmatpush.msra.mxu0 0.0
    %2055 = vmatpush.msra.mxu0 0.0
    %2056 = vmatpush.msra.mxu0 0.0
    %2057 = vmatpush.msra.mxu0 0.0
    %2058 = vmatpush.msra.mxu0 0.0
    %2059 = vmatpush.msra.mxu0 0.0
    %2060 = vmatpush.msra.mxu0 0.0
    %2061 = vmatpush.msra.mxu0 0.0
    %2062 = vmatpush.msra.mxu0 %v1177
    %2063 = vmatpush.msra.mxu0 %v1176
    %2064 = vmatpush.msra.mxu0 %v1175
    %2065 = vmatpush.msra.mxu0 %v1174
    %2066 = vmatpush.msra.mxu0 %v1173
    %2067 = vmatpush.msra.mxu0 %v1172
    %2068 = vmatpush.msra.mxu0 %v1171
    %2069 = vmatpush.msra.mxu0 %v1170
    %2070 = vmatmul.f32.gmra.mxu0 %v2049
    %v2071 = vpop.f32.mrf.mxu0
    %v2072 = vadd.f32 %v2046, %v2071
    %2073 = vmatmul.f32.gmra.mxu0 %v2052
    %v2074 = vpop.f32.mrf.mxu0
    %v2075 = vadd.f32 %v2046, %v2074
    %2076 = vdwg.mxu0
    %v2077 = vadd.f32 %v2009, %v2072
    %v2078 = vadd.f32 %v2010, %v2075
    %v2079 = vsel %vm188, %v2077, 0.0
    %2080 = vadd.xlane.f32.xlu0 %v2079
    %v2081 = vpop.xlane.xlu0 %2080
    %v2082 = vsel %vm188, %v2078, 0.0
    %2083 = vadd.xlane.f32.xlu0 %v2082
    %v2084 = vpop.xlane.xlu0 %2083
    %v2085 = vmul.f32 %v2081, %v972
    %v2086 = vmul.f32 %v2084, %v972
    %v2087 = vsub.f32 %v2077, %v2085
    %v2088 = vsub.f32 %v2078, %v2086
    %v2089 = vmul.f32 %v2087, %v2087
    %v2090 = vmul.f32 %v2088, %v2088
    %v2091 = vsel %vm188, %v2089, 0.0
    %2092 = vadd.xlane.f32.xlu0 %v2091
    %v2093 = vpop.xlane.xlu0 %2092
    %v2094 = vsel %vm188, %v2090, 0.0
    %2095 = vadd.xlane.f32.xlu0 %v2094
    %v2096 = vpop.xlane.xlu0 %2095
    %v2097 = vmul.f32 %v2093, %v972
    %v2098 = vmul.f32 %v2096, %v972
    %v2099 = vadd.f32 %v2097, 1e-05
    %v2100 = vadd.f32 %v2098, 1e-05
    %v2101 = vrsqrt.pop %v2099
    %v2102 = vmul.f32 %v2101, %v2099
    %v2103 = vmul.f32 %v2102, %v2101
    %v2104 = vmul.f32 0.5, %v2103
    %v2105 = vsub.f32 1.5, %v2104
    %v2106 = vmul.f32 %v2101, %v2105
    %vm2107 = vweird.f32 %v2099
    %vm2108 = vweird.f32 %v2101
    %vm2109 = vmor %vm2107, %vm2108
    %v2110 = vsel %vm2109, %v2101, %v2106
    %v2111 = vrsqrt.pop %v2100
    %v2112 = vmul.f32 %v2111, %v2100
    %v2113 = vmul.f32 %v2112, %v2111
    %v2114 = vmul.f32 0.5, %v2113
    %v2115 = vsub.f32 1.5, %v2114
    %v2116 = vmul.f32 %v2111, %v2115
    %vm2117 = vweird.f32 %v2100
    %vm2118 = vweird.f32 %v2111
    %vm2119 = vmor %vm2117, %vm2118
    %v2120 = vsel %vm2119, %v2111, %v2116
    %v2121 = vmul.f32 %v2087, %v2110
    %v2122 = vmul.f32 %v2088, %v2120
    %v2124 = vperm.slane %v1181, 0
    %v2126 = vmul.f32 %v2121, %v2124
    %v2127 = vmul.f32 %v2122, %v2124
    %v2129 = vperm.slane %v1183, 0
    %v2131 = vadd.f32 %v2126, %v2129
    %v2132 = vadd.f32 %v2127, %v2129
    %v2133 = vrot.slane %v2131, 4
    %v2134 = vsel %vm117, 0.0, %v2133
    %v2136 = vunpack.c.l.s4 1983009808
    %v2137 = vunpack.c.0.s8 %v2136
    %v2138 = vperm.slane %v2131, %v2137
    %v2140 = vunpack.c.l.s4 1983009808
    %v2141 = vunpack.c.0.s8 %v2140
    %v2142 = vperm.slane %v2134, %v2141
    %v2143 = vrot.slane %v2132, 4
    %v2144 = vsel %vm117, 0.0, %v2143
    %v2146 = vunpack.c.l.s4 1983009808
    %v2147 = vunpack.c.0.s8 %v2146
    %v2148 = vperm.slane %v2132, %v2147
    %v2150 = vunpack.c.l.s4 1983009808
    %v2151 = vunpack.c.0.s8 %v2150
    %v2152 = vperm.slane %v2144, %v2151
    %v2153 = vrot.slane %v2148, 4
    %v2154 = vsel %vm117, %v2153, %v2138
    %v2155 = vrot.slane %v2138, 4
    %v2156 = vsel %vm117, %v2148, %v2155
    %v2158 = vunpack.c.l.s4 1934713408
    %v2159 = vunpack.c.0.s8 %v2158
    %v2160 = vperm.slane %v2154, %v2159
    %v2162 = vunpack.c.l.s4 1934713408
    %v2163 = vunpack.c.0.s8 %v2162
    %v2164 = vperm.slane %v2156, %v2163
    %v2165 = vrot.slane %v2152, 4
    %v2166 = vsel %vm117, %v2165, %v2142
    %v2167 = vrot.slane %v2142, 4
    %v2168 = vsel %vm117, %v2152, %v2167
    %v2170 = vunpack.c.l.s4 1934713408
    %v2171 = vunpack.c.0.s8 %v2170
    %v2172 = vperm.slane %v2166, %v2171
    %v2174 = vunpack.c.l.s4 1934713408
    %v2175 = vunpack.c.0.s8 %v2174
    %v2176 = vperm.slane %v2168, %v2175
    %v2177 = vrot.slane %v2160, 4
    %v2178 = vsel %vm117, 0.0, %v2177
    %v2179 = vrot.slane %v2164, 4
    %v2180 = vsel %vm117, 0.0, %v2179
    %v2181 = vrot.slane %v2172, 4
    %v2182 = vsel %vm117, 0.0, %v2181
    %v2183 = vrot.slane %v2176, 4
    %v2184 = vsel %vm117, 0.0, %v2183
    %vm2185 = vcmask 254976
    %2186 = vst.msk [vmem:[#allocation10] sm:$0x3] %vm2185, %v2160
    %2187 = vst.msk [vmem:[#allocation10 + $0x2] sm:$0x3] %vm2185, %v2178
    %2188 = vst.msk [vmem:[#allocation10 + $0x4] sm:$0x3] %vm2185, %v2164
    %2189 = vst.msk [vmem:[#allocation10 + $0x6] sm:$0x3] %vm2185, %v2180
    %2190 = vst.msk [vmem:[#allocation10 + $0x8] sm:$0x3] %vm2185, %v2172
    %2191 = vst.msk [vmem:[#allocation10 + $0xa] sm:$0x3] %vm2185, %v2182
    %2192 = vst.msk [vmem:[#allocation10 + $0xc] sm:$0x3] %vm2185, %v2176
    %2193 = vst.msk [vmem:[#allocation10 + $0xe] sm:$0x3] %vm2185, %v2184
    // Predicated region
    $region70: #{tpu_custom_call.1} parent=1 // pred_check
      _
    $region71: #{tpu_custom_call.1} parent=1 // pred_check_branch
      %2195 = sbr.rel (0) target = $region73
    $region72: #{tpu_custom_call.1} parent=1 // pred_region
      %2197 = vsyncadd [#allocation4], 0
      %s2198 = sshll.u32 [#allocation10], 4
      %s2199 = int_to_ptr.vmem [resolvable:$true] %s2198
      %s2200 = sshll.u32 %s13, 4
      %s2201 = int_to_ptr.hbm [resolvable:$true] %s2200
      %2206 = dma.vmem_to_hbm [thread:$0]  %s2199, 256, %s2201, [#allocation4], 32, 32, 2
    $region73: #{tpu_custom_call.1} parent=1 // pred_fallthru
      _
    // Predicated region
    $region74: #{tpu_custom_call.1} parent=1 // pred_check
      _
    $region75: #{tpu_custom_call.1} parent=1 // pred_check_branch
      %2208 = sbr.rel (0) target = $region77
    $region76: #{tpu_custom_call.1} parent=1 // pred_region
      %2210 = dma.done [#allocation4], 256
    $region77: #{tpu_custom_call.1} parent=1 // pred_fallthru
      _
    %2211 = vsyncpa [#allocation3], 1
    %2212 = vsyncpa [#allocation6], 1
    %2213 = vsyncpa [#allocation9], 1
    %2214 = vsyncpa [#allocation4], 1

</llo_original>
